<compile_context>
chip_gen: v7x
topology: tpu7x:2x2x1
jax: 0.10.0
libtpu: 0.0.40
codegen_flags: <defaults>
</compile_context>

<pallas_src>
import functools

import jax
import jax.numpy as jnp
from jax.experimental import pallas as pl
from jax.experimental.pallas import tpu as pltpu


def _round_up(x, m):
    return (x + m - 1) // m * m


def _cdiv(a, b):
    return (a + b - 1) // b


# ----------------------------- Pallas kernels -----------------------------

def _conv1_pool_kernel(x_ref, w_ref, b_ref, o_ref):
    """conv1 (as matmul) + bias + ReLU + fused 2x2/2 max-pool.

    x_ref: (4, 75, TL) bf16 -- 4 pooling phases of transposed im2col patches
    w_ref: (8, 75)     bf16 -- conv1 weight, out-channels zero-padded 6 -> 8
    b_ref: (8, 1)      f32
    o_ref: (8, TL)     f32  -- pooled activations, channels x positions (lane-dense)
    """
    w = w_ref[...]
    # One full-width (8,75)x(75,TL) matmul per pooling phase; running max = pool.
    m = jnp.dot(w, x_ref[0], preferred_element_type=jnp.float32)
    for p in range(1, 4):
        m = jnp.maximum(m, jnp.dot(w, x_ref[p], preferred_element_type=jnp.float32))
    # relu(max_p(conv_p) + b) == max_p(relu(conv_p + b)) since b is phase-invariant.
    o_ref[...] = jnp.maximum(m + b_ref[...], 0.0)


def _conv2_pool_mlp_kernel(x2_ref, w2_ref, b2_ref, w1f_ref, b1f_ref,
                           w2f_ref, b2f_ref, w3f_ref, b3f_ref, o_ref, *, bt):
    """conv2 + bias + ReLU + 2x2 max-pool + flatten + fc1/fc2/fc3 for one batch tile.

    x2_ref : (4, 25*BT, 150) bf16  phase-stacked conv2 im2col, rows = s*BT + n_local
    w2_ref : (150, 16) bf16, b2_ref: (1, 16) f32
    w1f_ref: (400, 120) bf16  fc1 weight permuted so row = s*16 + c
    w2f_ref: (120, 84) bf16,  w3f_ref: (84, 128) bf16 (classes zero-padded to 128)
    o_ref  : (BT, 128) f32    logits for this batch tile (lane-dense)
    """
    w2 = w2_ref[...]
    m = jnp.dot(x2_ref[0], w2, preferred_element_type=jnp.float32)
    for p in range(1, 4):
        m = jnp.maximum(m, jnp.dot(x2_ref[p], w2, preferred_element_type=jnp.float32))
    a2 = jnp.maximum(m + b2_ref[...], 0.0)                   # (25*BT, 16) f32, pooled

    # flatten + fc1 fused: 25 sublane-aligned partial matmuls.  All 25 dots are
    # independent (no accumulator carried between them) and tree-reduced, so the
    # MXU can pipeline the pushes instead of waiting on a pop->add->push chain.
    parts = [
        jnp.dot(a2[s * bt:(s + 1) * bt, :].astype(w1f_ref.dtype),
                w1f_ref[s * 16:(s + 1) * 16, :],
                preferred_element_type=jnp.float32)
        for s in range(25)
    ]
    while len(parts) > 1:
        nxt = [parts[i] + parts[i + 1] for i in range(0, len(parts) - 1, 2)]
        if len(parts) % 2:
            nxt.append(parts[-1])
        parts = nxt

    h = jnp.maximum(parts[0] + b1f_ref[...], 0.0)            # fc1 + relu  (BT, 120)
    h = jnp.maximum(
        jnp.dot(h.astype(w2f_ref.dtype), w2f_ref[...],
                preferred_element_type=jnp.float32) + b2f_ref[...], 0.0)   # fc2 + relu
    o_ref[...] = (jnp.dot(h.astype(w3f_ref.dtype), w3f_ref[...],
                          preferred_element_type=jnp.float32) + b3f_ref[...])  # fc3


# ----------------------------- pallas_call wrappers ------------------------

def conv1_relu_pool(x1t, w1t, b1t, lane_tile):
    """x1t: (4, 75, M1L) bf16 -> (8, M1L) f32 pooled conv1 activations."""
    ph, f1, m1l = x1t.shape
    c1p = w1t.shape[0]
    grid = m1l // lane_tile          # m1l is built as a multiple of lane_tile
    return pl.pallas_call(
        _conv1_pool_kernel,
        out_shape=jax.ShapeDtypeStruct((c1p, m1l), jnp.float32),
        grid=(grid,),
        in_specs=[
            pl.BlockSpec((ph, f1, lane_tile), lambda i: (0, 0, i)),
            pl.BlockSpec((c1p, f1), lambda i: (0, 0)),
            pl.BlockSpec((c1p, 1), lambda i: (0, 0)),
        ],
        out_specs=pl.BlockSpec((c1p, lane_tile), lambda i: (0, i)),
        compiler_params=pltpu.CompilerParams(
            dimension_semantics=("parallel",),
            vmem_limit_bytes=32 * 1024 * 1024,
        ),
    )(x1t, w1t, b1t)


def conv2_pool_mlp(x2, w2m, b2m, w1f, b1f, w2f, b2f, w3f, b3f, *, bt, nt):
    """Fused conv2 block + MLP, tiled over NT batch tiles of BT images each.

    x2: (4, NT*25*BT, 150) bf16 -> (NT*BT, 128) f32 logits.
    """
    outp = w3f.shape[1]
    rows = 25 * bt
    kernel = functools.partial(_conv2_pool_mlp_kernel, bt=bt)
    return pl.pallas_call(
        kernel,
        out_shape=jax.ShapeDtypeStruct((nt * bt, outp), jnp.float32),
        grid=(nt,),
        in_specs=[
            pl.BlockSpec((4, rows, x2.shape[-1]), lambda i: (0, i, 0)),
            # weights/biases: constant index maps -> fetched once, revisited.
            pl.BlockSpec(w2m.shape, lambda i: (0, 0)),
            pl.BlockSpec(b2m.shape, lambda i: (0, 0)),
            pl.BlockSpec(w1f.shape, lambda i: (0, 0)),
            pl.BlockSpec(b1f.shape, lambda i: (0, 0)),
            pl.BlockSpec(w2f.shape, lambda i: (0, 0)),
            pl.BlockSpec(b2f.shape, lambda i: (0, 0)),
            pl.BlockSpec(w3f.shape, lambda i: (0, 0)),
            pl.BlockSpec(b3f.shape, lambda i: (0, 0)),
        ],
        out_specs=pl.BlockSpec((bt, outp), lambda i: (i, 0)),
        compiler_params=pltpu.CompilerParams(
            dimension_semantics=("parallel",),
            vmem_limit_bytes=32 * 1024 * 1024,
        ),
    )(x2, w2m, b2m, w1f, b1f, w2f, b2f, w3f, b3f)


# ----------------------------- JAX glue (layout only) ----------------------

def _im2col_nhwc(x, k):
    """(N, H, W, C) -> (N, OH, OW, k*k*C), feature order (kh, kw, c)."""
    n, h, w, c = x.shape
    oh, ow = h - k + 1, w - k + 1
    cols = [x[:, kh:kh + oh, kw:kw + ow, :] for kh in range(k) for kw in range(k)]
    p = jnp.stack(cols, axis=3)                   # (N, OH, OW, k*k, C)
    return p.reshape(n, oh, ow, k * k * c)


def _choose_lane_tile(m1, cap=2048):
    """Adaptive lane tile: no hard 512-multiple pad; >=2 grid steps once m1 > cap
    (so both v7x TensorCores get work); cap keeps the double-buffered input well
    under every generation's VMEM (v7x: 64 MiB physical)."""
    if m1 <= cap:
        return _round_up(m1, 128)
    return min(cap, _round_up(_cdiv(m1, 2), 128))


def _conv1_phases_t(p, lane_tile):
    """(N, 28, 28, 75) -> (4, 75, M1L) bf16: pool phases, transposed, lane-padded."""
    n, oh, ow, f = p.shape
    ph, pw = oh // 2, ow // 2                     # floor-mode 2x2 pool
    m1 = n * ph * pw
    m1l = _round_up(m1, lane_tile)
    phases = []
    for a in range(2):
        for b in range(2):
            q = p[:, a::2, b::2, :].reshape(m1, f)          # rows = n*196 + ph*14 + pw
            q = jnp.pad(q, ((0, m1l - m1), (0, 0)))
            phases.append(q.T)                              # (75, M1L)
    return jnp.stack(phases, axis=0).astype(jnp.bfloat16), m1, m1l


def _conv2_phases_rows(p, nt, bt):
    """(NT*BT, 10, 10, 150) -> (4, NT*25*BT, 150) bf16, rows = t*25*BT + s*BT + n."""
    npb, oh, ow, f = p.shape
    ph, pw = oh // 2, ow // 2
    phases = []
    for a in range(2):
        for b in range(2):
            q = p[:, a::2, b::2, :]                         # (NPb, 5, 5, F)
            q = q.reshape(nt, bt, ph, pw, f).transpose(0, 2, 3, 1, 4)
            phases.append(q.reshape(nt * ph * pw * bt, f))
    return jnp.stack(phases, axis=0).astype(jnp.bfloat16)


# ----------------------------- LeNet forward ------------------------------

def lenet_forward(prep, x, *, num_classes=10):
    """x: (N, 3, 32, 32) float32 (NCHW, as in PyTorch). Returns (N, num_classes)."""
    n = x.shape[0]

    # ---- conv1 + relu + maxpool (kernel A) ----
    xh = x.transpose(0, 2, 3, 1)                            # (N, 32, 32, 3), one-time
    p1 = _im2col_nhwc(xh, 5)                                # (N, 28, 28, 75)
    lane_tile = _choose_lane_tile(n * 14 * 14)
    x1t, m1, _ = _conv1_phases_t(p1, lane_tile)             # (4, 75, M1L) bf16
    y1t = conv1_relu_pool(x1t, prep["w1t"], prep["b1t"], lane_tile)   # (8, M1L) f32
    y1 = y1t[:6, :m1].T.reshape(n, 14, 14, 6)               # NHWC, tiny relayout

    # ---- conv2 + relu + maxpool + flatten + fc1/fc2/fc3 (kernel B, batch-tiled) ----
    bt = min(16, _round_up(n, 8))                           # images per grid step
    npb = _round_up(n, bt)
    nt = npb // bt
    y1p = jnp.pad(y1, ((0, npb - n), (0, 0), (0, 0), (0, 0)))
    p2 = _im2col_nhwc(y1p, 5)                               # (NPb, 10, 10, 150)
    x2 = _conv2_phases_rows(p2, nt, bt)                     # (4, NT*25*BT, 150) bf16
    out = conv2_pool_mlp(x2, prep["w2m"], prep["b2m"],
                         prep["w1f"], prep["b1f"],
                         prep["w2f"], prep["b2f"],
                         prep["w3f"], prep["b3f"], bt=bt, nt=nt)      # (NPb, 128)
    return out[:n, :num_classes]


# ----------------------------- params ---------------------------------------

def init_params(key, num_classes=10):
    ks = jax.random.split(key, 10)

    def u(k, shape, fan_in):
        bound = 1.0 / (fan_in ** 0.5)
        return jax.random.uniform(k, shape, jnp.float32, -bound, bound)

    return {
        "conv1_w": u(ks[0], (6, 3, 5, 5), 3 * 25),
        "conv1_b": u(ks[1], (6,), 3 * 25),
        "conv2_w": u(ks[2], (16, 6, 5, 5), 6 * 25),
        "conv2_b": u(ks[3], (16,), 6 * 25),
        "fc1_w": u(ks[4], (120, 400), 400),
        "fc1_b": u(ks[5], (120,), 400),
        "fc2_w": u(ks[6], (84, 120), 120),
        "fc2_b": u(ks[7], (84,), 120),
        "fc3_w": u(ks[8], (num_classes, 84), 84),
        "fc3_b": u(ks[9], (num_classes,), 84),
    }


def prepare_params(params, num_classes=10):
    """One-time weight repacking: permute to the kernels' activation layouts,
    zero-pad for sublane/lane alignment, and cast weights to bf16 (biases stay
    f32; all matmuls accumulate in f32 via preferred_element_type)."""
    assert num_classes <= 128
    bf16, f32 = jnp.bfloat16, jnp.float32
    # conv1: (co, ci, kh, kw) -> (co, kh*15 + kw*3 + ci), out-channels padded to 8.
    w1t = jnp.zeros((8, 75), f32).at[:6].set(
        params["conv1_w"].transpose(0, 2, 3, 1).reshape(6, 75)).astype(bf16)
    b1t = jnp.zeros((8, 1), f32).at[:6, 0].set(params["conv1_b"])
    # conv2: (co, ci, kh, kw) -> (kh*30 + kw*6 + ci, co), matches NHWC im2col order.
    w2m = params["conv2_w"].transpose(2, 3, 1, 0).reshape(150, 16).astype(bf16)
    b2m = params["conv2_b"].reshape(1, 16).astype(f32)
    # fc1: PyTorch feature c*25+s  ->  kernel feature s*16+c.
    w1f = params["fc1_w"].reshape(120, 16, 25).transpose(2, 1, 0).reshape(400, 120).astype(bf16)
    b1f = params["fc1_b"].reshape(1, 120).astype(f32)
    w2f = params["fc2_w"].T.astype(bf16)
    b2f = params["fc2_b"].reshape(1, 84).astype(f32)
    # fc3: pad output classes to 128 lanes for a lane-dense final store.
    w3f = jnp.zeros((84, 128), f32).at[:, :num_classes].set(params["fc3_w"].T).astype(bf16)
    b3f = jnp.zeros((1, 128), f32).at[0, :num_classes].set(params["fc3_b"])
    return {"w1t": w1t, "b1t": b1t, "w2m": w2m, "b2m": b2m,
            "w1f": w1f, "b1f": b1f, "w2f": w2f, "b2f": b2f,
            "w3f": w3f, "b3f": b3f}


if __name__ == "__main__":
    key = jax.random.PRNGKey(0)
    pkey, xkey = jax.random.split(key)
    params = init_params(pkey, num_classes=10)
    prep = prepare_params(params, num_classes=10)
    # LeNet's fc1 (16*5*5) pins the input to 3x32x32; batch kept small.
    x = jax.random.normal(xkey, (2, 3, 32, 32), dtype=jnp.float32)

    fwd = jax.jit(lenet_forward, static_argnames=("num_classes",))
    out = fwd(prep, x, num_classes=10)
    out = jax.block_until_ready(out)
    assert out.shape == (2, 10) and out.dtype == jnp.float32
    print("KERNEL_OK")
</pallas_src>

<mosaic_0001>
module attributes {stable_mosaic.version = 11 : i64} {
  func.func @_conv1_pool_kernel(%arg0: i32, %arg1: memref<4x75x512xbf16, #tpu.memory_space<vmem>>, %arg2: memref<8x75xbf16, #tpu.memory_space<vmem>>, %arg3: memref<8x1xf32, #tpu.memory_space<vmem>>, %arg4: memref<8x512xf32, #tpu.memory_space<vmem>>) attributes {dimension_semantics = [#tpu.dimension_semantics<parallel>], iteration_bounds = array<i64: 1>, scalar_prefetch = 0 : i64, scratch_operands = 0 : i64, tpu.core_type = #tpu.core_type<tc>, window_params = [{transform_indices = @transform_0, window_bounds = array<i64: 4, 75, 512>}, {pipeline_mode = #tpu.pipeline_mode<synchronous>, transform_indices = @transform_1, window_bounds = array<i64: 8, 75>}, {pipeline_mode = #tpu.pipeline_mode<synchronous>, transform_indices = @transform_2, window_bounds = array<i64: 8, 1>}, {transform_indices = @transform_3, window_bounds = array<i64: 8, 512>}]} {
    %c0 = arith.constant 0 : index
    %c0_0 = arith.constant 0 : index
    %0 = vector.load %arg2[%c0, %c0_0] : memref<8x75xbf16, #tpu.memory_space<vmem>>, vector<8x75xbf16>
    %c0_1 = arith.constant 0 : index
    %c0_2 = arith.constant 0 : index
    %c0_3 = arith.constant 0 : index
    %1 = vector.load %arg1[%c0_1, %c0_2, %c0_3] : memref<4x75x512xbf16, #tpu.memory_space<vmem>>, vector<1x75x512xbf16>
    %2 = vector.shape_cast %1 : vector<1x75x512xbf16> to vector<75x512xbf16>
    %cst = arith.constant dense<0.000000e+00> : vector<8x512xf32>
    %3 = tpu.matmul %0, %2, %cst {dimension_numbers = #tpu.dot_dimension_numbers<[1], [0], [0], [1], [0, 0, 1, 1], [], []>} : vector<8x75xbf16>, vector<75x512xbf16>, vector<8x512xf32> -> vector<8x512xf32>
    %c1 = arith.constant 1 : index
    %c0_4 = arith.constant 0 : index
    %c0_5 = arith.constant 0 : index
    %4 = vector.load %arg1[%c1, %c0_4, %c0_5] : memref<4x75x512xbf16, #tpu.memory_space<vmem>>, vector<1x75x512xbf16>
    %5 = vector.shape_cast %4 : vector<1x75x512xbf16> to vector<75x512xbf16>
    %cst_6 = arith.constant dense<0.000000e+00> : vector<8x512xf32>
    %6 = tpu.matmul %0, %5, %cst_6 {dimension_numbers = #tpu.dot_dimension_numbers<[1], [0], [0], [1], [0, 0, 1, 1], [], []>} : vector<8x75xbf16>, vector<75x512xbf16>, vector<8x512xf32> -> vector<8x512xf32>
    %7 = arith.maximumf %3, %6 : vector<8x512xf32>
    %c2 = arith.constant 2 : index
    %c0_7 = arith.constant 0 : index
    %c0_8 = arith.constant 0 : index
    %8 = vector.load %arg1[%c2, %c0_7, %c0_8] : memref<4x75x512xbf16, #tpu.memory_space<vmem>>, vector<1x75x512xbf16>
    %9 = vector.shape_cast %8 : vector<1x75x512xbf16> to vector<75x512xbf16>
    %cst_9 = arith.constant dense<0.000000e+00> : vector<8x512xf32>
    %10 = tpu.matmul %0, %9, %cst_9 {dimension_numbers = #tpu.dot_dimension_numbers<[1], [0], [0], [1], [0, 0, 1, 1], [], []>} : vector<8x75xbf16>, vector<75x512xbf16>, vector<8x512xf32> -> vector<8x512xf32>
    %11 = arith.maximumf %7, %10 : vector<8x512xf32>
    %c3 = arith.constant 3 : index
    %c0_10 = arith.constant 0 : index
    %c0_11 = arith.constant 0 : index
    %12 = vector.load %arg1[%c3, %c0_10, %c0_11] : memref<4x75x512xbf16, #tpu.memory_space<vmem>>, vector<1x75x512xbf16>
    %13 = vector.shape_cast %12 : vector<1x75x512xbf16> to vector<75x512xbf16>
    %cst_12 = arith.constant dense<0.000000e+00> : vector<8x512xf32>
    %14 = tpu.matmul %0, %13, %cst_12 {dimension_numbers = #tpu.dot_dimension_numbers<[1], [0], [0], [1], [0, 0, 1, 1], [], []>} : vector<8x75xbf16>, vector<75x512xbf16>, vector<8x512xf32> -> vector<8x512xf32>
    %15 = arith.maximumf %11, %14 : vector<8x512xf32>
    %c0_13 = arith.constant 0 : index
    %c0_14 = arith.constant 0 : index
    %16 = vector.load %arg3[%c0_13, %c0_14] : memref<8x1xf32, #tpu.memory_space<vmem>>, vector<8x1xf32>
    %17 = vector.broadcast %16 : vector<8x1xf32> to vector<8x512xf32>
    %18 = arith.addf %15, %17 : vector<8x512xf32>
    %cst_15 = arith.constant 0.000000e+00 : f32
    %19 = vector.broadcast %cst_15 : f32 to vector<8x512xf32>
    %20 = arith.maximumf %18, %19 : vector<8x512xf32>
    %c0_16 = arith.constant 0 : index
    %c0_17 = arith.constant 0 : index
    %21 = vector.load %arg4[%c0_16, %c0_17] : memref<8x512xf32, #tpu.memory_space<vmem>>, vector<8x512xf32>
    tpu.vector_store %arg4[%c0_16, %c0_17], %20 {strides = array<i32>} : memref<8x512xf32, #tpu.memory_space<vmem>>, vector<8x512xf32>,
    return
  }
  func.func @transform_0(%arg0: i32) -> (i32, i32, i32) {
    %c0_i32 = arith.constant 0 : i32
    %c0_i32_0 = arith.constant 0 : i32
    %c0_i32_1 = arith.constant 0 : i32
    return %c0_i32, %c0_i32_0, %arg0 : i32, i32, i32
  }
  func.func @transform_1(%arg0: i32) -> (i32, i32) {
    %c0_i32 = arith.constant 0 : i32
    %c0_i32_0 = arith.constant 0 : i32
    %c0_i32_1 = arith.constant 0 : i32
    return %c0_i32, %c0_i32_0 : i32, i32
  }
  func.func @transform_2(%arg0: i32) -> (i32, i32) {
    %c0_i32 = arith.constant 0 : i32
    %c0_i32_0 = arith.constant 0 : i32
    %c0_i32_1 = arith.constant 0 : i32
    return %c0_i32, %c0_i32_0 : i32, i32
  }
  func.func @transform_3(%arg0: i32) -> (i32, i32) {
    %c0_i32 = arith.constant 0 : i32
    %c0_i32_0 = arith.constant 0 : i32
    return %c0_i32, %arg0 : i32, i32
  }
}

module attributes {stable_mosaic.version = 11 : i64} {
  func.func @_conv2_pool_mlp_kernel(%arg0: i32, %arg1: memref<4x200x150xbf16, #tpu.memory_space<vmem>>, %arg2: memref<150x16xbf16, #tpu.memory_space<vmem>>, %arg3: memref<1x16xf32, #tpu.memory_space<vmem>>, %arg4: memref<400x120xbf16, #tpu.memory_space<vmem>>, %arg5: memref<1x120xf32, #tpu.memory_space<vmem>>, %arg6: memref<120x84xbf16, #tpu.memory_space<vmem>>, %arg7: memref<1x84xf32, #tpu.memory_space<vmem>>, %arg8: memref<84x128xbf16, #tpu.memory_space<vmem>>, %arg9: memref<1x128xf32, #tpu.memory_space<vmem>>, %arg10: memref<8x128xf32, #tpu.memory_space<vmem>>) attributes {dimension_semantics = [#tpu.dimension_semantics<parallel>], iteration_bounds = array<i64: 1>, scalar_prefetch = 0 : i64, scratch_operands = 0 : i64, tpu.core_type = #tpu.core_type<tc>, window_params = [{transform_indices = @transform_0, window_bounds = array<i64: 4, 200, 150>}, {pipeline_mode = #tpu.pipeline_mode<synchronous>, transform_indices = @transform_1, window_bounds = array<i64: 150, 16>}, {pipeline_mode = #tpu.pipeline_mode<synchronous>, transform_indices = @transform_2, window_bounds = array<i64: 1, 16>}, {pipeline_mode = #tpu.pipeline_mode<synchronous>, transform_indices = @transform_3, window_bounds = array<i64: 400, 120>}, {pipeline_mode = #tpu.pipeline_mode<synchronous>, transform_indices = @transform_4, window_bounds = array<i64: 1, 120>}, {pipeline_mode = #tpu.pipeline_mode<synchronous>, transform_indices = @transform_5, window_bounds = array<i64: 120, 84>}, {pipeline_mode = #tpu.pipeline_mode<synchronous>, transform_indices = @transform_6, window_bounds = array<i64: 1, 84>}, {pipeline_mode = #tpu.pipeline_mode<synchronous>, transform_indices = @transform_7, window_bounds = array<i64: 84, 128>}, {pipeline_mode = #tpu.pipeline_mode<synchronous>, transform_indices = @transform_8, window_bounds = array<i64: 1, 128>}, {transform_indices = @transform_9, window_bounds = array<i64: 8, 128>}]} {
    %c0 = arith.constant 0 : index
    %c0_0 = arith.constant 0 : index
    %0 = vector.load %arg2[%c0, %c0_0] : memref<150x16xbf16, #tpu.memory_space<vmem>>, vector<150x16xbf16>
    %c0_1 = arith.constant 0 : index
    %c0_2 = arith.constant 0 : index
    %c0_3 = arith.constant 0 : index
    %1 = vector.load %arg1[%c0_1, %c0_2, %c0_3] : memref<4x200x150xbf16, #tpu.memory_space<vmem>>, vector<1x200x150xbf16>
    %2 = vector.shape_cast %1 : vector<1x200x150xbf16> to vector<200x150xbf16>
    %cst = arith.constant dense<0.000000e+00> : vector<200x16xf32>
    %3 = tpu.matmul %2, %0, %cst {dimension_numbers = #tpu.dot_dimension_numbers<[1], [0], [0], [1], [0, 0, 1, 1], [], []>} : vector<200x150xbf16>, vector<150x16xbf16>, vector<200x16xf32> -> vector<200x16xf32>
    %c1 = arith.constant 1 : index
    %c0_4 = arith.constant 0 : index
    %c0_5 = arith.constant 0 : index
    %4 = vector.load %arg1[%c1, %c0_4, %c0_5] : memref<4x200x150xbf16, #tpu.memory_space<vmem>>, vector<1x200x150xbf16>
    %5 = vector.shape_cast %4 : vector<1x200x150xbf16> to vector<200x150xbf16>
    %cst_6 = arith.constant dense<0.000000e+00> : vector<200x16xf32>
    %6 = tpu.matmul %5, %0, %cst_6 {dimension_numbers = #tpu.dot_dimension_numbers<[1], [0], [0], [1], [0, 0, 1, 1], [], []>} : vector<200x150xbf16>, vector<150x16xbf16>, vector<200x16xf32> -> vector<200x16xf32>
    %7 = arith.maximumf %3, %6 : vector<200x16xf32>
    %c2 = arith.constant 2 : index
    %c0_7 = arith.constant 0 : index
    %c0_8 = arith.constant 0 : index
    %8 = vector.load %arg1[%c2, %c0_7, %c0_8] : memref<4x200x150xbf16, #tpu.memory_space<vmem>>, vector<1x200x150xbf16>
    %9 = vector.shape_cast %8 : vector<1x200x150xbf16> to vector<200x150xbf16>
    %cst_9 = arith.constant dense<0.000000e+00> : vector<200x16xf32>
    %10 = tpu.matmul %9, %0, %cst_9 {dimension_numbers = #tpu.dot_dimension_numbers<[1], [0], [0], [1], [0, 0, 1, 1], [], []>} : vector<200x150xbf16>, vector<150x16xbf16>, vector<200x16xf32> -> vector<200x16xf32>
    %11 = arith.maximumf %7, %10 : vector<200x16xf32>
    %c3 = arith.constant 3 : index
    %c0_10 = arith.constant 0 : index
    %c0_11 = arith.constant 0 : index
    %12 = vector.load %arg1[%c3, %c0_10, %c0_11] : memref<4x200x150xbf16, #tpu.memory_space<vmem>>, vector<1x200x150xbf16>
    %13 = vector.shape_cast %12 : vector<1x200x150xbf16> to vector<200x150xbf16>
    %cst_12 = arith.constant dense<0.000000e+00> : vector<200x16xf32>
    %14 = tpu.matmul %13, %0, %cst_12 {dimension_numbers = #tpu.dot_dimension_numbers<[1], [0], [0], [1], [0, 0, 1, 1], [], []>} : vector<200x150xbf16>, vector<150x16xbf16>, vector<200x16xf32> -> vector<200x16xf32>
    %15 = arith.maximumf %11, %14 : vector<200x16xf32>
    %c0_13 = arith.constant 0 : index
    %c0_14 = arith.constant 0 : index
    %16 = vector.load %arg3[%c0_13, %c0_14] : memref<1x16xf32, #tpu.memory_space<vmem>>, vector<1x16xf32>
    %17 = vector.broadcast %16 : vector<1x16xf32> to vector<200x16xf32>
    %18 = arith.addf %15, %17 : vector<200x16xf32>
    %cst_15 = arith.constant 0.000000e+00 : f32
    %19 = vector.broadcast %cst_15 : f32 to vector<200x16xf32>
    %20 = arith.maximumf %18, %19 : vector<200x16xf32>
    %21 = vector.extract_strided_slice %20 {offsets = [0, 0], sizes = [8, 16], strides = [1, 1]} : vector<200x16xf32> to vector<8x16xf32>
    %22 = arith.truncf %21 : vector<8x16xf32> to vector<8x16xbf16>
    %c0_16 = arith.constant 0 : index
    %c0_17 = arith.constant 0 : index
    %23 = vector.load %arg4[%c0_16, %c0_17] : memref<400x120xbf16, #tpu.memory_space<vmem>>, vector<16x120xbf16>
    %cst_18 = arith.constant dense<0.000000e+00> : vector<8x120xf32>
    %24 = tpu.matmul %22, %23, %cst_18 {dimension_numbers = #tpu.dot_dimension_numbers<[1], [0], [0], [1], [0, 0, 1, 1], [], []>} : vector<8x16xbf16>, vector<16x120xbf16>, vector<8x120xf32> -> vector<8x120xf32>
    %25 = vector.extract_strided_slice %20 {offsets = [8, 0], sizes = [8, 16], strides = [1, 1]} : vector<200x16xf32> to vector<8x16xf32>
    %26 = arith.truncf %25 : vector<8x16xf32> to vector<8x16xbf16>
    %c16 = arith.constant 16 : index
    %c0_19 = arith.constant 0 : index
    %27 = vector.load %arg4[%c16, %c0_19] : memref<400x120xbf16, #tpu.memory_space<vmem>>, vector<16x120xbf16>
    %cst_20 = arith.constant dense<0.000000e+00> : vector<8x120xf32>
    %28 = tpu.matmul %26, %27, %cst_20 {dimension_numbers = #tpu.dot_dimension_numbers<[1], [0], [0], [1], [0, 0, 1, 1], [], []>} : vector<8x16xbf16>, vector<16x120xbf16>, vector<8x120xf32> -> vector<8x120xf32>
    %29 = vector.extract_strided_slice %20 {offsets = [16, 0], sizes = [8, 16], strides = [1, 1]} : vector<200x16xf32> to vector<8x16xf32>
    %30 = arith.truncf %29 : vector<8x16xf32> to vector<8x16xbf16>
    %c32 = arith.constant 32 : index
    %c0_21 = arith.constant 0 : index
    %31 = vector.load %arg4[%c32, %c0_21] : memref<400x120xbf16, #tpu.memory_space<vmem>>, vector<16x120xbf16>
    %cst_22 = arith.constant dense<0.000000e+00> : vector<8x120xf32>
    %32 = tpu.matmul %30, %31, %cst_22 {dimension_numbers = #tpu.dot_dimension_numbers<[1], [0], [0], [1], [0, 0, 1, 1], [], []>} : vector<8x16xbf16>, vector<16x120xbf16>, vector<8x120xf32> -> vector<8x120xf32>
    %33 = vector.extract_strided_slice %20 {offsets = [24, 0], sizes = [8, 16], strides = [1, 1]} : vector<200x16xf32> to vector<8x16xf32>
    %34 = arith.truncf %33 : vector<8x16xf32> to vector<8x16xbf16>
    %c48 = arith.constant 48 : index
    %c0_23 = arith.constant 0 : index
    %35 = vector.load %arg4[%c48, %c0_23] : memref<400x120xbf16, #tpu.memory_space<vmem>>, vector<16x120xbf16>
    %cst_24 = arith.constant dense<0.000000e+00> : vector<8x120xf32>
    %36 = tpu.matmul %34, %35, %cst_24 {dimension_numbers = #tpu.dot_dimension_numbers<[1], [0], [0], [1], [0, 0, 1, 1], [], []>} : vector<8x16xbf16>, vector<16x120xbf16>, vector<8x120xf32> -> vector<8x120xf32>
    %37 = vector.extract_strided_slice %20 {offsets = [32, 0], sizes = [8, 16], strides = [1, 1]} : vector<200x16xf32> to vector<8x16xf32>
    %38 = arith.truncf %37 : vector<8x16xf32> to vector<8x16xbf16>
    %c64 = arith.constant 64 : index
    %c0_25 = arith.constant 0 : index
    %39 = vector.load %arg4[%c64, %c0_25] : memref<400x120xbf16, #tpu.memory_space<vmem>>, vector<16x120xbf16>
    %cst_26 = arith.constant dense<0.000000e+00> : vector<8x120xf32>
    %40 = tpu.matmul %38, %39, %cst_26 {dimension_numbers = #tpu.dot_dimension_numbers<[1], [0], [0], [1], [0, 0, 1, 1], [], []>} : vector<8x16xbf16>, vector<16x120xbf16>, vector<8x120xf32> -> vector<8x120xf32>
    %41 = vector.extract_strided_slice %20 {offsets = [40, 0], sizes = [8, 16], strides = [1, 1]} : vector<200x16xf32> to vector<8x16xf32>
    %42 = arith.truncf %41 : vector<8x16xf32> to vector<8x16xbf16>
    %c80 = arith.constant 80 : index
    %c0_27 = arith.constant 0 : index
    %43 = vector.load %arg4[%c80, %c0_27] : memref<400x120xbf16, #tpu.memory_space<vmem>>, vector<16x120xbf16>
    %cst_28 = arith.constant dense<0.000000e+00> : vector<8x120xf32>
    %44 = tpu.matmul %42, %43, %cst_28 {dimension_numbers = #tpu.dot_dimension_numbers<[1], [0], [0], [1], [0, 0, 1, 1], [], []>} : vector<8x16xbf16>, vector<16x120xbf16>, vector<8x120xf32> -> vector<8x120xf32>
    %45 = vector.extract_strided_slice %20 {offsets = [48, 0], sizes = [8, 16], strides = [1, 1]} : vector<200x16xf32> to vector<8x16xf32>
    %46 = arith.truncf %45 : vector<8x16xf32> to vector<8x16xbf16>
    %c96 = arith.constant 96 : index
    %c0_29 = arith.constant 0 : index
    %47 = vector.load %arg4[%c96, %c0_29] : memref<400x120xbf16, #tpu.memory_space<vmem>>, vector<16x120xbf16>
    %cst_30 = arith.constant dense<0.000000e+00> : vector<8x120xf32>
    %48 = tpu.matmul %46, %47, %cst_30 {dimension_numbers = #tpu.dot_dimension_numbers<[1], [0], [0], [1], [0, 0, 1, 1], [], []>} : vector<8x16xbf16>, vector<16x120xbf16>, vector<8x120xf32> -> vector<8x120xf32>
    %49 = vector.extract_strided_slice %20 {offsets = [56, 0], sizes = [8, 16], strides = [1, 1]} : vector<200x16xf32> to vector<8x16xf32>
    %50 = arith.truncf %49 : vector<8x16xf32> to vector<8x16xbf16>
    %c112 = arith.constant 112 : index
    %c0_31 = arith.constant 0 : index
    %51 = vector.load %arg4[%c112, %c0_31] : memref<400x120xbf16, #tpu.memory_space<vmem>>, vector<16x120xbf16>
    %cst_32 = arith.constant dense<0.000000e+00> : vector<8x120xf32>
    %52 = tpu.matmul %50, %51, %cst_32 {dimension_numbers = #tpu.dot_dimension_numbers<[1], [0], [0], [1], [0, 0, 1, 1], [], []>} : vector<8x16xbf16>, vector<16x120xbf16>, vector<8x120xf32> -> vector<8x120xf32>
    %53 = vector.extract_strided_slice %20 {offsets = [64, 0], sizes = [8, 16], strides = [1, 1]} : vector<200x16xf32> to vector<8x16xf32>
    %54 = arith.truncf %53 : vector<8x16xf32> to vector<8x16xbf16>
    %c128 = arith.constant 128 : index
    %c0_33 = arith.constant 0 : index
    %55 = vector.load %arg4[%c128, %c0_33] : memref<400x120xbf16, #tpu.memory_space<vmem>>, vector<16x120xbf16>
    %cst_34 = arith.constant dense<0.000000e+00> : vector<8x120xf32>
    %56 = tpu.matmul %54, %55, %cst_34 {dimension_numbers = #tpu.dot_dimension_numbers<[1], [0], [0], [1], [0, 0, 1, 1], [], []>} : vector<8x16xbf16>, vector<16x120xbf16>, vector<8x120xf32> -> vector<8x120xf32>
    %57 = vector.extract_strided_slice %20 {offsets = [72, 0], sizes = [8, 16], strides = [1, 1]} : vector<200x16xf32> to vector<8x16xf32>
    %58 = arith.truncf %57 : vector<8x16xf32> to vector<8x16xbf16>
    %c144 = arith.constant 144 : index
    %c0_35 = arith.constant 0 : index
    %59 = vector.load %arg4[%c144, %c0_35] : memref<400x120xbf16, #tpu.memory_space<vmem>>, vector<16x120xbf16>
    %cst_36 = arith.constant dense<0.000000e+00> : vector<8x120xf32>
    %60 = tpu.matmul %58, %59, %cst_36 {dimension_numbers = #tpu.dot_dimension_numbers<[1], [0], [0], [1], [0, 0, 1, 1], [], []>} : vector<8x16xbf16>, vector<16x120xbf16>, vector<8x120xf32> -> vector<8x120xf32>
    %61 = vector.extract_strided_slice %20 {offsets = [80, 0], sizes = [8, 16], strides = [1, 1]} : vector<200x16xf32> to vector<8x16xf32>
    %62 = arith.truncf %61 : vector<8x16xf32> to vector<8x16xbf16>
    %c160 = arith.constant 160 : index
    %c0_37 = arith.constant 0 : index
    %63 = vector.load %arg4[%c160, %c0_37] : memref<400x120xbf16, #tpu.memory_space<vmem>>, vector<16x120xbf16>
    %cst_38 = arith.constant dense<0.000000e+00> : vector<8x120xf32>
    %64 = tpu.matmul %62, %63, %cst_38 {dimension_numbers = #tpu.dot_dimension_numbers<[1], [0], [0], [1], [0, 0, 1, 1], [], []>} : vector<8x16xbf16>, vector<16x120xbf16>, vector<8x120xf32> -> vector<8x120xf32>
    %65 = vector.extract_strided_slice %20 {offsets = [88, 0], sizes = [8, 16], strides = [1, 1]} : vector<200x16xf32> to vector<8x16xf32>
    %66 = arith.truncf %65 : vector<8x16xf32> to vector<8x16xbf16>
    %c176 = arith.constant 176 : index
    %c0_39 = arith.constant 0 : index
    %67 = vector.load %arg4[%c176, %c0_39] : memref<400x120xbf16, #tpu.memory_space<vmem>>, vector<16x120xbf16>
    %cst_40 = arith.constant dense<0.000000e+00> : vector<8x120xf32>
    %68 = tpu.matmul %66, %67, %cst_40 {dimension_numbers = #tpu.dot_dimension_numbers<[1], [0], [0], [1], [0, 0, 1, 1], [], []>} : vector<8x16xbf16>, vector<16x120xbf16>, vector<8x120xf32> -> vector<8x120xf32>
    %69 = vector.extract_strided_slice %20 {offsets = [96, 0], sizes = [8, 16], strides = [1, 1]} : vector<200x16xf32> to vector<8x16xf32>
    %70 = arith.truncf %69 : vector<8x16xf32> to vector<8x16xbf16>
    %c192 = arith.constant 192 : index
    %c0_41 = arith.constant 0 : index
    %71 = vector.load %arg4[%c192, %c0_41] : memref<400x120xbf16, #tpu.memory_space<vmem>>, vector<16x120xbf16>
    %cst_42 = arith.constant dense<0.000000e+00> : vector<8x120xf32>
    %72 = tpu.matmul %70, %71, %cst_42 {dimension_numbers = #tpu.dot_dimension_numbers<[1], [0], [0], [1], [0, 0, 1, 1], [], []>} : vector<8x16xbf16>, vector<16x120xbf16>, vector<8x120xf32> -> vector<8x120xf32>
    %73 = vector.extract_strided_slice %20 {offsets = [104, 0], sizes = [8, 16], strides = [1, 1]} : vector<200x16xf32> to vector<8x16xf32>
    %74 = arith.truncf %73 : vector<8x16xf32> to vector<8x16xbf16>
    %c208 = arith.constant 208 : index
    %c0_43 = arith.constant 0 : index
    %75 = vector.load %arg4[%c208, %c0_43] : memref<400x120xbf16, #tpu.memory_space<vmem>>, vector<16x120xbf16>
    %cst_44 = arith.constant dense<0.000000e+00> : vector<8x120xf32>
    %76 = tpu.matmul %74, %75, %cst_44 {dimension_numbers = #tpu.dot_dimension_numbers<[1], [0], [0], [1], [0, 0, 1, 1], [], []>} : vector<8x16xbf16>, vector<16x120xbf16>, vector<8x120xf32> -> vector<8x120xf32>
    %77 = vector.extract_strided_slice %20 {offsets = [112, 0], sizes = [8, 16], strides = [1, 1]} : vector<200x16xf32> to vector<8x16xf32>
    %78 = arith.truncf %77 : vector<8x16xf32> to vector<8x16xbf16>
    %c224 = arith.constant 224 : index
    %c0_45 = arith.constant 0 : index
    %79 = vector.load %arg4[%c224, %c0_45] : memref<400x120xbf16, #tpu.memory_space<vmem>>, vector<16x120xbf16>
    %cst_46 = arith.constant dense<0.000000e+00> : vector<8x120xf32>
    %80 = tpu.matmul %78, %79, %cst_46 {dimension_numbers = #tpu.dot_dimension_numbers<[1], [0], [0], [1], [0, 0, 1, 1], [], []>} : vector<8x16xbf16>, vector<16x120xbf16>, vector<8x120xf32> -> vector<8x120xf32>
    %81 = vector.extract_strided_slice %20 {offsets = [120, 0], sizes = [8, 16], strides = [1, 1]} : vector<200x16xf32> to vector<8x16xf32>
    %82 = arith.truncf %81 : vector<8x16xf32> to vector<8x16xbf16>
    %c240 = arith.constant 240 : index
    %c0_47 = arith.constant 0 : index
    %83 = vector.load %arg4[%c240, %c0_47] : memref<400x120xbf16, #tpu.memory_space<vmem>>, vector<16x120xbf16>
    %cst_48 = arith.constant dense<0.000000e+00> : vector<8x120xf32>
    %84 = tpu.matmul %82, %83, %cst_48 {dimension_numbers = #tpu.dot_dimension_numbers<[1], [0], [0], [1], [0, 0, 1, 1], [], []>} : vector<8x16xbf16>, vector<16x120xbf16>, vector<8x120xf32> -> vector<8x120xf32>
    %85 = vector.extract_strided_slice %20 {offsets = [128, 0], sizes = [8, 16], strides = [1, 1]} : vector<200x16xf32> to vector<8x16xf32>
    %86 = arith.truncf %85 : vector<8x16xf32> to vector<8x16xbf16>
    %c256 = arith.constant 256 : index
    %c0_49 = arith.constant 0 : index
    %87 = vector.load %arg4[%c256, %c0_49] : memref<400x120xbf16, #tpu.memory_space<vmem>>, vector<16x120xbf16>
    %cst_50 = arith.constant dense<0.000000e+00> : vector<8x120xf32>
    %88 = tpu.matmul %86, %87, %cst_50 {dimension_numbers = #tpu.dot_dimension_numbers<[1], [0], [0], [1], [0, 0, 1, 1], [], []>} : vector<8x16xbf16>, vector<16x120xbf16>, vector<8x120xf32> -> vector<8x120xf32>
    %89 = vector.extract_strided_slice %20 {offsets = [136, 0], sizes = [8, 16], strides = [1, 1]} : vector<200x16xf32> to vector<8x16xf32>
    %90 = arith.truncf %89 : vector<8x16xf32> to vector<8x16xbf16>
    %c272 = arith.constant 272 : index
    %c0_51 = arith.constant 0 : index
    %91 = vector.load %arg4[%c272, %c0_51] : memref<400x120xbf16, #tpu.memory_space<vmem>>, vector<16x120xbf16>
    %cst_52 = arith.constant dense<0.000000e+00> : vector<8x120xf32>
    %92 = tpu.matmul %90, %91, %cst_52 {dimension_numbers = #tpu.dot_dimension_numbers<[1], [0], [0], [1], [0, 0, 1, 1], [], []>} : vector<8x16xbf16>, vector<16x120xbf16>, vector<8x120xf32> -> vector<8x120xf32>
    %93 = vector.extract_strided_slice %20 {offsets = [144, 0], sizes = [8, 16], strides = [1, 1]} : vector<200x16xf32> to vector<8x16xf32>
    %94 = arith.truncf %93 : vector<8x16xf32> to vector<8x16xbf16>
    %c288 = arith.constant 288 : index
    %c0_53 = arith.constant 0 : index
    %95 = vector.load %arg4[%c288, %c0_53] : memref<400x120xbf16, #tpu.memory_space<vmem>>, vector<16x120xbf16>
    %cst_54 = arith.constant dense<0.000000e+00> : vector<8x120xf32>
    %96 = tpu.matmul %94, %95, %cst_54 {dimension_numbers = #tpu.dot_dimension_numbers<[1], [0], [0], [1], [0, 0, 1, 1], [], []>} : vector<8x16xbf16>, vector<16x120xbf16>, vector<8x120xf32> -> vector<8x120xf32>
    %97 = vector.extract_strided_slice %20 {offsets = [152, 0], sizes = [8, 16], strides = [1, 1]} : vector<200x16xf32> to vector<8x16xf32>
    %98 = arith.truncf %97 : vector<8x16xf32> to vector<8x16xbf16>
    %c304 = arith.constant 304 : index
    %c0_55 = arith.constant 0 : index
    %99 = vector.load %arg4[%c304, %c0_55] : memref<400x120xbf16, #tpu.memory_space<vmem>>, vector<16x120xbf16>
    %cst_56 = arith.constant dense<0.000000e+00> : vector<8x120xf32>
    %100 = tpu.matmul %98, %99, %cst_56 {dimension_numbers = #tpu.dot_dimension_numbers<[1], [0], [0], [1], [0, 0, 1, 1], [], []>} : vector<8x16xbf16>, vector<16x120xbf16>, vector<8x120xf32> -> vector<8x120xf32>
    %101 = vector.extract_strided_slice %20 {offsets = [160, 0], sizes = [8, 16], strides = [1, 1]} : vector<200x16xf32> to vector<8x16xf32>
    %102 = arith.truncf %101 : vector<8x16xf32> to vector<8x16xbf16>
    %c320 = arith.constant 320 : index
    %c0_57 = arith.constant 0 : index
    %103 = vector.load %arg4[%c320, %c0_57] : memref<400x120xbf16, #tpu.memory_space<vmem>>, vector<16x120xbf16>
    %cst_58 = arith.constant dense<0.000000e+00> : vector<8x120xf32>
    %104 = tpu.matmul %102, %103, %cst_58 {dimension_numbers = #tpu.dot_dimension_numbers<[1], [0], [0], [1], [0, 0, 1, 1], [], []>} : vector<8x16xbf16>, vector<16x120xbf16>, vector<8x120xf32> -> vector<8x120xf32>
    %105 = vector.extract_strided_slice %20 {offsets = [168, 0], sizes = [8, 16], strides = [1, 1]} : vector<200x16xf32> to vector<8x16xf32>
    %106 = arith.truncf %105 : vector<8x16xf32> to vector<8x16xbf16>
    %c336 = arith.constant 336 : index
    %c0_59 = arith.constant 0 : index
    %107 = vector.load %arg4[%c336, %c0_59] : memref<400x120xbf16, #tpu.memory_space<vmem>>, vector<16x120xbf16>
    %cst_60 = arith.constant dense<0.000000e+00> : vector<8x120xf32>
    %108 = tpu.matmul %106, %107, %cst_60 {dimension_numbers = #tpu.dot_dimension_numbers<[1], [0], [0], [1], [0, 0, 1, 1], [], []>} : vector<8x16xbf16>, vector<16x120xbf16>, vector<8x120xf32> -> vector<8x120xf32>
    %109 = vector.extract_strided_slice %20 {offsets = [176, 0], sizes = [8, 16], strides = [1, 1]} : vector<200x16xf32> to vector<8x16xf32>
    %110 = arith.truncf %109 : vector<8x16xf32> to vector<8x16xbf16>
    %c352 = arith.constant 352 : index
    %c0_61 = arith.constant 0 : index
    %111 = vector.load %arg4[%c352, %c0_61] : memref<400x120xbf16, #tpu.memory_space<vmem>>, vector<16x120xbf16>
    %cst_62 = arith.constant dense<0.000000e+00> : vector<8x120xf32>
    %112 = tpu.matmul %110, %111, %cst_62 {dimension_numbers = #tpu.dot_dimension_numbers<[1], [0], [0], [1], [0, 0, 1, 1], [], []>} : vector<8x16xbf16>, vector<16x120xbf16>, vector<8x120xf32> -> vector<8x120xf32>
    %113 = vector.extract_strided_slice %20 {offsets = [184, 0], sizes = [8, 16], strides = [1, 1]} : vector<200x16xf32> to vector<8x16xf32>
    %114 = arith.truncf %113 : vector<8x16xf32> to vector<8x16xbf16>
    %c368 = arith.constant 368 : index
    %c0_63 = arith.constant 0 : index
    %115 = vector.load %arg4[%c368, %c0_63] : memref<400x120xbf16, #tpu.memory_space<vmem>>, vector<16x120xbf16>
    %cst_64 = arith.constant dense<0.000000e+00> : vector<8x120xf32>
    %116 = tpu.matmul %114, %115, %cst_64 {dimension_numbers = #tpu.dot_dimension_numbers<[1], [0], [0], [1], [0, 0, 1, 1], [], []>} : vector<8x16xbf16>, vector<16x120xbf16>, vector<8x120xf32> -> vector<8x120xf32>
    %117 = vector.extract_strided_slice %20 {offsets = [192, 0], sizes = [8, 16], strides = [1, 1]} : vector<200x16xf32> to vector<8x16xf32>
    %118 = arith.truncf %117 : vector<8x16xf32> to vector<8x16xbf16>
    %c384 = arith.constant 384 : index
    %c0_65 = arith.constant 0 : index
    %119 = vector.load %arg4[%c384, %c0_65] : memref<400x120xbf16, #tpu.memory_space<vmem>>, vector<16x120xbf16>
    %cst_66 = arith.constant dense<0.000000e+00> : vector<8x120xf32>
    %120 = tpu.matmul %118, %119, %cst_66 {dimension_numbers = #tpu.dot_dimension_numbers<[1], [0], [0], [1], [0, 0, 1, 1], [], []>} : vector<8x16xbf16>, vector<16x120xbf16>, vector<8x120xf32> -> vector<8x120xf32>
    %121 = arith.addf %24, %28 : vector<8x120xf32>
    %122 = arith.addf %32, %36 : vector<8x120xf32>
    %123 = arith.addf %40, %44 : vector<8x120xf32>
    %124 = arith.addf %48, %52 : vector<8x120xf32>
    %125 = arith.addf %56, %60 : vector<8x120xf32>
    %126 = arith.addf %64, %68 : vector<8x120xf32>
    %127 = arith.addf %72, %76 : vector<8x120xf32>
    %128 = arith.addf %80, %84 : vector<8x120xf32>
    %129 = arith.addf %88, %92 : vector<8x120xf32>
    %130 = arith.addf %96, %100 : vector<8x120xf32>
    %131 = arith.addf %104, %108 : vector<8x120xf32>
    %132 = arith.addf %112, %116 : vector<8x120xf32>
    %133 = arith.addf %121, %122 : vector<8x120xf32>
    %134 = arith.addf %123, %124 : vector<8x120xf32>
    %135 = arith.addf %125, %126 : vector<8x120xf32>
    %136 = arith.addf %127, %128 : vector<8x120xf32>
    %137 = arith.addf %129, %130 : vector<8x120xf32>
    %138 = arith.addf %131, %132 : vector<8x120xf32>
    %139 = arith.addf %133, %134 : vector<8x120xf32>
    %140 = arith.addf %135, %136 : vector<8x120xf32>
    %141 = arith.addf %137, %138 : vector<8x120xf32>
    %142 = arith.addf %139, %140 : vector<8x120xf32>
    %143 = arith.addf %141, %120 : vector<8x120xf32>
    %144 = arith.addf %142, %143 : vector<8x120xf32>
    %c0_67 = arith.constant 0 : index
    %c0_68 = arith.constant 0 : index
    %145 = vector.load %arg5[%c0_67, %c0_68] : memref<1x120xf32, #tpu.memory_space<vmem>>, vector<1x120xf32>
    %146 = vector.broadcast %145 : vector<1x120xf32> to vector<8x120xf32>
    %147 = arith.addf %144, %146 : vector<8x120xf32>
    %cst_69 = arith.constant 0.000000e+00 : f32
    %148 = vector.broadcast %cst_69 : f32 to vector<8x120xf32>
    %149 = arith.maximumf %147, %148 : vector<8x120xf32>
    %150 = arith.truncf %149 : vector<8x120xf32> to vector<8x120xbf16>
    %c0_70 = arith.constant 0 : index
    %c0_71 = arith.constant 0 : index
    %151 = vector.load %arg6[%c0_70, %c0_71] : memref<120x84xbf16, #tpu.memory_space<vmem>>, vector<120x84xbf16>
    %cst_72 = arith.constant dense<0.000000e+00> : vector<8x84xf32>
    %152 = tpu.matmul %150, %151, %cst_72 {dimension_numbers = #tpu.dot_dimension_numbers<[1], [0], [0], [1], [0, 0, 1, 1], [], []>} : vector<8x120xbf16>, vector<120x84xbf16>, vector<8x84xf32> -> vector<8x84xf32>
    %c0_73 = arith.constant 0 : index
    %c0_74 = arith.constant 0 : index
    %153 = vector.load %arg7[%c0_73, %c0_74] : memref<1x84xf32, #tpu.memory_space<vmem>>, vector<1x84xf32>
    %154 = vector.broadcast %153 : vector<1x84xf32> to vector<8x84xf32>
    %155 = arith.addf %152, %154 : vector<8x84xf32>
    %cst_75 = arith.constant 0.000000e+00 : f32
    %156 = vector.broadcast %cst_75 : f32 to vector<8x84xf32>
    %157 = arith.maximumf %155, %156 : vector<8x84xf32>
    %158 = arith.truncf %157 : vector<8x84xf32> to vector<8x84xbf16>
    %c0_76 = arith.constant 0 : index
    %c0_77 = arith.constant 0 : index
    %159 = vector.load %arg8[%c0_76, %c0_77] : memref<84x128xbf16, #tpu.memory_space<vmem>>, vector<84x128xbf16>
    %cst_78 = arith.constant dense<0.000000e+00> : vector<8x128xf32>
    %160 = tpu.matmul %158, %159, %cst_78 {dimension_numbers = #tpu.dot_dimension_numbers<[1], [0], [0], [1], [0, 0, 1, 1], [], []>} : vector<8x84xbf16>, vector<84x128xbf16>, vector<8x128xf32> -> vector<8x128xf32>
    %c0_79 = arith.constant 0 : index
    %c0_80 = arith.constant 0 : index
    %161 = vector.load %arg9[%c0_79, %c0_80] : memref<1x128xf32, #tpu.memory_space<vmem>>, vector<1x128xf32>
    %162 = vector.broadcast %161 : vector<1x128xf32> to vector<8x128xf32>
    %163 = arith.addf %160, %162 : vector<8x128xf32>
    %c0_81 = arith.constant 0 : index
    %c0_82 = arith.constant 0 : index
    %164 = vector.load %arg10[%c0_81, %c0_82] : memref<8x128xf32, #tpu.memory_space<vmem>>, vector<8x128xf32>
    tpu.vector_store %arg10[%c0_81, %c0_82], %163 {strides = array<i32>} : memref<8x128xf32, #tpu.memory_space<vmem>>, vector<8x128xf32>,
    return
  }
  func.func @transform_0(%arg0: i32) -> (i32, i32, i32) {
    %c0_i32 = arith.constant 0 : i32
    %c0_i32_0 = arith.constant 0 : i32
    %c0_i32_1 = arith.constant 0 : i32
    return %c0_i32, %arg0, %c0_i32_0 : i32, i32, i32
  }
  func.func @transform_1(%arg0: i32) -> (i32, i32) {
    %c0_i32 = arith.constant 0 : i32
    %c0_i32_0 = arith.constant 0 : i32
    %c0_i32_1 = arith.constant 0 : i32
    return %c0_i32, %c0_i32_0 : i32, i32
  }
  func.func @transform_2(%arg0: i32) -> (i32, i32) {
    %c0_i32 = arith.constant 0 : i32
    %c0_i32_0 = arith.constant 0 : i32
    %c0_i32_1 = arith.constant 0 : i32
    return %c0_i32, %c0_i32_0 : i32, i32
  }
  func.func @transform_3(%arg0: i32) -> (i32, i32) {
    %c0_i32 = arith.constant 0 : i32
    %c0_i32_0 = arith.constant 0 : i32
    %c0_i32_1 = arith.constant 0 : i32
    return %c0_i32, %c0_i32_0 : i32, i32
  }
  func.func @transform_4(%arg0: i32) -> (i32, i32) {
    %c0_i32 = arith.constant 0 : i32
    %c0_i32_0 = arith.constant 0 : i32
    %c0_i32_1 = arith.constant 0 : i32
    return %c0_i32, %c0_i32_0 : i32, i32
  }
  func.func @transform_5(%arg0: i32) -> (i32, i32) {
    %c0_i32 = arith.constant 0 : i32
    %c0_i32_0 = arith.constant 0 : i32
    %c0_i32_1 = arith.constant 0 : i32
    return %c0_i32, %c0_i32_0 : i32, i32
  }
  func.func @transform_6(%arg0: i32) -> (i32, i32) {
    %c0_i32 = arith.constant 0 : i32
    %c0_i32_0 = arith.constant 0 : i32
    %c0_i32_1 = arith.constant 0 : i32
    return %c0_i32, %c0_i32_0 : i32, i32
  }
  func.func @transform_7(%arg0: i32) -> (i32, i32) {
    %c0_i32 = arith.constant 0 : i32
    %c0_i32_0 = arith.constant 0 : i32
    %c0_i32_1 = arith.constant 0 : i32
    return %c0_i32, %c0_i32_0 : i32, i32
  }
  func.func @transform_8(%arg0: i32) -> (i32, i32) {
    %c0_i32 = arith.constant 0 : i32
    %c0_i32_0 = arith.constant 0 : i32
    %c0_i32_1 = arith.constant 0 : i32
    return %c0_i32, %c0_i32_0 : i32, i32
  }
  func.func @transform_9(%arg0: i32) -> (i32, i32) {
    %c0_i32 = arith.constant 0 : i32
    %c0_i32_0 = arith.constant 0 : i32
    return %arg0, %c0_i32 : i32, i32
  }
}

</mosaic_0001>

<llo_original>
// kernel: lenet_forward.2
$region0: #{lenet_forward.2}
  #allocation0 [shape = 'u32[]', space=smem, size = 0x4, offset = 0x4, fixed_abs, tag = 'smem constant byte address 0x4 - core index']
  #allocation1 [shape = 'u32[144,128]{1,0:T(1,128)}', space=vmem, size = 0x12000, scoped, tag = 'internal scratch']
  %s0 = inlined_call_operand.vmem [shape: bf16[4,75,512], index: 0, kind: input, shape index: {}]
  %s1 = inlined_call_operand.vmem [shape: bf16[8,75], index: 1, kind: input, shape index: {}]
  %s2 = inlined_call_operand.vmem [shape: f32[8,1], index: 2, kind: input, shape index: {}]
  %s3 = inlined_call_operand.vmem [shape: f32[8,512], index: 3, kind: output, shape index: {}]
  %s4 = sld [smem:[#allocation0]]
  $region22: #{lenet_forward.2} parent=0
    _
  %s6 = ssub.s32 1, %s4
  %s7 = scalar_select 0, %s6, %s4
  // Predicated region
  $region2: #{lenet_forward.2} parent=0 // pred_check
    _
  $region3: #{lenet_forward.2} parent=0 // pred_check_branch
    %9 = sbr.rel (0) target = $region5
  $region4: #{lenet_forward.2} parent=0 // pred_region
    _
  $region5: #{lenet_forward.2} parent=0 // pred_fallthru
    _
  // Predicated region
  $region6: #{lenet_forward.2} parent=0 // pred_check
    _
  $region7: #{lenet_forward.2} parent=0 // pred_check_branch
    %11 = sbr.rel (0) target = $region9
  $region8: #{lenet_forward.2} parent=0 // pred_region
    _
  $region9: #{lenet_forward.2} parent=0 // pred_fallthru
    _
  // Predicated region
  $region10: #{lenet_forward.2} parent=0 // pred_check
    _
  $region11: #{lenet_forward.2} parent=0 // pred_check_branch
    %13 = sbr.rel (0) target = $region13
  $region12: #{lenet_forward.2} parent=0 // pred_region
    _
  $region13: #{lenet_forward.2} parent=0 // pred_fallthru
    _
  %v15 = vld [vmem:[%s1] sm:$0xf]
  %v16 = vld [vmem:[%s0] sm:$0xff]
  %v17 = vld [vmem:[%s0 + $0x8] sm:$0xff]
  %v18 = vld [vmem:[%s0 + $0x10] sm:$0xff]
  %v19 = vld [vmem:[%s0 + $0x18] sm:$0xff]
  %v20 = vld [vmem:[%s0 + $0x20] sm:$0xff]
  %v21 = vld [vmem:[%s0 + $0x28] sm:$0xff]
  %v22 = vld [vmem:[%s0 + $0x30] sm:$0xff]
  %v23 = vld [vmem:[%s0 + $0x38] sm:$0xff]
  %v24 = vld [vmem:[%s0 + $0x40] sm:$0xff]
  %v25 = vld [vmem:[%s0 + $0x48] sm:$0xff]
  %v26 = vld [vmem:[%s0 + $0x50] sm:$0xff]
  %v27 = vld [vmem:[%s0 + $0x58] sm:$0xff]
  %v28 = vld [vmem:[%s0 + $0x60] sm:$0xff]
  %v29 = vld [vmem:[%s0 + $0x68] sm:$0xff]
  %v30 = vld [vmem:[%s0 + $0x70] sm:$0xff]
  %v31 = vld [vmem:[%s0 + $0x78] sm:$0xff]
  %v32 = vld [vmem:[%s0 + $0x80] sm:$0xff]
  %v33 = vld [vmem:[%s0 + $0x88] sm:$0xff]
  %v34 = vld [vmem:[%s0 + $0x90] sm:$0x33]
  %v35 = vld [vmem:[%s0 + $0x98] sm:$0x33]
  %v56 = vunpack.c.l.b16 %v16
  %v57 = vunpack.c.h.b16 %v16
  %v58 = vunpack.c.l.b16 %v17
  %v59 = vunpack.c.h.b16 %v17
  %v60 = vunpack.c.l.b16 %v18
  %v61 = vunpack.c.h.b16 %v18
  %v62 = vunpack.c.l.b16 %v19
  %v63 = vunpack.c.h.b16 %v19
  %v64 = vunpack.c.l.b16 %v20
  %v65 = vunpack.c.h.b16 %v20
  %v66 = vunpack.c.l.b16 %v21
  %v67 = vunpack.c.h.b16 %v21
  %v68 = vunpack.c.l.b16 %v22
  %v69 = vunpack.c.h.b16 %v22
  %v70 = vunpack.c.l.b16 %v23
  %v71 = vunpack.c.h.b16 %v23
  %v72 = vunpack.c.l.b16 %v24
  %v73 = vunpack.c.h.b16 %v24
  %v74 = vunpack.c.l.b16 %v25
  %v75 = vunpack.c.h.b16 %v25
  %v76 = vunpack.c.l.b16 %v26
  %v77 = vunpack.c.h.b16 %v26
  %v78 = vunpack.c.l.b16 %v27
  %v79 = vunpack.c.h.b16 %v27
  %v80 = vunpack.c.l.b16 %v28
  %v81 = vunpack.c.h.b16 %v28
  %v82 = vunpack.c.l.b16 %v29
  %v83 = vunpack.c.h.b16 %v29
  %v84 = vunpack.c.l.b16 %v30
  %v85 = vunpack.c.h.b16 %v30
  %v86 = vunpack.c.l.b16 %v31
  %v87 = vunpack.c.h.b16 %v31
  %v88 = vunpack.c.l.b16 %v32
  %v89 = vunpack.c.h.b16 %v32
  %v90 = vunpack.c.l.b16 %v33
  %v91 = vunpack.c.h.b16 %v33
  %v92 = vunpack.c.l.b16 %v34
  %v93 = vunpack.c.h.b16 %v34
  %v94 = vunpack.c.l.b16 %v35
  %v95 = vunpack.c.h.b16 %v35
  %v96 = vpack.c.b16 %v60, %v56
  %v97 = vpack.c.b16 %v61, %v57
  %v98 = vpack.c.b16 %v62, %v58
  %v99 = vpack.c.b16 %v63, %v59
  %v100 = vpack.c.b16 %v68, %v64
  %v101 = vpack.c.b16 %v69, %v65
  %v102 = vpack.c.b16 %v70, %v66
  %v103 = vpack.c.b16 %v71, %v67
  %v104 = vpack.c.b16 %v76, %v72
  %v105 = vpack.c.b16 %v77, %v73
  %v106 = vpack.c.b16 %v78, %v74
  %v107 = vpack.c.b16 %v79, %v75
  %v108 = vpack.c.b16 %v84, %v80
  %v109 = vpack.c.b16 %v85, %v81
  %v110 = vpack.c.b16 %v86, %v82
  %v111 = vpack.c.b16 %v87, %v83
  %v112 = vpack.c.b16 %v92, %v88
  %v113 = vpack.c.b16 %v93, %v89
  %v114 = vpack.c.b16 %v94, %v90
  %v115 = vpack.c.b16 %v95, %v91
  %vm132 = vcmask 613376
  %v134 = vsel %vm132, %v15, 0
  %vm136 = vcmask 1044480
  %vm137 = vcmask 1045504
  %v138 = vsel %vm136, 4294967295, 65535
  %v139 = vsel %vm137, %v138, 0
  %v141 = vand.u32 %v112, %v139
  %v144 = vand.u32 %v113, %v139
  %v147 = vand.u32 %v114, %v139
  %v150 = vand.u32 %v115, %v139
  %152 = vmatprep.subr.bf16.mxu0 %v97
  %153 = vmatpush1.bf16.msra.mxu0 %v96
  %154 = vmatprep.subr.bf16.mxu0 %v101
  %155 = vmatpush1.bf16.msra.mxu0 %v100
  %156 = vmatprep.subr.bf16.mxu0 %v105
  %157 = vmatpush1.bf16.msra.mxu0 %v104
  %158 = vmatprep.subr.bf16.mxu0 %v109
  %159 = vmatpush1.bf16.msra.mxu0 %v108
  %160 = vmatprep.subr.bf16.mxu0 %v144
  %161 = vmatpush1.bf16.msra.mxu0 %v141
  %162 = vmatprep.subr.bf16.mxu0 0
  %163 = vmatpush1.bf16.msra.mxu0 0
  %164 = vmatprep.subr.bf16.mxu0 0
  %165 = vmatpush1.bf16.msra.mxu0 0
  %166 = vmatprep.subr.bf16.mxu0 0
  %167 = vmatpush1.bf16.msra.mxu0 0
  %168 = vmatprep.subr.bf16.mxu0 0
  %169 = vmatpush1.bf16.msra.mxu0 0
  %170 = vmatprep.subr.bf16.mxu0 0
  %171 = vmatpush1.bf16.msra.mxu0 0
  %172 = vmatprep.subr.bf16.mxu0 0
  %173 = vmatpush1.bf16.msra.mxu0 0
  %174 = vmatprep.subr.bf16.mxu0 0
  %175 = vmatpush1.bf16.msra.mxu0 0
  %176 = vmatprep.subr.bf16.mxu0 0
  %177 = vmatpush1.bf16.msra.mxu0 0
  %178 = vmatprep.subr.bf16.mxu0 0
  %179 = vmatpush1.bf16.msra.mxu0 0
  %180 = vmatprep.subr.bf16.mxu0 0
  %181 = vmatpush1.bf16.msra.mxu0 0
  %182 = vmatprep.subr.bf16.mxu0 0
  %183 = vmatpush1.bf16.msra.mxu0 0
  %184 = vmatprep.mubr.bf16.mxu0 0
  %185 = vmatmul.mubr.bf16.gmra.mrb[0].mxu0 %v134
  %v186 = vpop.f32.mrb[0].mxu0
  %v187 = vadd.f32 0.0, %v186
  %v188 = vpop.f32.mrb[0].mxu0
  %v189 = vadd.f32 0.0, %v188
  %v190 = vpop.f32.mrb[0].mxu0
  %v191 = vpop.f32.mrb[0].mxu0
  %192 = vdwg.mxu0
  %193 = vmatprep.subr.bf16.mxu0 %v99
  %194 = vmatpush1.bf16.msra.mxu0 %v98
  %195 = vmatprep.subr.bf16.mxu0 %v103
  %196 = vmatpush1.bf16.msra.mxu0 %v102
  %197 = vmatprep.subr.bf16.mxu0 %v107
  %198 = vmatpush1.bf16.msra.mxu0 %v106
  %199 = vmatprep.subr.bf16.mxu0 %v111
  %200 = vmatpush1.bf16.msra.mxu0 %v110
  %201 = vmatprep.subr.bf16.mxu0 %v150
  %202 = vmatpush1.bf16.msra.mxu0 %v147
  %203 = vmatprep.subr.bf16.mxu0 0
  %204 = vmatpush1.bf16.msra.mxu0 0
  %205 = vmatprep.subr.bf16.mxu0 0
  %206 = vmatpush1.bf16.msra.mxu0 0
  %207 = vmatprep.subr.bf16.mxu0 0
  %208 = vmatpush1.bf16.msra.mxu0 0
  %209 = vmatprep.subr.bf16.mxu0 0
  %210 = vmatpush1.bf16.msra.mxu0 0
  %211 = vmatprep.subr.bf16.mxu0 0
  %212 = vmatpush1.bf16.msra.mxu0 0
  %213 = vmatprep.subr.bf16.mxu0 0
  %214 = vmatpush1.bf16.msra.mxu0 0
  %215 = vmatprep.subr.bf16.mxu0 0
  %216 = vmatpush1.bf16.msra.mxu0 0
  %217 = vmatprep.subr.bf16.mxu0 0
  %218 = vmatpush1.bf16.msra.mxu0 0
  %219 = vmatprep.subr.bf16.mxu0 0
  %220 = vmatpush1.bf16.msra.mxu0 0
  %221 = vmatprep.subr.bf16.mxu0 0
  %222 = vmatpush1.bf16.msra.mxu0 0
  %223 = vmatprep.subr.bf16.mxu0 0
  %224 = vmatpush1.bf16.msra.mxu0 0
  %225 = vmatprep.mubr.bf16.mxu0 0
  %226 = vmatmul.mubr.bf16.gmra.mrb[0].mxu0 %v134
  %v227 = vpop.f32.mrb[0].mxu0
  %v228 = vadd.f32 0.0, %v227
  %v229 = vpop.f32.mrb[0].mxu0
  %v230 = vadd.f32 0.0, %v229
  %v231 = vpop.f32.mrb[0].mxu0
  %v232 = vpop.f32.mrb[0].mxu0
  %233 = vdwg.mxu0
  %s234 = scalar_lea.vmem %s0, 160
  %v235 = vld [vmem:[%s234] sm:$0xff]
  %v236 = vld [vmem:[%s234 + $0x8] sm:$0xff]
  %v237 = vld [vmem:[%s234 + $0x10] sm:$0xff]
  %v238 = vld [vmem:[%s234 + $0x18] sm:$0xff]
  %v239 = vld [vmem:[%s234 + $0x20] sm:$0xff]
  %v240 = vld [vmem:[%s234 + $0x28] sm:$0xff]
  %v241 = vld [vmem:[%s234 + $0x30] sm:$0xff]
  %v242 = vld [vmem:[%s234 + $0x38] sm:$0xff]
  %v243 = vld [vmem:[%s234 + $0x40] sm:$0xff]
  %v244 = vld [vmem:[%s234 + $0x48] sm:$0xff]
  %v245 = vld [vmem:[%s234 + $0x50] sm:$0xff]
  %v246 = vld [vmem:[%s234 + $0x58] sm:$0xff]
  %v247 = vld [vmem:[%s234 + $0x60] sm:$0xff]
  %v248 = vld [vmem:[%s234 + $0x68] sm:$0xff]
  %v249 = vld [vmem:[%s234 + $0x70] sm:$0xff]
  %v250 = vld [vmem:[%s234 + $0x78] sm:$0xff]
  %v251 = vld [vmem:[%s234 + $0x80] sm:$0xff]
  %v252 = vld [vmem:[%s234 + $0x88] sm:$0xff]
  %v253 = vld [vmem:[%s234 + $0x90] sm:$0x33]
  %v254 = vld [vmem:[%s234 + $0x98] sm:$0x33]
  %v275 = vunpack.c.l.b16 %v235
  %v276 = vunpack.c.h.b16 %v235
  %v277 = vunpack.c.l.b16 %v236
  %v278 = vunpack.c.h.b16 %v236
  %v279 = vunpack.c.l.b16 %v237
  %v280 = vunpack.c.h.b16 %v237
  %v281 = vunpack.c.l.b16 %v238
  %v282 = vunpack.c.h.b16 %v238
  %v283 = vunpack.c.l.b16 %v239
  %v284 = vunpack.c.h.b16 %v239
  %v285 = vunpack.c.l.b16 %v240
  %v286 = vunpack.c.h.b16 %v240
  %v287 = vunpack.c.l.b16 %v241
  %v288 = vunpack.c.h.b16 %v241
  %v289 = vunpack.c.l.b16 %v242
  %v290 = vunpack.c.h.b16 %v242
  %v291 = vunpack.c.l.b16 %v243
  %v292 = vunpack.c.h.b16 %v243
  %v293 = vunpack.c.l.b16 %v244
  %v294 = vunpack.c.h.b16 %v244
  %v295 = vunpack.c.l.b16 %v245
  %v296 = vunpack.c.h.b16 %v245
  %v297 = vunpack.c.l.b16 %v246
  %v298 = vunpack.c.h.b16 %v246
  %v299 = vunpack.c.l.b16 %v247
  %v300 = vunpack.c.h.b16 %v247
  %v301 = vunpack.c.l.b16 %v248
  %v302 = vunpack.c.h.b16 %v248
  %v303 = vunpack.c.l.b16 %v249
  %v304 = vunpack.c.h.b16 %v249
  %v305 = vunpack.c.l.b16 %v250
  %v306 = vunpack.c.h.b16 %v250
  %v307 = vunpack.c.l.b16 %v251
  %v308 = vunpack.c.h.b16 %v251
  %v309 = vunpack.c.l.b16 %v252
  %v310 = vunpack.c.h.b16 %v252
  %v311 = vunpack.c.l.b16 %v253
  %v312 = vunpack.c.h.b16 %v253
  %v313 = vunpack.c.l.b16 %v254
  %v314 = vunpack.c.h.b16 %v254
  %v315 = vpack.c.b16 %v279, %v275
  %v316 = vpack.c.b16 %v280, %v276
  %v317 = vpack.c.b16 %v281, %v277
  %v318 = vpack.c.b16 %v282, %v278
  %v319 = vpack.c.b16 %v287, %v283
  %v320 = vpack.c.b16 %v288, %v284
  %v321 = vpack.c.b16 %v289, %v285
  %v322 = vpack.c.b16 %v290, %v286
  %v323 = vpack.c.b16 %v295, %v291
  %v324 = vpack.c.b16 %v296, %v292
  %v325 = vpack.c.b16 %v297, %v293
  %v326 = vpack.c.b16 %v298, %v294
  %v327 = vpack.c.b16 %v303, %v299
  %v328 = vpack.c.b16 %v304, %v300
  %v329 = vpack.c.b16 %v305, %v301
  %v330 = vpack.c.b16 %v306, %v302
  %v331 = vpack.c.b16 %v311, %v307
  %v332 = vpack.c.b16 %v312, %v308
  %v333 = vpack.c.b16 %v313, %v309
  %v334 = vpack.c.b16 %v314, %v310
  %v352 = vand.u32 %v331, %v139
  %v355 = vand.u32 %v332, %v139
  %v358 = vand.u32 %v333, %v139
  %v361 = vand.u32 %v334, %v139
  %363 = vmatprep.subr.bf16.mxu0 %v316
  %364 = vmatpush1.bf16.msra.mxu0 %v315
  %365 = vmatprep.subr.bf16.mxu0 %v320
  %366 = vmatpush1.bf16.msra.mxu0 %v319
  %367 = vmatprep.subr.bf16.mxu0 %v324
  %368 = vmatpush1.bf16.msra.mxu0 %v323
  %369 = vmatprep.subr.bf16.mxu0 %v328
  %370 = vmatpush1.bf16.msra.mxu0 %v327
  %371 = vmatprep.subr.bf16.mxu0 %v355
  %372 = vmatpush1.bf16.msra.mxu0 %v352
  %373 = vmatprep.subr.bf16.mxu0 0
  %374 = vmatpush1.bf16.msra.mxu0 0
  %375 = vmatprep.subr.bf16.mxu0 0
  %376 = vmatpush1.bf16.msra.mxu0 0
  %377 = vmatprep.subr.bf16.mxu0 0
  %378 = vmatpush1.bf16.msra.mxu0 0
  %379 = vmatprep.subr.bf16.mxu0 0
  %380 = vmatpush1.bf16.msra.mxu0 0
  %381 = vmatprep.subr.bf16.mxu0 0
  %382 = vmatpush1.bf16.msra.mxu0 0
  %383 = vmatprep.subr.bf16.mxu0 0
  %384 = vmatpush1.bf16.msra.mxu0 0
  %385 = vmatprep.subr.bf16.mxu0 0
  %386 = vmatpush1.bf16.msra.mxu0 0
  %387 = vmatprep.subr.bf16.mxu0 0
  %388 = vmatpush1.bf16.msra.mxu0 0
  %389 = vmatprep.subr.bf16.mxu0 0
  %390 = vmatpush1.bf16.msra.mxu0 0
  %391 = vmatprep.subr.bf16.mxu0 0
  %392 = vmatpush1.bf16.msra.mxu0 0
  %393 = vmatprep.subr.bf16.mxu0 0
  %394 = vmatpush1.bf16.msra.mxu0 0
  %395 = vmatprep.mubr.bf16.mxu0 0
  %396 = vmatmul.mubr.bf16.gmra.mrb[0].mxu0 %v134
  %v397 = vpop.f32.mrb[0].mxu0
  %v398 = vadd.f32 0.0, %v397
  %v399 = vpop.f32.mrb[0].mxu0
  %v400 = vadd.f32 0.0, %v399
  %v401 = vpop.f32.mrb[0].mxu0
  %v402 = vpop.f32.mrb[0].mxu0
  %403 = vdwg.mxu0
  %404 = vmatprep.subr.bf16.mxu0 %v318
  %405 = vmatpush1.bf16.msra.mxu0 %v317
  %406 = vmatprep.subr.bf16.mxu0 %v322
  %407 = vmatpush1.bf16.msra.mxu0 %v321
  %408 = vmatprep.subr.bf16.mxu0 %v326
  %409 = vmatpush1.bf16.msra.mxu0 %v325
  %410 = vmatprep.subr.bf16.mxu0 %v330
  %411 = vmatpush1.bf16.msra.mxu0 %v329
  %412 = vmatprep.subr.bf16.mxu0 %v361
  %413 = vmatpush1.bf16.msra.mxu0 %v358
  %414 = vmatprep.subr.bf16.mxu0 0
  %415 = vmatpush1.bf16.msra.mxu0 0
  %416 = vmatprep.subr.bf16.mxu0 0
  %417 = vmatpush1.bf16.msra.mxu0 0
  %418 = vmatprep.subr.bf16.mxu0 0
  %419 = vmatpush1.bf16.msra.mxu0 0
  %420 = vmatprep.subr.bf16.mxu0 0
  %421 = vmatpush1.bf16.msra.mxu0 0
  %422 = vmatprep.subr.bf16.mxu0 0
  %423 = vmatpush1.bf16.msra.mxu0 0
  %424 = vmatprep.subr.bf16.mxu0 0
  %425 = vmatpush1.bf16.msra.mxu0 0
  %426 = vmatprep.subr.bf16.mxu0 0
  %427 = vmatpush1.bf16.msra.mxu0 0
  %428 = vmatprep.subr.bf16.mxu0 0
  %429 = vmatpush1.bf16.msra.mxu0 0
  %430 = vmatprep.subr.bf16.mxu0 0
  %431 = vmatpush1.bf16.msra.mxu0 0
  %432 = vmatprep.subr.bf16.mxu0 0
  %433 = vmatpush1.bf16.msra.mxu0 0
  %434 = vmatprep.subr.bf16.mxu0 0
  %435 = vmatpush1.bf16.msra.mxu0 0
  %436 = vmatprep.mubr.bf16.mxu0 0
  %437 = vmatmul.mubr.bf16.gmra.mrb[0].mxu0 %v134
  %v438 = vpop.f32.mrb[0].mxu0
  %v439 = vadd.f32 0.0, %v438
  %v440 = vpop.f32.mrb[0].mxu0
  %v441 = vadd.f32 0.0, %v440
  %v442 = vpop.f32.mrb[0].mxu0
  %v443 = vpop.f32.mrb[0].mxu0
  %444 = vdwg.mxu0
  %v445 = vmax.f32 %v187, %v398
  %v446 = vmax.f32 %v189, %v400
  %v447 = vmax.f32 %v228, %v439
  %v448 = vmax.f32 %v230, %v441
  %s449 = scalar_lea.vmem %s0, 320
  %v450 = vld [vmem:[%s449] sm:$0xff]
  %v451 = vld [vmem:[%s449 + $0x8] sm:$0xff]
  %v452 = vld [vmem:[%s449 + $0x10] sm:$0xff]
  %v453 = vld [vmem:[%s449 + $0x18] sm:$0xff]
  %v454 = vld [vmem:[%s449 + $0x20] sm:$0xff]
  %v455 = vld [vmem:[%s449 + $0x28] sm:$0xff]
  %v456 = vld [vmem:[%s449 + $0x30] sm:$0xff]
  %v457 = vld [vmem:[%s449 + $0x38] sm:$0xff]
  %v458 = vld [vmem:[%s449 + $0x40] sm:$0xff]
  %v459 = vld [vmem:[%s449 + $0x48] sm:$0xff]
  %v460 = vld [vmem:[%s449 + $0x50] sm:$0xff]
  %v461 = vld [vmem:[%s449 + $0x58] sm:$0xff]
  %v462 = vld [vmem:[%s449 + $0x60] sm:$0xff]
  %v463 = vld [vmem:[%s449 + $0x68] sm:$0xff]
  %v464 = vld [vmem:[%s449 + $0x70] sm:$0xff]
  %v465 = vld [vmem:[%s449 + $0x78] sm:$0xff]
  %v466 = vld [vmem:[%s449 + $0x80] sm:$0xff]
  %v467 = vld [vmem:[%s449 + $0x88] sm:$0xff]
  %v468 = vld [vmem:[%s449 + $0x90] sm:$0x33]
  %v469 = vld [vmem:[%s449 + $0x98] sm:$0x33]
  %v490 = vunpack.c.l.b16 %v450
  %v491 = vunpack.c.h.b16 %v450
  %v492 = vunpack.c.l.b16 %v451
  %v493 = vunpack.c.h.b16 %v451
  %v494 = vunpack.c.l.b16 %v452
  %v495 = vunpack.c.h.b16 %v452
  %v496 = vunpack.c.l.b16 %v453
  %v497 = vunpack.c.h.b16 %v453
  %v498 = vunpack.c.l.b16 %v454
  %v499 = vunpack.c.h.b16 %v454
  %v500 = vunpack.c.l.b16 %v455
  %v501 = vunpack.c.h.b16 %v455
  %v502 = vunpack.c.l.b16 %v456
  %v503 = vunpack.c.h.b16 %v456
  %v504 = vunpack.c.l.b16 %v457
  %v505 = vunpack.c.h.b16 %v457
  %v506 = vunpack.c.l.b16 %v458
  %v507 = vunpack.c.h.b16 %v458
  %v508 = vunpack.c.l.b16 %v459
  %v509 = vunpack.c.h.b16 %v459
  %v510 = vunpack.c.l.b16 %v460
  %v511 = vunpack.c.h.b16 %v460
  %v512 = vunpack.c.l.b16 %v461
  %v513 = vunpack.c.h.b16 %v461
  %v514 = vunpack.c.l.b16 %v462
  %v515 = vunpack.c.h.b16 %v462
  %v516 = vunpack.c.l.b16 %v463
  %v517 = vunpack.c.h.b16 %v463
  %v518 = vunpack.c.l.b16 %v464
  %v519 = vunpack.c.h.b16 %v464
  %v520 = vunpack.c.l.b16 %v465
  %v521 = vunpack.c.h.b16 %v465
  %v522 = vunpack.c.l.b16 %v466
  %v523 = vunpack.c.h.b16 %v466
  %v524 = vunpack.c.l.b16 %v467
  %v525 = vunpack.c.h.b16 %v467
  %v526 = vunpack.c.l.b16 %v468
  %v527 = vunpack.c.h.b16 %v468
  %v528 = vunpack.c.l.b16 %v469
  %v529 = vunpack.c.h.b16 %v469
  %v530 = vpack.c.b16 %v494, %v490
  %v531 = vpack.c.b16 %v495, %v491
  %v532 = vpack.c.b16 %v496, %v492
  %v533 = vpack.c.b16 %v497, %v493
  %v534 = vpack.c.b16 %v502, %v498
  %v535 = vpack.c.b16 %v503, %v499
  %v536 = vpack.c.b16 %v504, %v500
  %v537 = vpack.c.b16 %v505, %v501
  %v538 = vpack.c.b16 %v510, %v506
  %v539 = vpack.c.b16 %v511, %v507
  %v540 = vpack.c.b16 %v512, %v508
  %v541 = vpack.c.b16 %v513, %v509
  %v542 = vpack.c.b16 %v518, %v514
  %v543 = vpack.c.b16 %v519, %v515
  %v544 = vpack.c.b16 %v520, %v516
  %v545 = vpack.c.b16 %v521, %v517
  %v546 = vpack.c.b16 %v526, %v522
  %v547 = vpack.c.b16 %v527, %v523
  %v548 = vpack.c.b16 %v528, %v524
  %v549 = vpack.c.b16 %v529, %v525
  %v567 = vand.u32 %v546, %v139
  %v570 = vand.u32 %v547, %v139
  %v573 = vand.u32 %v548, %v139
  %v576 = vand.u32 %v549, %v139
  %578 = vmatprep.subr.bf16.mxu0 %v531
  %579 = vmatpush1.bf16.msra.mxu0 %v530
  %580 = vmatprep.subr.bf16.mxu0 %v535
  %581 = vmatpush1.bf16.msra.mxu0 %v534
  %582 = vmatprep.subr.bf16.mxu0 %v539
  %583 = vmatpush1.bf16.msra.mxu0 %v538
  %584 = vmatprep.subr.bf16.mxu0 %v543
  %585 = vmatpush1.bf16.msra.mxu0 %v542
  %586 = vmatprep.subr.bf16.mxu0 %v570
  %587 = vmatpush1.bf16.msra.mxu0 %v567
  %588 = vmatprep.subr.bf16.mxu0 0
  %589 = vmatpush1.bf16.msra.mxu0 0
  %590 = vmatprep.subr.bf16.mxu0 0
  %591 = vmatpush1.bf16.msra.mxu0 0
  %592 = vmatprep.subr.bf16.mxu0 0
  %593 = vmatpush1.bf16.msra.mxu0 0
  %594 = vmatprep.subr.bf16.mxu0 0
  %595 = vmatpush1.bf16.msra.mxu0 0
  %596 = vmatprep.subr.bf16.mxu0 0
  %597 = vmatpush1.bf16.msra.mxu0 0
  %598 = vmatprep.subr.bf16.mxu0 0
  %599 = vmatpush1.bf16.msra.mxu0 0
  %600 = vmatprep.subr.bf16.mxu0 0
  %601 = vmatpush1.bf16.msra.mxu0 0
  %602 = vmatprep.subr.bf16.mxu0 0
  %603 = vmatpush1.bf16.msra.mxu0 0
  %604 = vmatprep.subr.bf16.mxu0 0
  %605 = vmatpush1.bf16.msra.mxu0 0
  %606 = vmatprep.subr.bf16.mxu0 0
  %607 = vmatpush1.bf16.msra.mxu0 0
  %608 = vmatprep.subr.bf16.mxu0 0
  %609 = vmatpush1.bf16.msra.mxu0 0
  %610 = vmatprep.mubr.bf16.mxu0 0
  %611 = vmatmul.mubr.bf16.gmra.mrb[0].mxu0 %v134
  %v612 = vpop.f32.mrb[0].mxu0
  %v613 = vadd.f32 0.0, %v612
  %v614 = vpop.f32.mrb[0].mxu0
  %v615 = vadd.f32 0.0, %v614
  %v616 = vpop.f32.mrb[0].mxu0
  %v617 = vpop.f32.mrb[0].mxu0
  %618 = vdwg.mxu0
  %619 = vmatprep.subr.bf16.mxu0 %v533
  %620 = vmatpush1.bf16.msra.mxu0 %v532
  %621 = vmatprep.subr.bf16.mxu0 %v537
  %622 = vmatpush1.bf16.msra.mxu0 %v536
  %623 = vmatprep.subr.bf16.mxu0 %v541
  %624 = vmatpush1.bf16.msra.mxu0 %v540
  %625 = vmatprep.subr.bf16.mxu0 %v545
  %626 = vmatpush1.bf16.msra.mxu0 %v544
  %627 = vmatprep.subr.bf16.mxu0 %v576
  %628 = vmatpush1.bf16.msra.mxu0 %v573
  %629 = vmatprep.subr.bf16.mxu0 0
  %630 = vmatpush1.bf16.msra.mxu0 0
  %631 = vmatprep.subr.bf16.mxu0 0
  %632 = vmatpush1.bf16.msra.mxu0 0
  %633 = vmatprep.subr.bf16.mxu0 0
  %634 = vmatpush1.bf16.msra.mxu0 0
  %635 = vmatprep.subr.bf16.mxu0 0
  %636 = vmatpush1.bf16.msra.mxu0 0
  %637 = vmatprep.subr.bf16.mxu0 0
  %638 = vmatpush1.bf16.msra.mxu0 0
  %639 = vmatprep.subr.bf16.mxu0 0
  %640 = vmatpush1.bf16.msra.mxu0 0
  %641 = vmatprep.subr.bf16.mxu0 0
  %642 = vmatpush1.bf16.msra.mxu0 0
  %643 = vmatprep.subr.bf16.mxu0 0
  %644 = vmatpush1.bf16.msra.mxu0 0
  %645 = vmatprep.subr.bf16.mxu0 0
  %646 = vmatpush1.bf16.msra.mxu0 0
  %647 = vmatprep.subr.bf16.mxu0 0
  %648 = vmatpush1.bf16.msra.mxu0 0
  %649 = vmatprep.subr.bf16.mxu0 0
  %650 = vmatpush1.bf16.msra.mxu0 0
  %651 = vmatprep.mubr.bf16.mxu0 0
  %652 = vmatmul.mubr.bf16.gmra.mrb[0].mxu0 %v134
  %v653 = vpop.f32.mrb[0].mxu0
  %v654 = vadd.f32 0.0, %v653
  %v655 = vpop.f32.mrb[0].mxu0
  %v656 = vadd.f32 0.0, %v655
  %v657 = vpop.f32.mrb[0].mxu0
  %v658 = vpop.f32.mrb[0].mxu0
  %659 = vdwg.mxu0
  %v660 = vmax.f32 %v445, %v613
  %v661 = vmax.f32 %v446, %v615
  %v662 = vmax.f32 %v447, %v654
  %v663 = vmax.f32 %v448, %v656
  %s664 = scalar_lea.vmem %s0, 480
  %v665 = vld [vmem:[%s664] sm:$0xff]
  %v666 = vld [vmem:[%s664 + $0x8] sm:$0xff]
  %v667 = vld [vmem:[%s664 + $0x10] sm:$0xff]
  %v668 = vld [vmem:[%s664 + $0x18] sm:$0xff]
  %v669 = vld [vmem:[%s664 + $0x20] sm:$0xff]
  %v670 = vld [vmem:[%s664 + $0x28] sm:$0xff]
  %v671 = vld [vmem:[%s664 + $0x30] sm:$0xff]
  %v672 = vld [vmem:[%s664 + $0x38] sm:$0xff]
  %v673 = vld [vmem:[%s664 + $0x40] sm:$0xff]
  %v674 = vld [vmem:[%s664 + $0x48] sm:$0xff]
  %v675 = vld [vmem:[%s664 + $0x50] sm:$0xff]
  %v676 = vld [vmem:[%s664 + $0x58] sm:$0xff]
  %v677 = vld [vmem:[%s664 + $0x60] sm:$0xff]
  %v678 = vld [vmem:[%s664 + $0x68] sm:$0xff]
  %v679 = vld [vmem:[%s664 + $0x70] sm:$0xff]
  %v680 = vld [vmem:[%s664 + $0x78] sm:$0xff]
  %v681 = vld [vmem:[%s664 + $0x80] sm:$0xff]
  %v682 = vld [vmem:[%s664 + $0x88] sm:$0xff]
  %v683 = vld [vmem:[%s664 + $0x90] sm:$0x33]
  %v684 = vld [vmem:[%s664 + $0x98] sm:$0x33]
  %v705 = vunpack.c.l.b16 %v665
  %v706 = vunpack.c.h.b16 %v665
  %v707 = vunpack.c.l.b16 %v666
  %v708 = vunpack.c.h.b16 %v666
  %v709 = vunpack.c.l.b16 %v667
  %v710 = vunpack.c.h.b16 %v667
  %v711 = vunpack.c.l.b16 %v668
  %v712 = vunpack.c.h.b16 %v668
  %v713 = vunpack.c.l.b16 %v669
  %v714 = vunpack.c.h.b16 %v669
  %v715 = vunpack.c.l.b16 %v670
  %v716 = vunpack.c.h.b16 %v670
  %v717 = vunpack.c.l.b16 %v671
  %v718 = vunpack.c.h.b16 %v671
  %v719 = vunpack.c.l.b16 %v672
  %v720 = vunpack.c.h.b16 %v672
  %v721 = vunpack.c.l.b16 %v673
  %v722 = vunpack.c.h.b16 %v673
  %v723 = vunpack.c.l.b16 %v674
  %v724 = vunpack.c.h.b16 %v674
  %v725 = vunpack.c.l.b16 %v675
  %v726 = vunpack.c.h.b16 %v675
  %v727 = vunpack.c.l.b16 %v676
  %v728 = vunpack.c.h.b16 %v676
  %v729 = vunpack.c.l.b16 %v677
  %v730 = vunpack.c.h.b16 %v677
  %v731 = vunpack.c.l.b16 %v678
  %v732 = vunpack.c.h.b16 %v678
  %v733 = vunpack.c.l.b16 %v679
  %v734 = vunpack.c.h.b16 %v679
  %v735 = vunpack.c.l.b16 %v680
  %v736 = vunpack.c.h.b16 %v680
  %v737 = vunpack.c.l.b16 %v681
  %v738 = vunpack.c.h.b16 %v681
  %v739 = vunpack.c.l.b16 %v682
  %v740 = vunpack.c.h.b16 %v682
  %v741 = vunpack.c.l.b16 %v683
  %v742 = vunpack.c.h.b16 %v683
  %v743 = vunpack.c.l.b16 %v684
  %v744 = vunpack.c.h.b16 %v684
  %v745 = vpack.c.b16 %v709, %v705
  %v746 = vpack.c.b16 %v710, %v706
  %v747 = vpack.c.b16 %v711, %v707
  %v748 = vpack.c.b16 %v712, %v708
  %v749 = vpack.c.b16 %v717, %v713
  %v750 = vpack.c.b16 %v718, %v714
  %v751 = vpack.c.b16 %v719, %v715
  %v752 = vpack.c.b16 %v720, %v716
  %v753 = vpack.c.b16 %v725, %v721
  %v754 = vpack.c.b16 %v726, %v722
  %v755 = vpack.c.b16 %v727, %v723
  %v756 = vpack.c.b16 %v728, %v724
  %v757 = vpack.c.b16 %v733, %v729
  %v758 = vpack.c.b16 %v734, %v730
  %v759 = vpack.c.b16 %v735, %v731
  %v760 = vpack.c.b16 %v736, %v732
  %v761 = vpack.c.b16 %v741, %v737
  %v762 = vpack.c.b16 %v742, %v738
  %v763 = vpack.c.b16 %v743, %v739
  %v764 = vpack.c.b16 %v744, %v740
  %v782 = vand.u32 %v761, %v139
  %v785 = vand.u32 %v762, %v139
  %v788 = vand.u32 %v763, %v139
  %v791 = vand.u32 %v764, %v139
  %793 = vmatprep.subr.bf16.mxu0 %v746
  %794 = vmatpush1.bf16.msra.mxu0 %v745
  %795 = vmatprep.subr.bf16.mxu0 %v750
  %796 = vmatpush1.bf16.msra.mxu0 %v749
  %797 = vmatprep.subr.bf16.mxu0 %v754
  %798 = vmatpush1.bf16.msra.mxu0 %v753
  %799 = vmatprep.subr.bf16.mxu0 %v758
  %800 = vmatpush1.bf16.msra.mxu0 %v757
  %801 = vmatprep.subr.bf16.mxu0 %v785
  %802 = vmatpush1.bf16.msra.mxu0 %v782
  %803 = vmatprep.subr.bf16.mxu0 0
  %804 = vmatpush1.bf16.msra.mxu0 0
  %805 = vmatprep.subr.bf16.mxu0 0
  %806 = vmatpush1.bf16.msra.mxu0 0
  %807 = vmatprep.subr.bf16.mxu0 0
  %808 = vmatpush1.bf16.msra.mxu0 0
  %809 = vmatprep.subr.bf16.mxu0 0
  %810 = vmatpush1.bf16.msra.mxu0 0
  %811 = vmatprep.subr.bf16.mxu0 0
  %812 = vmatpush1.bf16.msra.mxu0 0
  %813 = vmatprep.subr.bf16.mxu0 0
  %814 = vmatpush1.bf16.msra.mxu0 0
  %815 = vmatprep.subr.bf16.mxu0 0
  %816 = vmatpush1.bf16.msra.mxu0 0
  %817 = vmatprep.subr.bf16.mxu0 0
  %818 = vmatpush1.bf16.msra.mxu0 0
  %819 = vmatprep.subr.bf16.mxu0 0
  %820 = vmatpush1.bf16.msra.mxu0 0
  %821 = vmatprep.subr.bf16.mxu0 0
  %822 = vmatpush1.bf16.msra.mxu0 0
  %823 = vmatprep.subr.bf16.mxu0 0
  %824 = vmatpush1.bf16.msra.mxu0 0
  %825 = vmatprep.mubr.bf16.mxu0 0
  %826 = vmatmul.mubr.bf16.gmra.mrb[0].mxu0 %v134
  %v827 = vpop.f32.mrb[0].mxu0
  %v828 = vadd.f32 0.0, %v827
  %v829 = vpop.f32.mrb[0].mxu0
  %v830 = vadd.f32 0.0, %v829
  %v831 = vpop.f32.mrb[0].mxu0
  %v832 = vpop.f32.mrb[0].mxu0
  %833 = vdwg.mxu0
  %834 = vmatprep.subr.bf16.mxu0 %v748
  %835 = vmatpush1.bf16.msra.mxu0 %v747
  %836 = vmatprep.subr.bf16.mxu0 %v752
  %837 = vmatpush1.bf16.msra.mxu0 %v751
  %838 = vmatprep.subr.bf16.mxu0 %v756
  %839 = vmatpush1.bf16.msra.mxu0 %v755
  %840 = vmatprep.subr.bf16.mxu0 %v760
  %841 = vmatpush1.bf16.msra.mxu0 %v759
  %842 = vmatprep.subr.bf16.mxu0 %v791
  %843 = vmatpush1.bf16.msra.mxu0 %v788
  %844 = vmatprep.subr.bf16.mxu0 0
  %845 = vmatpush1.bf16.msra.mxu0 0
  %846 = vmatprep.subr.bf16.mxu0 0
  %847 = vmatpush1.bf16.msra.mxu0 0
  %848 = vmatprep.subr.bf16.mxu0 0
  %849 = vmatpush1.bf16.msra.mxu0 0
  %850 = vmatprep.subr.bf16.mxu0 0
  %851 = vmatpush1.bf16.msra.mxu0 0
  %852 = vmatprep.subr.bf16.mxu0 0
  %853 = vmatpush1.bf16.msra.mxu0 0
  %854 = vmatprep.subr.bf16.mxu0 0
  %855 = vmatpush1.bf16.msra.mxu0 0
  %856 = vmatprep.subr.bf16.mxu0 0
  %857 = vmatpush1.bf16.msra.mxu0 0
  %858 = vmatprep.subr.bf16.mxu0 0
  %859 = vmatpush1.bf16.msra.mxu0 0
  %860 = vmatprep.subr.bf16.mxu0 0
  %861 = vmatpush1.bf16.msra.mxu0 0
  %862 = vmatprep.subr.bf16.mxu0 0
  %863 = vmatpush1.bf16.msra.mxu0 0
  %864 = vmatprep.subr.bf16.mxu0 0
  %865 = vmatpush1.bf16.msra.mxu0 0
  %866 = vmatprep.mubr.bf16.mxu0 0
  %867 = vmatmul.mubr.bf16.gmra.mrb[0].mxu0 %v134
  %v868 = vpop.f32.mrb[0].mxu0
  %v869 = vadd.f32 0.0, %v868
  %v870 = vpop.f32.mrb[0].mxu0
  %v871 = vadd.f32 0.0, %v870
  %v872 = vpop.f32.mrb[0].mxu0
  %v873 = vpop.f32.mrb[0].mxu0
  %874 = vdwg.mxu0
  %v875 = vmax.f32 %v660, %v828
  %v876 = vmax.f32 %v661, %v830
  %v877 = vmax.f32 %v662, %v869
  %v878 = vmax.f32 %v663, %v871
  %v879 = vld [vmem:[%s2] sm:$0xff]
  %881 = vset.pattern.permute.xlu0 0
  %882 = vperm.xlu0 %881, %v879
  %v883 = vpop.permute.xlu0 %882
  %v885 = vadd.f32 %v875, %v883
  %v886 = vadd.f32 %v876, %v883
  %v887 = vadd.f32 %v877, %v883
  %v888 = vadd.f32 %v878, %v883
  %v889 = vmax.f32 %v885, 0.0
  %v890 = vmax.f32 %v886, 0.0
  %v891 = vmax.f32 %v887, 0.0
  %v892 = vmax.f32 %v888, 0.0
  %893 = vst [vmem:[%s3] sm:$0xff] %v889
  %894 = vst [vmem:[%s3 + $0x8] sm:$0xff] %v890
  %895 = vst [vmem:[%s3 + $0x10] sm:$0xff] %v891
  %896 = vst [vmem:[%s3 + $0x18] sm:$0xff] %v892
  // Predicated region
  $region14: #{lenet_forward.2} parent=0 // pred_check
    _
  $region15: #{lenet_forward.2} parent=0 // pred_check_branch
    %898 = sbr.rel (0) target = $region17
  $region16: #{lenet_forward.2} parent=0 // pred_region
    _
  $region17: #{lenet_forward.2} parent=0 // pred_fallthru
    _
  // Predicated region
  $region18: #{lenet_forward.2} parent=0 // pred_check
    _
  $region19: #{lenet_forward.2} parent=0 // pred_check_branch
    %900 = sbr.rel (0) target = $region21
  $region20: #{lenet_forward.2} parent=0 // pred_region
    _
  $region21: #{lenet_forward.2} parent=0 // pred_fallthru
    _

// kernel: lenet_forward.3
$region0: #{lenet_forward.3}
  #allocation0 [shape = 'u32[]', space=smem, size = 0x4, offset = 0x4, fixed_abs, tag = 'smem constant byte address 0x4 - core index']
  #allocation1 [shape = 'u32[144,128]{1,0:T(1,128)}', space=vmem, size = 0x12000, scoped, tag = 'internal scratch']
  %s0 = inlined_call_operand.vmem [shape: bf16[4,200,150], index: 0, kind: input, shape index: {}]
  %s1 = inlined_call_operand.vmem [shape: bf16[150,16], index: 1, kind: input, shape index: {}]
  %s2 = inlined_call_operand.vmem [shape: f32[1,16], index: 2, kind: input, shape index: {}]
  %s3 = inlined_call_operand.vmem [shape: bf16[400,120], index: 3, kind: input, shape index: {}]
  %s4 = inlined_call_operand.vmem [shape: f32[1,120], index: 4, kind: input, shape index: {}]
  %s5 = inlined_call_operand.vmem [shape: bf16[120,84], index: 5, kind: input, shape index: {}]
  %s6 = inlined_call_operand.vmem [shape: f32[1,84], index: 6, kind: input, shape index: {}]
  %s7 = inlined_call_operand.vmem [shape: bf16[84,128], index: 7, kind: input, shape index: {}]
  %s8 = inlined_call_operand.vmem [shape: f32[1,128], index: 8, kind: input, shape index: {}]
  %s9 = inlined_call_operand.vmem [shape: f32[8,128], index: 9, kind: output, shape index: {}]
  %s10 = sld [smem:[#allocation0]]
  $region46: #{lenet_forward.3} parent=0
    _
  %s12 = ssub.s32 1, %s10
  %s13 = scalar_select 0, %s12, %s10
  // Predicated region
  $region2: #{lenet_forward.3} parent=0 // pred_check
    _
  $region3: #{lenet_forward.3} parent=0 // pred_check_branch
    %15 = sbr.rel (0) target = $region5
  $region4: #{lenet_forward.3} parent=0 // pred_region
    _
  $region5: #{lenet_forward.3} parent=0 // pred_fallthru
    _
  // Predicated region
  $region6: #{lenet_forward.3} parent=0 // pred_check
    _
  $region7: #{lenet_forward.3} parent=0 // pred_check_branch
    %17 = sbr.rel (0) target = $region9
  $region8: #{lenet_forward.3} parent=0 // pred_region
    _
  $region9: #{lenet_forward.3} parent=0 // pred_fallthru
    _
  // Predicated region
  $region10: #{lenet_forward.3} parent=0 // pred_check
    _
  $region11: #{lenet_forward.3} parent=0 // pred_check_branch
    %19 = sbr.rel (0) target = $region13
  $region12: #{lenet_forward.3} parent=0 // pred_region
    _
  $region13: #{lenet_forward.3} parent=0 // pred_fallthru
    _
  // Predicated region
  $region14: #{lenet_forward.3} parent=0 // pred_check
    _
  $region15: #{lenet_forward.3} parent=0 // pred_check_branch
    %21 = sbr.rel (0) target = $region17
  $region16: #{lenet_forward.3} parent=0 // pred_region
    _
  $region17: #{lenet_forward.3} parent=0 // pred_fallthru
    _
  // Predicated region
  $region18: #{lenet_forward.3} parent=0 // pred_check
    _
  $region19: #{lenet_forward.3} parent=0 // pred_check_branch
    %23 = sbr.rel (0) target = $region21
  $region20: #{lenet_forward.3} parent=0 // pred_region
    _
  $region21: #{lenet_forward.3} parent=0 // pred_fallthru
    _
  // Predicated region
  $region22: #{lenet_forward.3} parent=0 // pred_check
    _
  $region23: #{lenet_forward.3} parent=0 // pred_check_branch
    %25 = sbr.rel (0) target = $region25
  $region24: #{lenet_forward.3} parent=0 // pred_region
    _
  $region25: #{lenet_forward.3} parent=0 // pred_fallthru
    _
  // Predicated region
  $region26: #{lenet_forward.3} parent=0 // pred_check
    _
  $region27: #{lenet_forward.3} parent=0 // pred_check_branch
    %27 = sbr.rel (0) target = $region29
  $region28: #{lenet_forward.3} parent=0 // pred_region
    _
  $region29: #{lenet_forward.3} parent=0 // pred_fallthru
    _
  // Predicated region
  $region30: #{lenet_forward.3} parent=0 // pred_check
    _
  $region31: #{lenet_forward.3} parent=0 // pred_check_branch
    %29 = sbr.rel (0) target = $region33
  $region32: #{lenet_forward.3} parent=0 // pred_region
    _
  $region33: #{lenet_forward.3} parent=0 // pred_fallthru
    _
  // Predicated region
  $region34: #{lenet_forward.3} parent=0 // pred_check
    _
  $region35: #{lenet_forward.3} parent=0 // pred_check_branch
    %31 = sbr.rel (0) target = $region37
  $region36: #{lenet_forward.3} parent=0 // pred_region
    _
  $region37: #{lenet_forward.3} parent=0 // pred_fallthru
    _
  %v33 = vld [vmem:[%s1] sm:$0xf]
  %v34 = vld [vmem:[%s1 + $0x4] sm:$0xf]
  %v35 = vld [vmem:[%s1 + $0x8] sm:$0xf]
  %v36 = vld [vmem:[%s1 + $0xc] sm:$0xf]
  %v37 = vld [vmem:[%s1 + $0x10] sm:$0xf]
  %v38 = vld [vmem:[%s1 + $0x14] sm:$0xf]
  %v39 = vld [vmem:[%s1 + $0x18] sm:$0xf]
  %v40 = vld [vmem:[%s1 + $0x1c] sm:$0xf]
  %v41 = vld [vmem:[%s1 + $0x20] sm:$0xf]
  %v42 = vld [vmem:[%s1 + $0x24] sm:$0xf]
  %v43 = vld [vmem:[%s1 + $0x28] sm:$0xf]
  %v44 = vld [vmem:[%s1 + $0x2c] sm:$0xf]
  %v45 = vld [vmem:[%s1 + $0x30] sm:$0xf]
  %v46 = vld [vmem:[%s1 + $0x34] sm:$0xf]
  %v47 = vld [vmem:[%s1 + $0x38] sm:$0xf]
  %v48 = vld [vmem:[%s1 + $0x3c] sm:$0xf]
  %v49 = vld [vmem:[%s1 + $0x40] sm:$0xf]
  %v50 = vld [vmem:[%s1 + $0x44] sm:$0xf]
  %v51 = vld [vmem:[%s1 + $0x48] sm:$0x7]
  %v52 = vld [vmem:[%s0] sm:$0xff]
  %v53 = vld [vmem:[%s0 + $0x8] sm:$0xff]
  %v54 = vld [vmem:[%s0 + $0x10] sm:$0xff]
  %v55 = vld [vmem:[%s0 + $0x18] sm:$0xff]
  %v56 = vld [vmem:[%s0 + $0x20] sm:$0xff]
  %v57 = vld [vmem:[%s0 + $0x28] sm:$0xff]
  %v58 = vld [vmem:[%s0 + $0x30] sm:$0xff]
  %v59 = vld [vmem:[%s0 + $0x38] sm:$0xff]
  %v60 = vld [vmem:[%s0 + $0x40] sm:$0xff]
  %v61 = vld [vmem:[%s0 + $0x48] sm:$0xff]
  %v62 = vld [vmem:[%s0 + $0x50] sm:$0xff]
  %v63 = vld [vmem:[%s0 + $0x58] sm:$0xff]
  %v64 = vld [vmem:[%s0 + $0x60] sm:$0xff]
  %v65 = vld [vmem:[%s0 + $0x68] sm:$0xff]
  %v66 = vld [vmem:[%s0 + $0x70] sm:$0xff]
  %v67 = vld [vmem:[%s0 + $0x78] sm:$0xff]
  %v68 = vld [vmem:[%s0 + $0x80] sm:$0xff]
  %v69 = vld [vmem:[%s0 + $0x88] sm:$0xff]
  %v70 = vld [vmem:[%s0 + $0x90] sm:$0xff]
  %v71 = vld [vmem:[%s0 + $0x98] sm:$0xff]
  %v72 = vld [vmem:[%s0 + $0xa0] sm:$0xff]
  %v73 = vld [vmem:[%s0 + $0xa8] sm:$0xff]
  %v74 = vld [vmem:[%s0 + $0xb0] sm:$0xff]
  %v75 = vld [vmem:[%s0 + $0xb8] sm:$0xff]
  %v76 = vld [vmem:[%s0 + $0xc0] sm:$0xff]
  %v102 = vunpack.c.l.b16 %v52
  %v103 = vunpack.c.h.b16 %v52
  %v104 = vunpack.c.l.b16 %v53
  %v105 = vunpack.c.h.b16 %v53
  %v106 = vunpack.c.l.b16 %v54
  %v107 = vunpack.c.h.b16 %v54
  %v108 = vunpack.c.l.b16 %v55
  %v109 = vunpack.c.h.b16 %v55
  %v110 = vunpack.c.l.b16 %v56
  %v111 = vunpack.c.h.b16 %v56
  %v112 = vunpack.c.l.b16 %v57
  %v113 = vunpack.c.h.b16 %v57
  %v114 = vunpack.c.l.b16 %v58
  %v115 = vunpack.c.h.b16 %v58
  %v116 = vunpack.c.l.b16 %v59
  %v117 = vunpack.c.h.b16 %v59
  %v118 = vunpack.c.l.b16 %v60
  %v119 = vunpack.c.h.b16 %v60
  %v120 = vunpack.c.l.b16 %v61
  %v121 = vunpack.c.h.b16 %v61
  %v122 = vunpack.c.l.b16 %v62
  %v123 = vunpack.c.h.b16 %v62
  %v124 = vunpack.c.l.b16 %v63
  %v125 = vunpack.c.h.b16 %v63
  %v126 = vunpack.c.l.b16 %v64
  %v127 = vunpack.c.h.b16 %v64
  %v128 = vunpack.c.l.b16 %v65
  %v129 = vunpack.c.h.b16 %v65
  %v130 = vunpack.c.l.b16 %v66
  %v131 = vunpack.c.h.b16 %v66
  %v132 = vunpack.c.l.b16 %v67
  %v133 = vunpack.c.h.b16 %v67
  %v134 = vunpack.c.l.b16 %v68
  %v135 = vunpack.c.h.b16 %v68
  %v136 = vunpack.c.l.b16 %v69
  %v137 = vunpack.c.h.b16 %v69
  %v138 = vunpack.c.l.b16 %v70
  %v139 = vunpack.c.h.b16 %v70
  %v140 = vunpack.c.l.b16 %v71
  %v141 = vunpack.c.h.b16 %v71
  %v142 = vunpack.c.l.b16 %v72
  %v143 = vunpack.c.h.b16 %v72
  %v144 = vunpack.c.l.b16 %v73
  %v145 = vunpack.c.h.b16 %v73
  %v146 = vunpack.c.l.b16 %v74
  %v147 = vunpack.c.h.b16 %v74
  %v148 = vunpack.c.l.b16 %v75
  %v149 = vunpack.c.h.b16 %v75
  %v150 = vunpack.c.l.b16 %v76
  %v151 = vunpack.c.h.b16 %v76
  %v152 = vpack.c.b16 %v104, %v102
  %v153 = vpack.c.b16 %v105, %v103
  %v154 = vpack.c.b16 %v108, %v106
  %v155 = vpack.c.b16 %v109, %v107
  %v156 = vpack.c.b16 %v112, %v110
  %v157 = vpack.c.b16 %v113, %v111
  %v158 = vpack.c.b16 %v116, %v114
  %v159 = vpack.c.b16 %v117, %v115
  %v160 = vpack.c.b16 %v120, %v118
  %v161 = vpack.c.b16 %v121, %v119
  %v162 = vpack.c.b16 %v124, %v122
  %v163 = vpack.c.b16 %v125, %v123
  %v164 = vpack.c.b16 %v128, %v126
  %v165 = vpack.c.b16 %v129, %v127
  %v166 = vpack.c.b16 %v132, %v130
  %v167 = vpack.c.b16 %v133, %v131
  %v168 = vpack.c.b16 %v136, %v134
  %v169 = vpack.c.b16 %v137, %v135
  %v170 = vpack.c.b16 %v140, %v138
  %v171 = vpack.c.b16 %v141, %v139
  %v172 = vpack.c.b16 %v144, %v142
  %v173 = vpack.c.b16 %v145, %v143
  %v174 = vpack.c.b16 %v148, %v146
  %v175 = vpack.c.b16 %v149, %v147
  %v176 = vpack.c.b16 %v150, %v150
  %v177 = vpack.c.b16 %v151, %v151
  %v210 = vunpack.c.l.b16 %v33
  %v211 = vunpack.c.l.b16 %v34
  %v212 = vunpack.c.l.b16 %v35
  %v213 = vunpack.c.l.b16 %v36
  %v214 = vunpack.c.l.b16 %v37
  %v215 = vunpack.c.l.b16 %v38
  %v216 = vunpack.c.l.b16 %v39
  %v217 = vunpack.c.l.b16 %v40
  %v218 = vunpack.c.l.b16 %v41
  %v219 = vunpack.c.l.b16 %v42
  %v220 = vunpack.c.l.b16 %v43
  %v221 = vunpack.c.l.b16 %v44
  %v222 = vunpack.c.l.b16 %v45
  %v223 = vunpack.c.l.b16 %v46
  %v224 = vunpack.c.l.b16 %v47
  %v225 = vunpack.c.l.b16 %v48
  %v226 = vunpack.c.l.b16 %v49
  %v227 = vunpack.c.l.b16 %v50
  %v228 = vunpack.c.l.b16 %v51
  %v229 = vpack.c.b16 %v211, %v210
  %v230 = vpack.c.b16 %v213, %v212
  %v231 = vpack.c.b16 %v215, %v214
  %v232 = vpack.c.b16 %v217, %v216
  %v233 = vpack.c.b16 %v219, %v218
  %v234 = vpack.c.b16 %v221, %v220
  %v235 = vpack.c.b16 %v223, %v222
  %v236 = vpack.c.b16 %v225, %v224
  %v237 = vpack.c.b16 %v227, %v226
  %v238 = vpack.c.b16 %v228, %v228
  %vm248 = vcmask 179200
  %v250 = vsel %vm248, %v153, 0
  %v253 = vsel %vm248, %v155, 0
  %v256 = vsel %vm248, %v157, 0
  %v259 = vsel %vm248, %v159, 0
  %v262 = vsel %vm248, %v161, 0
  %v265 = vsel %vm248, %v163, 0
  %v268 = vsel %vm248, %v165, 0
  %v271 = vsel %vm248, %v167, 0
  %v274 = vsel %vm248, %v169, 0
  %v277 = vsel %vm248, %v171, 0
  %v280 = vsel %vm248, %v173, 0
  %v283 = vsel %vm248, %v175, 0
  %v286 = vsel %vm248, %v177, 0
  %vm288 = vcmask 1042432
  %v290 = vsel %vm288, %v238, 0
  %292 = vmatprep.subr.bf16.mxu0 0
  %293 = vmatpush1.bf16.msra.mxu0 %v229
  %294 = vmatprep.subr.bf16.mxu0 0
  %295 = vmatpush1.bf16.msra.mxu0 %v230
  %296 = vmatprep.subr.bf16.mxu0 0
  %297 = vmatpush1.bf16.msra.mxu0 %v231
  %298 = vmatprep.subr.bf16.mxu0 0
  %299 = vmatpush1.bf16.msra.mxu0 %v232
  %300 = vmatprep.subr.bf16.mxu0 0
  %301 = vmatpush1.bf16.msra.mxu0 %v233
  %302 = vmatprep.subr.bf16.mxu0 0
  %303 = vmatpush1.bf16.msra.mxu0 %v234
  %304 = vmatprep.subr.bf16.mxu0 0
  %305 = vmatpush1.bf16.msra.mxu0 %v235
  %306 = vmatprep.subr.bf16.mxu0 0
  %307 = vmatpush1.bf16.msra.mxu0 %v236
  %308 = vmatprep.subr.bf16.mxu0 0
  %309 = vmatpush1.bf16.msra.mxu0 %v237
  %310 = vmatprep.subr.bf16.mxu0 0
  %311 = vmatpush1.bf16.msra.mxu0 %v290
  %312 = vmatprep.subr.bf16.mxu0 0
  %313 = vmatpush1.bf16.msra.mxu0 0
  %314 = vmatprep.subr.bf16.mxu0 0
  %315 = vmatpush1.bf16.msra.mxu0 0
  %316 = vmatprep.subr.bf16.mxu0 0
  %317 = vmatpush1.bf16.msra.mxu0 0
  %318 = vmatprep.subr.bf16.mxu0 0
  %319 = vmatpush1.bf16.msra.mxu0 0
  %320 = vmatprep.subr.bf16.mxu0 0
  %321 = vmatpush1.bf16.msra.mxu0 0
  %322 = vmatprep.subr.bf16.mxu0 0
  %323 = vmatpush1.bf16.msra.mxu0 0
  %324 = vmatprep.mubr.bf16.mxu0 %v250
  %325 = vmatmul.mubr.bf16.gmra.mrb[0].mxu0 %v152
  %v326 = vpop.f32.mrb[0].mxu0
  %v327 = vadd.f32 0.0, %v326
  %v328 = vpop.f32.mrb[0].mxu0
  %v329 = vpop.f32.mrb[0].mxu0
  %v330 = vadd.f32 0.0, %v329
  %v331 = vpop.f32.mrb[0].mxu0
  %332 = vmatprep.mubr.bf16.mxu0 %v253
  %333 = vmatmul.mubr.bf16.gmra.mrb[0].mxu0 %v154
  %v334 = vpop.f32.mrb[0].mxu0
  %v335 = vadd.f32 0.0, %v334
  %v336 = vpop.f32.mrb[0].mxu0
  %v337 = vpop.f32.mrb[0].mxu0
  %v338 = vadd.f32 0.0, %v337
  %v339 = vpop.f32.mrb[0].mxu0
  %340 = vmatprep.mubr.bf16.mxu0 %v256
  %341 = vmatmul.mubr.bf16.gmra.mrb[0].mxu0 %v156
  %v342 = vpop.f32.mrb[0].mxu0
  %v343 = vadd.f32 0.0, %v342
  %v344 = vpop.f32.mrb[0].mxu0
  %v345 = vpop.f32.mrb[0].mxu0
  %v346 = vadd.f32 0.0, %v345
  %v347 = vpop.f32.mrb[0].mxu0
  %348 = vmatprep.mubr.bf16.mxu0 %v259
  %349 = vmatmul.mubr.bf16.gmra.mrb[0].mxu0 %v158
  %v350 = vpop.f32.mrb[0].mxu0
  %v351 = vadd.f32 0.0, %v350
  %v352 = vpop.f32.mrb[0].mxu0
  %v353 = vpop.f32.mrb[0].mxu0
  %v354 = vadd.f32 0.0, %v353
  %v355 = vpop.f32.mrb[0].mxu0
  %356 = vmatprep.mubr.bf16.mxu0 %v262
  %357 = vmatmul.mubr.bf16.gmra.mrb[0].mxu0 %v160
  %v358 = vpop.f32.mrb[0].mxu0
  %v359 = vadd.f32 0.0, %v358
  %v360 = vpop.f32.mrb[0].mxu0
  %v361 = vpop.f32.mrb[0].mxu0
  %v362 = vadd.f32 0.0, %v361
  %v363 = vpop.f32.mrb[0].mxu0
  %364 = vmatprep.mubr.bf16.mxu0 %v265
  %365 = vmatmul.mubr.bf16.gmra.mrb[0].mxu0 %v162
  %v366 = vpop.f32.mrb[0].mxu0
  %v367 = vadd.f32 0.0, %v366
  %v368 = vpop.f32.mrb[0].mxu0
  %v369 = vpop.f32.mrb[0].mxu0
  %v370 = vadd.f32 0.0, %v369
  %v371 = vpop.f32.mrb[0].mxu0
  %372 = vmatprep.mubr.bf16.mxu0 %v268
  %373 = vmatmul.mubr.bf16.gmra.mrb[0].mxu0 %v164
  %v374 = vpop.f32.mrb[0].mxu0
  %v375 = vadd.f32 0.0, %v374
  %v376 = vpop.f32.mrb[0].mxu0
  %v377 = vpop.f32.mrb[0].mxu0
  %v378 = vadd.f32 0.0, %v377
  %v379 = vpop.f32.mrb[0].mxu0
  %380 = vmatprep.mubr.bf16.mxu0 %v271
  %381 = vmatmul.mubr.bf16.gmra.mrb[0].mxu0 %v166
  %v382 = vpop.f32.mrb[0].mxu0
  %v383 = vadd.f32 0.0, %v382
  %v384 = vpop.f32.mrb[0].mxu0
  %v385 = vpop.f32.mrb[0].mxu0
  %v386 = vadd.f32 0.0, %v385
  %v387 = vpop.f32.mrb[0].mxu0
  %388 = vmatprep.mubr.bf16.mxu0 %v274
  %389 = vmatmul.mubr.bf16.gmra.mrb[0].mxu0 %v168
  %v390 = vpop.f32.mrb[0].mxu0
  %v391 = vadd.f32 0.0, %v390
  %v392 = vpop.f32.mrb[0].mxu0
  %v393 = vpop.f32.mrb[0].mxu0
  %v394 = vadd.f32 0.0, %v393
  %v395 = vpop.f32.mrb[0].mxu0
  %396 = vmatprep.mubr.bf16.mxu0 %v277
  %397 = vmatmul.mubr.bf16.gmra.mrb[0].mxu0 %v170
  %v398 = vpop.f32.mrb[0].mxu0
  %v399 = vadd.f32 0.0, %v398
  %v400 = vpop.f32.mrb[0].mxu0
  %v401 = vpop.f32.mrb[0].mxu0
  %v402 = vadd.f32 0.0, %v401
  %v403 = vpop.f32.mrb[0].mxu0
  %404 = vmatprep.mubr.bf16.mxu0 %v280
  %405 = vmatmul.mubr.bf16.gmra.mrb[0].mxu0 %v172
  %v406 = vpop.f32.mrb[0].mxu0
  %v407 = vadd.f32 0.0, %v406
  %v408 = vpop.f32.mrb[0].mxu0
  %v409 = vpop.f32.mrb[0].mxu0
  %v410 = vadd.f32 0.0, %v409
  %v411 = vpop.f32.mrb[0].mxu0
  %412 = vmatprep.mubr.bf16.mxu0 %v283
  %413 = vmatmul.mubr.bf16.gmra.mrb[0].mxu0 %v174
  %v414 = vpop.f32.mrb[0].mxu0
  %v415 = vadd.f32 0.0, %v414
  %v416 = vpop.f32.mrb[0].mxu0
  %v417 = vpop.f32.mrb[0].mxu0
  %v418 = vadd.f32 0.0, %v417
  %v419 = vpop.f32.mrb[0].mxu0
  %420 = vmatprep.mubr.bf16.mxu0 %v286
  %421 = vmatmul.mubr.bf16.gmra.mrb[0].mxu0 %v176
  %v422 = vpop.f32.mrb[0].mxu0
  %v423 = vadd.f32 0.0, %v422
  %v424 = vpop.f32.mrb[0].mxu0
  %v425 = vpop.f32.mrb[0].mxu0
  %v426 = vpop.f32.mrb[0].mxu0
  %427 = vdwg.mxu0
  %s428 = scalar_lea.vmem %s0, 200
  %v429 = vld [vmem:[%s428] sm:$0xff]
  %v430 = vld [vmem:[%s428 + $0x8] sm:$0xff]
  %v431 = vld [vmem:[%s428 + $0x10] sm:$0xff]
  %v432 = vld [vmem:[%s428 + $0x18] sm:$0xff]
  %v433 = vld [vmem:[%s428 + $0x20] sm:$0xff]
  %v434 = vld [vmem:[%s428 + $0x28] sm:$0xff]
  %v435 = vld [vmem:[%s428 + $0x30] sm:$0xff]
  %v436 = vld [vmem:[%s428 + $0x38] sm:$0xff]
  %v437 = vld [vmem:[%s428 + $0x40] sm:$0xff]
  %v438 = vld [vmem:[%s428 + $0x48] sm:$0xff]
  %v439 = vld [vmem:[%s428 + $0x50] sm:$0xff]
  %v440 = vld [vmem:[%s428 + $0x58] sm:$0xff]
  %v441 = vld [vmem:[%s428 + $0x60] sm:$0xff]
  %v442 = vld [vmem:[%s428 + $0x68] sm:$0xff]
  %v443 = vld [vmem:[%s428 + $0x70] sm:$0xff]
  %v444 = vld [vmem:[%s428 + $0x78] sm:$0xff]
  %v445 = vld [vmem:[%s428 + $0x80] sm:$0xff]
  %v446 = vld [vmem:[%s428 + $0x88] sm:$0xff]
  %v447 = vld [vmem:[%s428 + $0x90] sm:$0xff]
  %v448 = vld [vmem:[%s428 + $0x98] sm:$0xff]
  %v449 = vld [vmem:[%s428 + $0xa0] sm:$0xff]
  %v450 = vld [vmem:[%s428 + $0xa8] sm:$0xff]
  %v451 = vld [vmem:[%s428 + $0xb0] sm:$0xff]
  %v452 = vld [vmem:[%s428 + $0xb8] sm:$0xff]
  %v453 = vld [vmem:[%s428 + $0xc0] sm:$0xff]
  %v479 = vunpack.c.l.b16 %v429
  %v480 = vunpack.c.h.b16 %v429
  %v481 = vunpack.c.l.b16 %v430
  %v482 = vunpack.c.h.b16 %v430
  %v483 = vunpack.c.l.b16 %v431
  %v484 = vunpack.c.h.b16 %v431
  %v485 = vunpack.c.l.b16 %v432
  %v486 = vunpack.c.h.b16 %v432
  %v487 = vunpack.c.l.b16 %v433
  %v488 = vunpack.c.h.b16 %v433
  %v489 = vunpack.c.l.b16 %v434
  %v490 = vunpack.c.h.b16 %v434
  %v491 = vunpack.c.l.b16 %v435
  %v492 = vunpack.c.h.b16 %v435
  %v493 = vunpack.c.l.b16 %v436
  %v494 = vunpack.c.h.b16 %v436
  %v495 = vunpack.c.l.b16 %v437
  %v496 = vunpack.c.h.b16 %v437
  %v497 = vunpack.c.l.b16 %v438
  %v498 = vunpack.c.h.b16 %v438
  %v499 = vunpack.c.l.b16 %v439
  %v500 = vunpack.c.h.b16 %v439
  %v501 = vunpack.c.l.b16 %v440
  %v502 = vunpack.c.h.b16 %v440
  %v503 = vunpack.c.l.b16 %v441
  %v504 = vunpack.c.h.b16 %v441
  %v505 = vunpack.c.l.b16 %v442
  %v506 = vunpack.c.h.b16 %v442
  %v507 = vunpack.c.l.b16 %v443
  %v508 = vunpack.c.h.b16 %v443
  %v509 = vunpack.c.l.b16 %v444
  %v510 = vunpack.c.h.b16 %v444
  %v511 = vunpack.c.l.b16 %v445
  %v512 = vunpack.c.h.b16 %v445
  %v513 = vunpack.c.l.b16 %v446
  %v514 = vunpack.c.h.b16 %v446
  %v515 = vunpack.c.l.b16 %v447
  %v516 = vunpack.c.h.b16 %v447
  %v517 = vunpack.c.l.b16 %v448
  %v518 = vunpack.c.h.b16 %v448
  %v519 = vunpack.c.l.b16 %v449
  %v520 = vunpack.c.h.b16 %v449
  %v521 = vunpack.c.l.b16 %v450
  %v522 = vunpack.c.h.b16 %v450
  %v523 = vunpack.c.l.b16 %v451
  %v524 = vunpack.c.h.b16 %v451
  %v525 = vunpack.c.l.b16 %v452
  %v526 = vunpack.c.h.b16 %v452
  %v527 = vunpack.c.l.b16 %v453
  %v528 = vunpack.c.h.b16 %v453
  %v529 = vpack.c.b16 %v481, %v479
  %v530 = vpack.c.b16 %v482, %v480
  %v531 = vpack.c.b16 %v485, %v483
  %v532 = vpack.c.b16 %v486, %v484
  %v533 = vpack.c.b16 %v489, %v487
  %v534 = vpack.c.b16 %v490, %v488
  %v535 = vpack.c.b16 %v493, %v491
  %v536 = vpack.c.b16 %v494, %v492
  %v537 = vpack.c.b16 %v497, %v495
  %v538 = vpack.c.b16 %v498, %v496
  %v539 = vpack.c.b16 %v501, %v499
  %v540 = vpack.c.b16 %v502, %v500
  %v541 = vpack.c.b16 %v505, %v503
  %v542 = vpack.c.b16 %v506, %v504
  %v543 = vpack.c.b16 %v509, %v507
  %v544 = vpack.c.b16 %v510, %v508
  %v545 = vpack.c.b16 %v513, %v511
  %v546 = vpack.c.b16 %v514, %v512
  %v547 = vpack.c.b16 %v517, %v515
  %v548 = vpack.c.b16 %v518, %v516
  %v549 = vpack.c.b16 %v521, %v519
  %v550 = vpack.c.b16 %v522, %v520
  %v551 = vpack.c.b16 %v525, %v523
  %v552 = vpack.c.b16 %v526, %v524
  %v553 = vpack.c.b16 %v527, %v527
  %v554 = vpack.c.b16 %v528, %v528
  %v569 = vsel %vm248, %v530, 0
  %v572 = vsel %vm248, %v532, 0
  %v575 = vsel %vm248, %v534, 0
  %v578 = vsel %vm248, %v536, 0
  %v581 = vsel %vm248, %v538, 0
  %v584 = vsel %vm248, %v540, 0
  %v587 = vsel %vm248, %v542, 0
  %v590 = vsel %vm248, %v544, 0
  %v593 = vsel %vm248, %v546, 0
  %v596 = vsel %vm248, %v548, 0
  %v599 = vsel %vm248, %v550, 0
  %v602 = vsel %vm248, %v552, 0
  %v605 = vsel %vm248, %v554, 0
  %607 = vmatprep.subr.bf16.mxu0 0
  %608 = vmatpush1.bf16.msra.mxu0 %v229
  %609 = vmatprep.subr.bf16.mxu0 0
  %610 = vmatpush1.bf16.msra.mxu0 %v230
  %611 = vmatprep.subr.bf16.mxu0 0
  %612 = vmatpush1.bf16.msra.mxu0 %v231
  %613 = vmatprep.subr.bf16.mxu0 0
  %614 = vmatpush1.bf16.msra.mxu0 %v232
  %615 = vmatprep.subr.bf16.mxu0 0
  %616 = vmatpush1.bf16.msra.mxu0 %v233
  %617 = vmatprep.subr.bf16.mxu0 0
  %618 = vmatpush1.bf16.msra.mxu0 %v234
  %619 = vmatprep.subr.bf16.mxu0 0
  %620 = vmatpush1.bf16.msra.mxu0 %v235
  %621 = vmatprep.subr.bf16.mxu0 0
  %622 = vmatpush1.bf16.msra.mxu0 %v236
  %623 = vmatprep.subr.bf16.mxu0 0
  %624 = vmatpush1.bf16.msra.mxu0 %v237
  %625 = vmatprep.subr.bf16.mxu0 0
  %626 = vmatpush1.bf16.msra.mxu0 %v290
  %627 = vmatprep.subr.bf16.mxu0 0
  %628 = vmatpush1.bf16.msra.mxu0 0
  %629 = vmatprep.subr.bf16.mxu0 0
  %630 = vmatpush1.bf16.msra.mxu0 0
  %631 = vmatprep.subr.bf16.mxu0 0
  %632 = vmatpush1.bf16.msra.mxu0 0
  %633 = vmatprep.subr.bf16.mxu0 0
  %634 = vmatpush1.bf16.msra.mxu0 0
  %635 = vmatprep.subr.bf16.mxu0 0
  %636 = vmatpush1.bf16.msra.mxu0 0
  %637 = vmatprep.subr.bf16.mxu0 0
  %638 = vmatpush1.bf16.msra.mxu0 0
  %639 = vmatprep.mubr.bf16.mxu0 %v569
  %640 = vmatmul.mubr.bf16.gmra.mrb[0].mxu0 %v529
  %v641 = vpop.f32.mrb[0].mxu0
  %v642 = vadd.f32 0.0, %v641
  %v643 = vpop.f32.mrb[0].mxu0
  %v644 = vpop.f32.mrb[0].mxu0
  %v645 = vadd.f32 0.0, %v644
  %v646 = vpop.f32.mrb[0].mxu0
  %647 = vmatprep.mubr.bf16.mxu0 %v572
  %648 = vmatmul.mubr.bf16.gmra.mrb[0].mxu0 %v531
  %v649 = vpop.f32.mrb[0].mxu0
  %v650 = vadd.f32 0.0, %v649
  %v651 = vpop.f32.mrb[0].mxu0
  %v652 = vpop.f32.mrb[0].mxu0
  %v653 = vadd.f32 0.0, %v652
  %v654 = vpop.f32.mrb[0].mxu0
  %655 = vmatprep.mubr.bf16.mxu0 %v575
  %656 = vmatmul.mubr.bf16.gmra.mrb[0].mxu0 %v533
  %v657 = vpop.f32.mrb[0].mxu0
  %v658 = vadd.f32 0.0, %v657
  %v659 = vpop.f32.mrb[0].mxu0
  %v660 = vpop.f32.mrb[0].mxu0
  %v661 = vadd.f32 0.0, %v660
  %v662 = vpop.f32.mrb[0].mxu0
  %663 = vmatprep.mubr.bf16.mxu0 %v578
  %664 = vmatmul.mubr.bf16.gmra.mrb[0].mxu0 %v535
  %v665 = vpop.f32.mrb[0].mxu0
  %v666 = vadd.f32 0.0, %v665
  %v667 = vpop.f32.mrb[0].mxu0
  %v668 = vpop.f32.mrb[0].mxu0
  %v669 = vadd.f32 0.0, %v668
  %v670 = vpop.f32.mrb[0].mxu0
  %671 = vmatprep.mubr.bf16.mxu0 %v581
  %672 = vmatmul.mubr.bf16.gmra.mrb[0].mxu0 %v537
  %v673 = vpop.f32.mrb[0].mxu0
  %v674 = vadd.f32 0.0, %v673
  %v675 = vpop.f32.mrb[0].mxu0
  %v676 = vpop.f32.mrb[0].mxu0
  %v677 = vadd.f32 0.0, %v676
  %v678 = vpop.f32.mrb[0].mxu0
  %679 = vmatprep.mubr.bf16.mxu0 %v584
  %680 = vmatmul.mubr.bf16.gmra.mrb[0].mxu0 %v539
  %v681 = vpop.f32.mrb[0].mxu0
  %v682 = vadd.f32 0.0, %v681
  %v683 = vpop.f32.mrb[0].mxu0
  %v684 = vpop.f32.mrb[0].mxu0
  %v685 = vadd.f32 0.0, %v684
  %v686 = vpop.f32.mrb[0].mxu0
  %687 = vmatprep.mubr.bf16.mxu0 %v587
  %688 = vmatmul.mubr.bf16.gmra.mrb[0].mxu0 %v541
  %v689 = vpop.f32.mrb[0].mxu0
  %v690 = vadd.f32 0.0, %v689
  %v691 = vpop.f32.mrb[0].mxu0
  %v692 = vpop.f32.mrb[0].mxu0
  %v693 = vadd.f32 0.0, %v692
  %v694 = vpop.f32.mrb[0].mxu0
  %695 = vmatprep.mubr.bf16.mxu0 %v590
  %696 = vmatmul.mubr.bf16.gmra.mrb[0].mxu0 %v543
  %v697 = vpop.f32.mrb[0].mxu0
  %v698 = vadd.f32 0.0, %v697
  %v699 = vpop.f32.mrb[0].mxu0
  %v700 = vpop.f32.mrb[0].mxu0
  %v701 = vadd.f32 0.0, %v700
  %v702 = vpop.f32.mrb[0].mxu0
  %703 = vmatprep.mubr.bf16.mxu0 %v593
  %704 = vmatmul.mubr.bf16.gmra.mrb[0].mxu0 %v545
  %v705 = vpop.f32.mrb[0].mxu0
  %v706 = vadd.f32 0.0, %v705
  %v707 = vpop.f32.mrb[0].mxu0
  %v708 = vpop.f32.mrb[0].mxu0
  %v709 = vadd.f32 0.0, %v708
  %v710 = vpop.f32.mrb[0].mxu0
  %711 = vmatprep.mubr.bf16.mxu0 %v596
  %712 = vmatmul.mubr.bf16.gmra.mrb[0].mxu0 %v547
  %v713 = vpop.f32.mrb[0].mxu0
  %v714 = vadd.f32 0.0, %v713
  %v715 = vpop.f32.mrb[0].mxu0
  %v716 = vpop.f32.mrb[0].mxu0
  %v717 = vadd.f32 0.0, %v716
  %v718 = vpop.f32.mrb[0].mxu0
  %719 = vmatprep.mubr.bf16.mxu0 %v599
  %720 = vmatmul.mubr.bf16.gmra.mrb[0].mxu0 %v549
  %v721 = vpop.f32.mrb[0].mxu0
  %v722 = vadd.f32 0.0, %v721
  %v723 = vpop.f32.mrb[0].mxu0
  %v724 = vpop.f32.mrb[0].mxu0
  %v725 = vadd.f32 0.0, %v724
  %v726 = vpop.f32.mrb[0].mxu0
  %727 = vmatprep.mubr.bf16.mxu0 %v602
  %728 = vmatmul.mubr.bf16.gmra.mrb[0].mxu0 %v551
  %v729 = vpop.f32.mrb[0].mxu0
  %v730 = vadd.f32 0.0, %v729
  %v731 = vpop.f32.mrb[0].mxu0
  %v732 = vpop.f32.mrb[0].mxu0
  %v733 = vadd.f32 0.0, %v732
  %v734 = vpop.f32.mrb[0].mxu0
  %735 = vmatprep.mubr.bf16.mxu0 %v605
  %736 = vmatmul.mubr.bf16.gmra.mrb[0].mxu0 %v553
  %v737 = vpop.f32.mrb[0].mxu0
  %v738 = vadd.f32 0.0, %v737
  %v739 = vpop.f32.mrb[0].mxu0
  %v740 = vpop.f32.mrb[0].mxu0
  %v741 = vpop.f32.mrb[0].mxu0
  %742 = vdwg.mxu0
  %v743 = vmax.f32 %v327, %v642
  %v744 = vmax.f32 %v330, %v645
  %v745 = vmax.f32 %v335, %v650
  %v746 = vmax.f32 %v338, %v653
  %v747 = vmax.f32 %v343, %v658
  %v748 = vmax.f32 %v346, %v661
  %v749 = vmax.f32 %v351, %v666
  %v750 = vmax.f32 %v354, %v669
  %v751 = vmax.f32 %v359, %v674
  %v752 = vmax.f32 %v362, %v677
  %v753 = vmax.f32 %v367, %v682
  %v754 = vmax.f32 %v370, %v685
  %v755 = vmax.f32 %v375, %v690
  %v756 = vmax.f32 %v378, %v693
  %v757 = vmax.f32 %v383, %v698
  %v758 = vmax.f32 %v386, %v701
  %v759 = vmax.f32 %v391, %v706
  %v760 = vmax.f32 %v394, %v709
  %v761 = vmax.f32 %v399, %v714
  %v762 = vmax.f32 %v402, %v717
  %v763 = vmax.f32 %v407, %v722
  %v764 = vmax.f32 %v410, %v725
  %v765 = vmax.f32 %v415, %v730
  %v766 = vmax.f32 %v418, %v733
  %v767 = vmax.f32 %v423, %v738
  %s768 = scalar_lea.vmem %s0, 400
  %v769 = vld [vmem:[%s768] sm:$0xff]
  %v770 = vld [vmem:[%s768 + $0x8] sm:$0xff]
  %v771 = vld [vmem:[%s768 + $0x10] sm:$0xff]
  %v772 = vld [vmem:[%s768 + $0x18] sm:$0xff]
  %v773 = vld [vmem:[%s768 + $0x20] sm:$0xff]
  %v774 = vld [vmem:[%s768 + $0x28] sm:$0xff]
  %v775 = vld [vmem:[%s768 + $0x30] sm:$0xff]
  %v776 = vld [vmem:[%s768 + $0x38] sm:$0xff]
  %v777 = vld [vmem:[%s768 + $0x40] sm:$0xff]
  %v778 = vld [vmem:[%s768 + $0x48] sm:$0xff]
  %v779 = vld [vmem:[%s768 + $0x50] sm:$0xff]
  %v780 = vld [vmem:[%s768 + $0x58] sm:$0xff]
  %v781 = vld [vmem:[%s768 + $0x60] sm:$0xff]
  %v782 = vld [vmem:[%s768 + $0x68] sm:$0xff]
  %v783 = vld [vmem:[%s768 + $0x70] sm:$0xff]
  %v784 = vld [vmem:[%s768 + $0x78] sm:$0xff]
  %v785 = vld [vmem:[%s768 + $0x80] sm:$0xff]
  %v786 = vld [vmem:[%s768 + $0x88] sm:$0xff]
  %v787 = vld [vmem:[%s768 + $0x90] sm:$0xff]
  %v788 = vld [vmem:[%s768 + $0x98] sm:$0xff]
  %v789 = vld [vmem:[%s768 + $0xa0] sm:$0xff]
  %v790 = vld [vmem:[%s768 + $0xa8] sm:$0xff]
  %v791 = vld [vmem:[%s768 + $0xb0] sm:$0xff]
  %v792 = vld [vmem:[%s768 + $0xb8] sm:$0xff]
  %v793 = vld [vmem:[%s768 + $0xc0] sm:$0xff]
  %v819 = vunpack.c.l.b16 %v769
  %v820 = vunpack.c.h.b16 %v769
  %v821 = vunpack.c.l.b16 %v770
  %v822 = vunpack.c.h.b16 %v770
  %v823 = vunpack.c.l.b16 %v771
  %v824 = vunpack.c.h.b16 %v771
  %v825 = vunpack.c.l.b16 %v772
  %v826 = vunpack.c.h.b16 %v772
  %v827 = vunpack.c.l.b16 %v773
  %v828 = vunpack.c.h.b16 %v773
  %v829 = vunpack.c.l.b16 %v774
  %v830 = vunpack.c.h.b16 %v774
  %v831 = vunpack.c.l.b16 %v775
  %v832 = vunpack.c.h.b16 %v775
  %v833 = vunpack.c.l.b16 %v776
  %v834 = vunpack.c.h.b16 %v776
  %v835 = vunpack.c.l.b16 %v777
  %v836 = vunpack.c.h.b16 %v777
  %v837 = vunpack.c.l.b16 %v778
  %v838 = vunpack.c.h.b16 %v778
  %v839 = vunpack.c.l.b16 %v779
  %v840 = vunpack.c.h.b16 %v779
  %v841 = vunpack.c.l.b16 %v780
  %v842 = vunpack.c.h.b16 %v780
  %v843 = vunpack.c.l.b16 %v781
  %v844 = vunpack.c.h.b16 %v781
  %v845 = vunpack.c.l.b16 %v782
  %v846 = vunpack.c.h.b16 %v782
  %v847 = vunpack.c.l.b16 %v783
  %v848 = vunpack.c.h.b16 %v783
  %v849 = vunpack.c.l.b16 %v784
  %v850 = vunpack.c.h.b16 %v784
  %v851 = vunpack.c.l.b16 %v785
  %v852 = vunpack.c.h.b16 %v785
  %v853 = vunpack.c.l.b16 %v786
  %v854 = vunpack.c.h.b16 %v786
  %v855 = vunpack.c.l.b16 %v787
  %v856 = vunpack.c.h.b16 %v787
  %v857 = vunpack.c.l.b16 %v788
  %v858 = vunpack.c.h.b16 %v788
  %v859 = vunpack.c.l.b16 %v789
  %v860 = vunpack.c.h.b16 %v789
  %v861 = vunpack.c.l.b16 %v790
  %v862 = vunpack.c.h.b16 %v790
  %v863 = vunpack.c.l.b16 %v791
  %v864 = vunpack.c.h.b16 %v791
  %v865 = vunpack.c.l.b16 %v792
  %v866 = vunpack.c.h.b16 %v792
  %v867 = vunpack.c.l.b16 %v793
  %v868 = vunpack.c.h.b16 %v793
  %v869 = vpack.c.b16 %v821, %v819
  %v870 = vpack.c.b16 %v822, %v820
  %v871 = vpack.c.b16 %v825, %v823
  %v872 = vpack.c.b16 %v826, %v824
  %v873 = vpack.c.b16 %v829, %v827
  %v874 = vpack.c.b16 %v830, %v828
  %v875 = vpack.c.b16 %v833, %v831
  %v876 = vpack.c.b16 %v834, %v832
  %v877 = vpack.c.b16 %v837, %v835
  %v878 = vpack.c.b16 %v838, %v836
  %v879 = vpack.c.b16 %v841, %v839
  %v880 = vpack.c.b16 %v842, %v840
  %v881 = vpack.c.b16 %v845, %v843
  %v882 = vpack.c.b16 %v846, %v844
  %v883 = vpack.c.b16 %v849, %v847
  %v884 = vpack.c.b16 %v850, %v848
  %v885 = vpack.c.b16 %v853, %v851
  %v886 = vpack.c.b16 %v854, %v852
  %v887 = vpack.c.b16 %v857, %v855
  %v888 = vpack.c.b16 %v858, %v856
  %v889 = vpack.c.b16 %v861, %v859
  %v890 = vpack.c.b16 %v862, %v860
  %v891 = vpack.c.b16 %v865, %v863
  %v892 = vpack.c.b16 %v866, %v864
  %v893 = vpack.c.b16 %v867, %v867
  %v894 = vpack.c.b16 %v868, %v868
  %v909 = vsel %vm248, %v870, 0
  %v912 = vsel %vm248, %v872, 0
  %v915 = vsel %vm248, %v874, 0
  %v918 = vsel %vm248, %v876, 0
  %v921 = vsel %vm248, %v878, 0
  %v924 = vsel %vm248, %v880, 0
  %v927 = vsel %vm248, %v882, 0
  %v930 = vsel %vm248, %v884, 0
  %v933 = vsel %vm248, %v886, 0
  %v936 = vsel %vm248, %v888, 0
  %v939 = vsel %vm248, %v890, 0
  %v942 = vsel %vm248, %v892, 0
  %v945 = vsel %vm248, %v894, 0
  %947 = vmatprep.subr.bf16.mxu0 0
  %948 = vmatpush1.bf16.msra.mxu0 %v229
  %949 = vmatprep.subr.bf16.mxu0 0
  %950 = vmatpush1.bf16.msra.mxu0 %v230
  %951 = vmatprep.subr.bf16.mxu0 0
  %952 = vmatpush1.bf16.msra.mxu0 %v231
  %953 = vmatprep.subr.bf16.mxu0 0
  %954 = vmatpush1.bf16.msra.mxu0 %v232
  %955 = vmatprep.subr.bf16.mxu0 0
  %956 = vmatpush1.bf16.msra.mxu0 %v233
  %957 = vmatprep.subr.bf16.mxu0 0
  %958 = vmatpush1.bf16.msra.mxu0 %v234
  %959 = vmatprep.subr.bf16.mxu0 0
  %960 = vmatpush1.bf16.msra.mxu0 %v235
  %961 = vmatprep.subr.bf16.mxu0 0
  %962 = vmatpush1.bf16.msra.mxu0 %v236
  %963 = vmatprep.subr.bf16.mxu0 0
  %964 = vmatpush1.bf16.msra.mxu0 %v237
  %965 = vmatprep.subr.bf16.mxu0 0
  %966 = vmatpush1.bf16.msra.mxu0 %v290
  %967 = vmatprep.subr.bf16.mxu0 0
  %968 = vmatpush1.bf16.msra.mxu0 0
  %969 = vmatprep.subr.bf16.mxu0 0
  %970 = vmatpush1.bf16.msra.mxu0 0
  %971 = vmatprep.subr.bf16.mxu0 0
  %972 = vmatpush1.bf16.msra.mxu0 0
  %973 = vmatprep.subr.bf16.mxu0 0
  %974 = vmatpush1.bf16.msra.mxu0 0
  %975 = vmatprep.subr.bf16.mxu0 0
  %976 = vmatpush1.bf16.msra.mxu0 0
  %977 = vmatprep.subr.bf16.mxu0 0
  %978 = vmatpush1.bf16.msra.mxu0 0
  %979 = vmatprep.mubr.bf16.mxu0 %v909
  %980 = vmatmul.mubr.bf16.gmra.mrb[0].mxu0 %v869
  %v981 = vpop.f32.mrb[0].mxu0
  %v982 = vadd.f32 0.0, %v981
  %v983 = vpop.f32.mrb[0].mxu0
  %v984 = vpop.f32.mrb[0].mxu0
  %v985 = vadd.f32 0.0, %v984
  %v986 = vpop.f32.mrb[0].mxu0
  %987 = vmatprep.mubr.bf16.mxu0 %v912
  %988 = vmatmul.mubr.bf16.gmra.mrb[0].mxu0 %v871
  %v989 = vpop.f32.mrb[0].mxu0
  %v990 = vadd.f32 0.0, %v989
  %v991 = vpop.f32.mrb[0].mxu0
  %v992 = vpop.f32.mrb[0].mxu0
  %v993 = vadd.f32 0.0, %v992
  %v994 = vpop.f32.mrb[0].mxu0
  %995 = vmatprep.mubr.bf16.mxu0 %v915
  %996 = vmatmul.mubr.bf16.gmra.mrb[0].mxu0 %v873
  %v997 = vpop.f32.mrb[0].mxu0
  %v998 = vadd.f32 0.0, %v997
  %v999 = vpop.f32.mrb[0].mxu0
  %v1000 = vpop.f32.mrb[0].mxu0
  %v1001 = vadd.f32 0.0, %v1000
  %v1002 = vpop.f32.mrb[0].mxu0
  %1003 = vmatprep.mubr.bf16.mxu0 %v918
  %1004 = vmatmul.mubr.bf16.gmra.mrb[0].mxu0 %v875
  %v1005 = vpop.f32.mrb[0].mxu0
  %v1006 = vadd.f32 0.0, %v1005
  %v1007 = vpop.f32.mrb[0].mxu0
  %v1008 = vpop.f32.mrb[0].mxu0
  %v1009 = vadd.f32 0.0, %v1008
  %v1010 = vpop.f32.mrb[0].mxu0
  %1011 = vmatprep.mubr.bf16.mxu0 %v921
  %1012 = vmatmul.mubr.bf16.gmra.mrb[0].mxu0 %v877
  %v1013 = vpop.f32.mrb[0].mxu0
  %v1014 = vadd.f32 0.0, %v1013
  %v1015 = vpop.f32.mrb[0].mxu0
  %v1016 = vpop.f32.mrb[0].mxu0
  %v1017 = vadd.f32 0.0, %v1016
  %v1018 = vpop.f32.mrb[0].mxu0
  %1019 = vmatprep.mubr.bf16.mxu0 %v924
  %1020 = vmatmul.mubr.bf16.gmra.mrb[0].mxu0 %v879
  %v1021 = vpop.f32.mrb[0].mxu0
  %v1022 = vadd.f32 0.0, %v1021
  %v1023 = vpop.f32.mrb[0].mxu0
  %v1024 = vpop.f32.mrb[0].mxu0
  %v1025 = vadd.f32 0.0, %v1024
  %v1026 = vpop.f32.mrb[0].mxu0
  %1027 = vmatprep.mubr.bf16.mxu0 %v927
  %1028 = vmatmul.mubr.bf16.gmra.mrb[0].mxu0 %v881
  %v1029 = vpop.f32.mrb[0].mxu0
  %v1030 = vadd.f32 0.0, %v1029
  %v1031 = vpop.f32.mrb[0].mxu0
  %v1032 = vpop.f32.mrb[0].mxu0
  %v1033 = vadd.f32 0.0, %v1032
  %v1034 = vpop.f32.mrb[0].mxu0
  %1035 = vmatprep.mubr.bf16.mxu0 %v930
  %1036 = vmatmul.mubr.bf16.gmra.mrb[0].mxu0 %v883
  %v1037 = vpop.f32.mrb[0].mxu0
  %v1038 = vadd.f32 0.0, %v1037
  %v1039 = vpop.f32.mrb[0].mxu0
  %v1040 = vpop.f32.mrb[0].mxu0
  %v1041 = vadd.f32 0.0, %v1040
  %v1042 = vpop.f32.mrb[0].mxu0
  %1043 = vmatprep.mubr.bf16.mxu0 %v933
  %1044 = vmatmul.mubr.bf16.gmra.mrb[0].mxu0 %v885
  %v1045 = vpop.f32.mrb[0].mxu0
  %v1046 = vadd.f32 0.0, %v1045
  %v1047 = vpop.f32.mrb[0].mxu0
  %v1048 = vpop.f32.mrb[0].mxu0
  %v1049 = vadd.f32 0.0, %v1048
  %v1050 = vpop.f32.mrb[0].mxu0
  %1051 = vmatprep.mubr.bf16.mxu0 %v936
  %1052 = vmatmul.mubr.bf16.gmra.mrb[0].mxu0 %v887
  %v1053 = vpop.f32.mrb[0].mxu0
  %v1054 = vadd.f32 0.0, %v1053
  %v1055 = vpop.f32.mrb[0].mxu0
  %v1056 = vpop.f32.mrb[0].mxu0
  %v1057 = vadd.f32 0.0, %v1056
  %v1058 = vpop.f32.mrb[0].mxu0
  %1059 = vmatprep.mubr.bf16.mxu0 %v939
  %1060 = vmatmul.mubr.bf16.gmra.mrb[0].mxu0 %v889
  %v1061 = vpop.f32.mrb[0].mxu0
  %v1062 = vadd.f32 0.0, %v1061
  %v1063 = vpop.f32.mrb[0].mxu0
  %v1064 = vpop.f32.mrb[0].mxu0
  %v1065 = vadd.f32 0.0, %v1064
  %v1066 = vpop.f32.mrb[0].mxu0
  %1067 = vmatprep.mubr.bf16.mxu0 %v942
  %1068 = vmatmul.mubr.bf16.gmra.mrb[0].mxu0 %v891
  %v1069 = vpop.f32.mrb[0].mxu0
  %v1070 = vadd.f32 0.0, %v1069
  %v1071 = vpop.f32.mrb[0].mxu0
  %v1072 = vpop.f32.mrb[0].mxu0
  %v1073 = vadd.f32 0.0, %v1072
  %v1074 = vpop.f32.mrb[0].mxu0
  %1075 = vmatprep.mubr.bf16.mxu0 %v945
  %1076 = vmatmul.mubr.bf16.gmra.mrb[0].mxu0 %v893
  %v1077 = vpop.f32.mrb[0].mxu0
  %v1078 = vadd.f32 0.0, %v1077
  %v1079 = vpop.f32.mrb[0].mxu0
  %v1080 = vpop.f32.mrb[0].mxu0
  %v1081 = vpop.f32.mrb[0].mxu0
  %1082 = vdwg.mxu0
  %v1083 = vmax.f32 %v743, %v982
  %v1084 = vmax.f32 %v744, %v985
  %v1085 = vmax.f32 %v745, %v990
  %v1086 = vmax.f32 %v746, %v993
  %v1087 = vmax.f32 %v747, %v998
  %v1088 = vmax.f32 %v748, %v1001
  %v1089 = vmax.f32 %v749, %v1006
  %v1090 = vmax.f32 %v750, %v1009
  %v1091 = vmax.f32 %v751, %v1014
  %v1092 = vmax.f32 %v752, %v1017
  %v1093 = vmax.f32 %v753, %v1022
  %v1094 = vmax.f32 %v754, %v1025
  %v1095 = vmax.f32 %v755, %v1030
  %v1096 = vmax.f32 %v756, %v1033
  %v1097 = vmax.f32 %v757, %v1038
  %v1098 = vmax.f32 %v758, %v1041
  %v1099 = vmax.f32 %v759, %v1046
  %v1100 = vmax.f32 %v760, %v1049
  %v1101 = vmax.f32 %v761, %v1054
  %v1102 = vmax.f32 %v762, %v1057
  %v1103 = vmax.f32 %v763, %v1062
  %v1104 = vmax.f32 %v764, %v1065
  %v1105 = vmax.f32 %v765, %v1070
  %v1106 = vmax.f32 %v766, %v1073
  %v1107 = vmax.f32 %v767, %v1078
  %s1108 = scalar_lea.vmem %s0, 600
  %v1109 = vld [vmem:[%s1108] sm:$0xff]
  %v1110 = vld [vmem:[%s1108 + $0x8] sm:$0xff]
  %v1111 = vld [vmem:[%s1108 + $0x10] sm:$0xff]
  %v1112 = vld [vmem:[%s1108 + $0x18] sm:$0xff]
  %v1113 = vld [vmem:[%s1108 + $0x20] sm:$0xff]
  %v1114 = vld [vmem:[%s1108 + $0x28] sm:$0xff]
  %v1115 = vld [vmem:[%s1108 + $0x30] sm:$0xff]
  %v1116 = vld [vmem:[%s1108 + $0x38] sm:$0xff]
  %v1117 = vld [vmem:[%s1108 + $0x40] sm:$0xff]
  %v1118 = vld [vmem:[%s1108 + $0x48] sm:$0xff]
  %v1119 = vld [vmem:[%s1108 + $0x50] sm:$0xff]
  %v1120 = vld [vmem:[%s1108 + $0x58] sm:$0xff]
  %v1121 = vld [vmem:[%s1108 + $0x60] sm:$0xff]
  %v1122 = vld [vmem:[%s1108 + $0x68] sm:$0xff]
  %v1123 = vld [vmem:[%s1108 + $0x70] sm:$0xff]
  %v1124 = vld [vmem:[%s1108 + $0x78] sm:$0xff]
  %v1125 = vld [vmem:[%s1108 + $0x80] sm:$0xff]
  %v1126 = vld [vmem:[%s1108 + $0x88] sm:$0xff]
  %v1127 = vld [vmem:[%s1108 + $0x90] sm:$0xff]
  %v1128 = vld [vmem:[%s1108 + $0x98] sm:$0xff]
  %v1129 = vld [vmem:[%s1108 + $0xa0] sm:$0xff]
  %v1130 = vld [vmem:[%s1108 + $0xa8] sm:$0xff]
  %v1131 = vld [vmem:[%s1108 + $0xb0] sm:$0xff]
  %v1132 = vld [vmem:[%s1108 + $0xb8] sm:$0xff]
  %v1133 = vld [vmem:[%s1108 + $0xc0] sm:$0xff]
  %v1159 = vunpack.c.l.b16 %v1109
  %v1160 = vunpack.c.h.b16 %v1109
  %v1161 = vunpack.c.l.b16 %v1110
  %v1162 = vunpack.c.h.b16 %v1110
  %v1163 = vunpack.c.l.b16 %v1111
  %v1164 = vunpack.c.h.b16 %v1111
  %v1165 = vunpack.c.l.b16 %v1112
  %v1166 = vunpack.c.h.b16 %v1112
  %v1167 = vunpack.c.l.b16 %v1113
  %v1168 = vunpack.c.h.b16 %v1113
  %v1169 = vunpack.c.l.b16 %v1114
  %v1170 = vunpack.c.h.b16 %v1114
  %v1171 = vunpack.c.l.b16 %v1115
  %v1172 = vunpack.c.h.b16 %v1115
  %v1173 = vunpack.c.l.b16 %v1116
  %v1174 = vunpack.c.h.b16 %v1116
  %v1175 = vunpack.c.l.b16 %v1117
  %v1176 = vunpack.c.h.b16 %v1117
  %v1177 = vunpack.c.l.b16 %v1118
  %v1178 = vunpack.c.h.b16 %v1118
  %v1179 = vunpack.c.l.b16 %v1119
  %v1180 = vunpack.c.h.b16 %v1119
  %v1181 = vunpack.c.l.b16 %v1120
  %v1182 = vunpack.c.h.b16 %v1120
  %v1183 = vunpack.c.l.b16 %v1121
  %v1184 = vunpack.c.h.b16 %v1121
  %v1185 = vunpack.c.l.b16 %v1122
  %v1186 = vunpack.c.h.b16 %v1122
  %v1187 = vunpack.c.l.b16 %v1123
  %v1188 = vunpack.c.h.b16 %v1123
  %v1189 = vunpack.c.l.b16 %v1124
  %v1190 = vunpack.c.h.b16 %v1124
  %v1191 = vunpack.c.l.b16 %v1125
  %v1192 = vunpack.c.h.b16 %v1125
  %v1193 = vunpack.c.l.b16 %v1126
  %v1194 = vunpack.c.h.b16 %v1126
  %v1195 = vunpack.c.l.b16 %v1127
  %v1196 = vunpack.c.h.b16 %v1127
  %v1197 = vunpack.c.l.b16 %v1128
  %v1198 = vunpack.c.h.b16 %v1128
  %v1199 = vunpack.c.l.b16 %v1129
  %v1200 = vunpack.c.h.b16 %v1129
  %v1201 = vunpack.c.l.b16 %v1130
  %v1202 = vunpack.c.h.b16 %v1130
  %v1203 = vunpack.c.l.b16 %v1131
  %v1204 = vunpack.c.h.b16 %v1131
  %v1205 = vunpack.c.l.b16 %v1132
  %v1206 = vunpack.c.h.b16 %v1132
  %v1207 = vunpack.c.l.b16 %v1133
  %v1208 = vunpack.c.h.b16 %v1133
  %v1209 = vpack.c.b16 %v1161, %v1159
  %v1210 = vpack.c.b16 %v1162, %v1160
  %v1211 = vpack.c.b16 %v1165, %v1163
  %v1212 = vpack.c.b16 %v1166, %v1164
  %v1213 = vpack.c.b16 %v1169, %v1167
  %v1214 = vpack.c.b16 %v1170, %v1168
  %v1215 = vpack.c.b16 %v1173, %v1171
  %v1216 = vpack.c.b16 %v1174, %v1172
  %v1217 = vpack.c.b16 %v1177, %v1175
  %v1218 = vpack.c.b16 %v1178, %v1176
  %v1219 = vpack.c.b16 %v1181, %v1179
  %v1220 = vpack.c.b16 %v1182, %v1180
  %v1221 = vpack.c.b16 %v1185, %v1183
  %v1222 = vpack.c.b16 %v1186, %v1184
  %v1223 = vpack.c.b16 %v1189, %v1187
  %v1224 = vpack.c.b16 %v1190, %v1188
  %v1225 = vpack.c.b16 %v1193, %v1191
  %v1226 = vpack.c.b16 %v1194, %v1192
  %v1227 = vpack.c.b16 %v1197, %v1195
  %v1228 = vpack.c.b16 %v1198, %v1196
  %v1229 = vpack.c.b16 %v1201, %v1199
  %v1230 = vpack.c.b16 %v1202, %v1200
  %v1231 = vpack.c.b16 %v1205, %v1203
  %v1232 = vpack.c.b16 %v1206, %v1204
  %v1233 = vpack.c.b16 %v1207, %v1207
  %v1234 = vpack.c.b16 %v1208, %v1208
  %v1249 = vsel %vm248, %v1210, 0
  %v1252 = vsel %vm248, %v1212, 0
  %v1255 = vsel %vm248, %v1214, 0
  %v1258 = vsel %vm248, %v1216, 0
  %v1261 = vsel %vm248, %v1218, 0
  %v1264 = vsel %vm248, %v1220, 0
  %v1267 = vsel %vm248, %v1222, 0
  %v1270 = vsel %vm248, %v1224, 0
  %v1273 = vsel %vm248, %v1226, 0
  %v1276 = vsel %vm248, %v1228, 0
  %v1279 = vsel %vm248, %v1230, 0
  %v1282 = vsel %vm248, %v1232, 0
  %v1285 = vsel %vm248, %v1234, 0
  %1287 = vmatprep.subr.bf16.mxu0 0
  %1288 = vmatpush1.bf16.msra.mxu0 %v229
  %1289 = vmatprep.subr.bf16.mxu0 0
  %1290 = vmatpush1.bf16.msra.mxu0 %v230
  %1291 = vmatprep.subr.bf16.mxu0 0
  %1292 = vmatpush1.bf16.msra.mxu0 %v231
  %1293 = vmatprep.subr.bf16.mxu0 0
  %1294 = vmatpush1.bf16.msra.mxu0 %v232
  %1295 = vmatprep.subr.bf16.mxu0 0
  %1296 = vmatpush1.bf16.msra.mxu0 %v233
  %1297 = vmatprep.subr.bf16.mxu0 0
  %1298 = vmatpush1.bf16.msra.mxu0 %v234
  %1299 = vmatprep.subr.bf16.mxu0 0
  %1300 = vmatpush1.bf16.msra.mxu0 %v235
  %1301 = vmatprep.subr.bf16.mxu0 0
  %1302 = vmatpush1.bf16.msra.mxu0 %v236
  %1303 = vmatprep.subr.bf16.mxu0 0
  %1304 = vmatpush1.bf16.msra.mxu0 %v237
  %1305 = vmatprep.subr.bf16.mxu0 0
  %1306 = vmatpush1.bf16.msra.mxu0 %v290
  %1307 = vmatprep.subr.bf16.mxu0 0
  %1308 = vmatpush1.bf16.msra.mxu0 0
  %1309 = vmatprep.subr.bf16.mxu0 0
  %1310 = vmatpush1.bf16.msra.mxu0 0
  %1311 = vmatprep.subr.bf16.mxu0 0
  %1312 = vmatpush1.bf16.msra.mxu0 0
  %1313 = vmatprep.subr.bf16.mxu0 0
  %1314 = vmatpush1.bf16.msra.mxu0 0
  %1315 = vmatprep.subr.bf16.mxu0 0
  %1316 = vmatpush1.bf16.msra.mxu0 0
  %1317 = vmatprep.subr.bf16.mxu0 0
  %1318 = vmatpush1.bf16.msra.mxu0 0
  %1319 = vmatprep.mubr.bf16.mxu0 %v1249
  %1320 = vmatmul.mubr.bf16.gmra.mrb[0].mxu0 %v1209
  %v1321 = vpop.f32.mrb[0].mxu0
  %v1322 = vadd.f32 0.0, %v1321
  %v1323 = vpop.f32.mrb[0].mxu0
  %v1324 = vpop.f32.mrb[0].mxu0
  %v1325 = vadd.f32 0.0, %v1324
  %v1326 = vpop.f32.mrb[0].mxu0
  %1327 = vmatprep.mubr.bf16.mxu0 %v1252
  %1328 = vmatmul.mubr.bf16.gmra.mrb[0].mxu0 %v1211
  %v1329 = vpop.f32.mrb[0].mxu0
  %v1330 = vadd.f32 0.0, %v1329
  %v1331 = vpop.f32.mrb[0].mxu0
  %v1332 = vpop.f32.mrb[0].mxu0
  %v1333 = vadd.f32 0.0, %v1332
  %v1334 = vpop.f32.mrb[0].mxu0
  %1335 = vmatprep.mubr.bf16.mxu0 %v1255
  %1336 = vmatmul.mubr.bf16.gmra.mrb[0].mxu0 %v1213
  %v1337 = vpop.f32.mrb[0].mxu0
  %v1338 = vadd.f32 0.0, %v1337
  %v1339 = vpop.f32.mrb[0].mxu0
  %v1340 = vpop.f32.mrb[0].mxu0
  %v1341 = vadd.f32 0.0, %v1340
  %v1342 = vpop.f32.mrb[0].mxu0
  %1343 = vmatprep.mubr.bf16.mxu0 %v1258
  %1344 = vmatmul.mubr.bf16.gmra.mrb[0].mxu0 %v1215
  %v1345 = vpop.f32.mrb[0].mxu0
  %v1346 = vadd.f32 0.0, %v1345
  %v1347 = vpop.f32.mrb[0].mxu0
  %v1348 = vpop.f32.mrb[0].mxu0
  %v1349 = vadd.f32 0.0, %v1348
  %v1350 = vpop.f32.mrb[0].mxu0
  %1351 = vmatprep.mubr.bf16.mxu0 %v1261
  %1352 = vmatmul.mubr.bf16.gmra.mrb[0].mxu0 %v1217
  %v1353 = vpop.f32.mrb[0].mxu0
  %v1354 = vadd.f32 0.0, %v1353
  %v1355 = vpop.f32.mrb[0].mxu0
  %v1356 = vpop.f32.mrb[0].mxu0
  %v1357 = vadd.f32 0.0, %v1356
  %v1358 = vpop.f32.mrb[0].mxu0
  %1359 = vmatprep.mubr.bf16.mxu0 %v1264
  %1360 = vmatmul.mubr.bf16.gmra.mrb[0].mxu0 %v1219
  %v1361 = vpop.f32.mrb[0].mxu0
  %v1362 = vadd.f32 0.0, %v1361
  %v1363 = vpop.f32.mrb[0].mxu0
  %v1364 = vpop.f32.mrb[0].mxu0
  %v1365 = vadd.f32 0.0, %v1364
  %v1366 = vpop.f32.mrb[0].mxu0
  %1367 = vmatprep.mubr.bf16.mxu0 %v1267
  %1368 = vmatmul.mubr.bf16.gmra.mrb[0].mxu0 %v1221
  %v1369 = vpop.f32.mrb[0].mxu0
  %v1370 = vadd.f32 0.0, %v1369
  %v1371 = vpop.f32.mrb[0].mxu0
  %v1372 = vpop.f32.mrb[0].mxu0
  %v1373 = vadd.f32 0.0, %v1372
  %v1374 = vpop.f32.mrb[0].mxu0
  %1375 = vmatprep.mubr.bf16.mxu0 %v1270
  %1376 = vmatmul.mubr.bf16.gmra.mrb[0].mxu0 %v1223
  %v1377 = vpop.f32.mrb[0].mxu0
  %v1378 = vadd.f32 0.0, %v1377
  %v1379 = vpop.f32.mrb[0].mxu0
  %v1380 = vpop.f32.mrb[0].mxu0
  %v1381 = vadd.f32 0.0, %v1380
  %v1382 = vpop.f32.mrb[0].mxu0
  %1383 = vmatprep.mubr.bf16.mxu0 %v1273
  %1384 = vmatmul.mubr.bf16.gmra.mrb[0].mxu0 %v1225
  %v1385 = vpop.f32.mrb[0].mxu0
  %v1386 = vadd.f32 0.0, %v1385
  %v1387 = vpop.f32.mrb[0].mxu0
  %v1388 = vpop.f32.mrb[0].mxu0
  %v1389 = vadd.f32 0.0, %v1388
  %v1390 = vpop.f32.mrb[0].mxu0
  %1391 = vmatprep.mubr.bf16.mxu0 %v1276
  %1392 = vmatmul.mubr.bf16.gmra.mrb[0].mxu0 %v1227
  %v1393 = vpop.f32.mrb[0].mxu0
  %v1394 = vadd.f32 0.0, %v1393
  %v1395 = vpop.f32.mrb[0].mxu0
  %v1396 = vpop.f32.mrb[0].mxu0
  %v1397 = vadd.f32 0.0, %v1396
  %v1398 = vpop.f32.mrb[0].mxu0
  %1399 = vmatprep.mubr.bf16.mxu0 %v1279
  %1400 = vmatmul.mubr.bf16.gmra.mrb[0].mxu0 %v1229
  %v1401 = vpop.f32.mrb[0].mxu0
  %v1402 = vadd.f32 0.0, %v1401
  %v1403 = vpop.f32.mrb[0].mxu0
  %v1404 = vpop.f32.mrb[0].mxu0
  %v1405 = vadd.f32 0.0, %v1404
  %v1406 = vpop.f32.mrb[0].mxu0
  %1407 = vmatprep.mubr.bf16.mxu0 %v1282
  %1408 = vmatmul.mubr.bf16.gmra.mrb[0].mxu0 %v1231
  %v1409 = vpop.f32.mrb[0].mxu0
  %v1410 = vadd.f32 0.0, %v1409
  %v1411 = vpop.f32.mrb[0].mxu0
  %v1412 = vpop.f32.mrb[0].mxu0
  %v1413 = vadd.f32 0.0, %v1412
  %v1414 = vpop.f32.mrb[0].mxu0
  %1415 = vmatprep.mubr.bf16.mxu0 %v1285
  %1416 = vmatmul.mubr.bf16.gmra.mrb[0].mxu0 %v1233
  %v1417 = vpop.f32.mrb[0].mxu0
  %v1418 = vadd.f32 0.0, %v1417
  %v1419 = vpop.f32.mrb[0].mxu0
  %v1420 = vpop.f32.mrb[0].mxu0
  %v1421 = vpop.f32.mrb[0].mxu0
  %1422 = vdwg.mxu0
  %v1423 = vmax.f32 %v1083, %v1322
  %v1424 = vmax.f32 %v1084, %v1325
  %v1425 = vmax.f32 %v1085, %v1330
  %v1426 = vmax.f32 %v1086, %v1333
  %v1427 = vmax.f32 %v1087, %v1338
  %v1428 = vmax.f32 %v1088, %v1341
  %v1429 = vmax.f32 %v1089, %v1346
  %v1430 = vmax.f32 %v1090, %v1349
  %v1431 = vmax.f32 %v1091, %v1354
  %v1432 = vmax.f32 %v1092, %v1357
  %v1433 = vmax.f32 %v1093, %v1362
  %v1434 = vmax.f32 %v1094, %v1365
  %v1435 = vmax.f32 %v1095, %v1370
  %v1436 = vmax.f32 %v1096, %v1373
  %v1437 = vmax.f32 %v1097, %v1378
  %v1438 = vmax.f32 %v1098, %v1381
  %v1439 = vmax.f32 %v1099, %v1386
  %v1440 = vmax.f32 %v1100, %v1389
  %v1441 = vmax.f32 %v1101, %v1394
  %v1442 = vmax.f32 %v1102, %v1397
  %v1443 = vmax.f32 %v1103, %v1402
  %v1444 = vmax.f32 %v1104, %v1405
  %v1445 = vmax.f32 %v1105, %v1410
  %v1446 = vmax.f32 %v1106, %v1413
  %v1447 = vmax.f32 %v1107, %v1418
  %v1448 = vld [vmem:[%s2] sm:$0x1]
  %v1450 = vlaneseq
  %v1451 = vshrl.u32 %v1450, 7
  %v1452 = vsub.s32 0, %v1451
  %v1453 = vrot.slane %v1448, %v1452
  %v1455 = vadd.f32 %v1423, %v1453
  %v1456 = vadd.f32 %v1424, %v1453
  %v1457 = vadd.f32 %v1425, %v1453
  %v1458 = vadd.f32 %v1426, %v1453
  %v1459 = vadd.f32 %v1427, %v1453
  %v1460 = vadd.f32 %v1428, %v1453
  %v1461 = vadd.f32 %v1429, %v1453
  %v1462 = vadd.f32 %v1430, %v1453
  %v1463 = vadd.f32 %v1431, %v1453
  %v1464 = vadd.f32 %v1432, %v1453
  %v1465 = vadd.f32 %v1433, %v1453
  %v1466 = vadd.f32 %v1434, %v1453
  %v1467 = vadd.f32 %v1435, %v1453
  %v1468 = vadd.f32 %v1436, %v1453
  %v1469 = vadd.f32 %v1437, %v1453
  %v1470 = vadd.f32 %v1438, %v1453
  %v1471 = vadd.f32 %v1439, %v1453
  %v1472 = vadd.f32 %v1440, %v1453
  %v1473 = vadd.f32 %v1441, %v1453
  %v1474 = vadd.f32 %v1442, %v1453
  %v1475 = vadd.f32 %v1443, %v1453
  %v1476 = vadd.f32 %v1444, %v1453
  %v1477 = vadd.f32 %v1445, %v1453
  %v1478 = vadd.f32 %v1446, %v1453
  %v1479 = vadd.f32 %v1447, %v1453
  %v1480 = vmax.f32 %v1455, 0.0
  %v1481 = vmax.f32 %v1456, 0.0
  %v1482 = vmax.f32 %v1457, 0.0
  %v1483 = vmax.f32 %v1458, 0.0
  %v1484 = vmax.f32 %v1459, 0.0
  %v1485 = vmax.f32 %v1460, 0.0
  %v1486 = vmax.f32 %v1461, 0.0
  %v1487 = vmax.f32 %v1462, 0.0
  %v1488 = vmax.f32 %v1463, 0.0
  %v1489 = vmax.f32 %v1464, 0.0
  %v1490 = vmax.f32 %v1465, 0.0
  %v1491 = vmax.f32 %v1466, 0.0
  %v1492 = vmax.f32 %v1467, 0.0
  %v1493 = vmax.f32 %v1468, 0.0
  %v1494 = vmax.f32 %v1469, 0.0
  %v1495 = vmax.f32 %v1470, 0.0
  %v1496 = vmax.f32 %v1471, 0.0
  %v1497 = vmax.f32 %v1472, 0.0
  %v1498 = vmax.f32 %v1473, 0.0
  %v1499 = vmax.f32 %v1474, 0.0
  %v1500 = vmax.f32 %v1475, 0.0
  %v1501 = vmax.f32 %v1476, 0.0
  %v1502 = vmax.f32 %v1477, 0.0
  %v1503 = vmax.f32 %v1478, 0.0
  %v1504 = vmax.f32 %v1479, 0.0
  %v1505 = vpack.c.bf16 %v1480, %v1480
  %v1506 = vld [vmem:[%s3] sm:$0xf]
  %v1507 = vld [vmem:[%s3 + $0x4] sm:$0xf]
  %v1508 = vpack.c.bf16 %v1481, %v1481
  %v1509 = vld [vmem:[%s3 + $0x8] sm:$0xf]
  %v1510 = vld [vmem:[%s3 + $0xc] sm:$0xf]
  %v1513 = vunpack.c.l.b16 %v1509
  %v1514 = vunpack.c.l.b16 %v1510
  %v1515 = vpack.c.b16 %v1514, %v1513
  %vm1517 = vcmask 130048
  %v1519 = vsel %vm1517, %v1508, 0
  %1521 = vmatprep.subr.bf16.mxu0 0
  %1522 = vmatpush1.bf16.msra.mxu0 %v1515
  %1523 = vmatprep.subr.bf16.mxu0 0
  %1524 = vmatpush1.bf16.msra.mxu0 0
  %1525 = vmatprep.subr.bf16.mxu0 0
  %1526 = vmatpush1.bf16.msra.mxu0 0
  %1527 = vmatprep.subr.bf16.mxu0 0
  %1528 = vmatpush1.bf16.msra.mxu0 0
  %1529 = vmatprep.subr.bf16.mxu0 0
  %1530 = vmatpush1.bf16.msra.mxu0 0
  %1531 = vmatprep.subr.bf16.mxu0 0
  %1532 = vmatpush1.bf16.msra.mxu0 0
  %1533 = vmatprep.subr.bf16.mxu0 0
  %1534 = vmatpush1.bf16.msra.mxu0 0
  %1535 = vmatprep.subr.bf16.mxu0 0
  %1536 = vmatpush1.bf16.msra.mxu0 0
  %1537 = vmatprep.subr.bf16.mxu0 0
  %1538 = vmatpush1.bf16.msra.mxu0 0
  %1539 = vmatprep.subr.bf16.mxu0 0
  %1540 = vmatpush1.bf16.msra.mxu0 0
  %1541 = vmatprep.subr.bf16.mxu0 0
  %1542 = vmatpush1.bf16.msra.mxu0 0
  %1543 = vmatprep.subr.bf16.mxu0 0
  %1544 = vmatpush1.bf16.msra.mxu0 0
  %1545 = vmatprep.subr.bf16.mxu0 0
  %1546 = vmatpush1.bf16.msra.mxu0 0
  %1547 = vmatprep.subr.bf16.mxu0 0
  %1548 = vmatpush1.bf16.msra.mxu0 0
  %1549 = vmatprep.subr.bf16.mxu0 0
  %1550 = vmatpush1.bf16.msra.mxu0 0
  %1551 = vmatprep.subr.bf16.mxu0 0
  %1552 = vmatpush1.bf16.msra.mxu0 0
  %1553 = vmatprep.mubr.bf16.mxu0 0
  %1554 = vmatmul.mubr.bf16.gmra.mrb[0].mxu0 %v1519
  %v1555 = vpop.f32.mrb[0].mxu0
  %v1556 = vadd.f32 0.0, %v1555
  %v1557 = vpop.f32.mrb[0].mxu0
  %v1558 = vpop.f32.mrb[0].mxu0
  %v1559 = vpop.f32.mrb[0].mxu0
  %1560 = vdwg.mxu0
  %v1561 = vpack.c.bf16 %v1482, %v1482
  %v1562 = vld [vmem:[%s3 + $0x10] sm:$0xf]
  %v1563 = vld [vmem:[%s3 + $0x14] sm:$0xf]
  %v1564 = vpack.c.bf16 %v1483, %v1483
  %v1565 = vld [vmem:[%s3 + $0x18] sm:$0xf]
  %v1566 = vld [vmem:[%s3 + $0x1c] sm:$0xf]
  %v1569 = vunpack.c.l.b16 %v1565
  %v1570 = vunpack.c.l.b16 %v1566
  %v1571 = vpack.c.b16 %v1570, %v1569
  %v1574 = vsel %vm1517, %v1564, 0
  %1576 = vmatprep.subr.bf16.mxu0 0
  %1577 = vmatpush1.bf16.msra.mxu0 %v1571
  %1578 = vmatprep.subr.bf16.mxu0 0
  %1579 = vmatpush1.bf16.msra.mxu0 0
  %1580 = vmatprep.subr.bf16.mxu0 0
  %1581 = vmatpush1.bf16.msra.mxu0 0
  %1582 = vmatprep.subr.bf16.mxu0 0
  %1583 = vmatpush1.bf16.msra.mxu0 0
  %1584 = vmatprep.subr.bf16.mxu0 0
  %1585 = vmatpush1.bf16.msra.mxu0 0
  %1586 = vmatprep.subr.bf16.mxu0 0
  %1587 = vmatpush1.bf16.msra.mxu0 0
  %1588 = vmatprep.subr.bf16.mxu0 0
  %1589 = vmatpush1.bf16.msra.mxu0 0
  %1590 = vmatprep.subr.bf16.mxu0 0
  %1591 = vmatpush1.bf16.msra.mxu0 0
  %1592 = vmatprep.subr.bf16.mxu0 0
  %1593 = vmatpush1.bf16.msra.mxu0 0
  %1594 = vmatprep.subr.bf16.mxu0 0
  %1595 = vmatpush1.bf16.msra.mxu0 0
  %1596 = vmatprep.subr.bf16.mxu0 0
  %1597 = vmatpush1.bf16.msra.mxu0 0
  %1598 = vmatprep.subr.bf16.mxu0 0
  %1599 = vmatpush1.bf16.msra.mxu0 0
  %1600 = vmatprep.subr.bf16.mxu0 0
  %1601 = vmatpush1.bf16.msra.mxu0 0
  %1602 = vmatprep.subr.bf16.mxu0 0
  %1603 = vmatpush1.bf16.msra.mxu0 0
  %1604 = vmatprep.subr.bf16.mxu0 0
  %1605 = vmatpush1.bf16.msra.mxu0 0
  %1606 = vmatprep.subr.bf16.mxu0 0
  %1607 = vmatpush1.bf16.msra.mxu0 0
  %1608 = vmatprep.mubr.bf16.mxu0 0
  %1609 = vmatmul.mubr.bf16.gmra.mrb[0].mxu0 %v1574
  %v1610 = vpop.f32.mrb[0].mxu0
  %v1611 = vadd.f32 0.0, %v1610
  %v1612 = vpop.f32.mrb[0].mxu0
  %v1613 = vpop.f32.mrb[0].mxu0
  %v1614 = vpop.f32.mrb[0].mxu0
  %1615 = vdwg.mxu0
  %v1616 = vpack.c.bf16 %v1484, %v1484
  %v1617 = vld [vmem:[%s3 + $0x20] sm:$0xf]
  %v1618 = vld [vmem:[%s3 + $0x24] sm:$0xf]
  %v1619 = vpack.c.bf16 %v1485, %v1485
  %v1620 = vld [vmem:[%s3 + $0x28] sm:$0xf]
  %v1621 = vld [vmem:[%s3 + $0x2c] sm:$0xf]
  %v1624 = vunpack.c.l.b16 %v1620
  %v1625 = vunpack.c.l.b16 %v1621
  %v1626 = vpack.c.b16 %v1625, %v1624
  %v1629 = vsel %vm1517, %v1619, 0
  %1631 = vmatprep.subr.bf16.mxu0 0
  %1632 = vmatpush1.bf16.msra.mxu0 %v1626
  %1633 = vmatprep.subr.bf16.mxu0 0
  %1634 = vmatpush1.bf16.msra.mxu0 0
  %1635 = vmatprep.subr.bf16.mxu0 0
  %1636 = vmatpush1.bf16.msra.mxu0 0
  %1637 = vmatprep.subr.bf16.mxu0 0
  %1638 = vmatpush1.bf16.msra.mxu0 0
  %1639 = vmatprep.subr.bf16.mxu0 0
  %1640 = vmatpush1.bf16.msra.mxu0 0
  %1641 = vmatprep.subr.bf16.mxu0 0
  %1642 = vmatpush1.bf16.msra.mxu0 0
  %1643 = vmatprep.subr.bf16.mxu0 0
  %1644 = vmatpush1.bf16.msra.mxu0 0
  %1645 = vmatprep.subr.bf16.mxu0 0
  %1646 = vmatpush1.bf16.msra.mxu0 0
  %1647 = vmatprep.subr.bf16.mxu0 0
  %1648 = vmatpush1.bf16.msra.mxu0 0
  %1649 = vmatprep.subr.bf16.mxu0 0
  %1650 = vmatpush1.bf16.msra.mxu0 0
  %1651 = vmatprep.subr.bf16.mxu0 0
  %1652 = vmatpush1.bf16.msra.mxu0 0
  %1653 = vmatprep.subr.bf16.mxu0 0
  %1654 = vmatpush1.bf16.msra.mxu0 0
  %1655 = vmatprep.subr.bf16.mxu0 0
  %1656 = vmatpush1.bf16.msra.mxu0 0
  %1657 = vmatprep.subr.bf16.mxu0 0
  %1658 = vmatpush1.bf16.msra.mxu0 0
  %1659 = vmatprep.subr.bf16.mxu0 0
  %1660 = vmatpush1.bf16.msra.mxu0 0
  %1661 = vmatprep.subr.bf16.mxu0 0
  %1662 = vmatpush1.bf16.msra.mxu0 0
  %1663 = vmatprep.mubr.bf16.mxu0 0
  %1664 = vmatmul.mubr.bf16.gmra.mrb[0].mxu0 %v1629
  %v1665 = vpop.f32.mrb[0].mxu0
  %v1666 = vadd.f32 0.0, %v1665
  %v1667 = vpop.f32.mrb[0].mxu0
  %v1668 = vpop.f32.mrb[0].mxu0
  %v1669 = vpop.f32.mrb[0].mxu0
  %1670 = vdwg.mxu0
  %v1671 = vpack.c.bf16 %v1486, %v1486
  %v1672 = vld [vmem:[%s3 + $0x30] sm:$0xf]
  %v1673 = vld [vmem:[%s3 + $0x34] sm:$0xf]
  %v1674 = vpack.c.bf16 %v1487, %v1487
  %v1675 = vld [vmem:[%s3 + $0x38] sm:$0xf]
  %v1676 = vld [vmem:[%s3 + $0x3c] sm:$0xf]
  %v1679 = vunpack.c.l.b16 %v1675
  %v1680 = vunpack.c.l.b16 %v1676
  %v1681 = vpack.c.b16 %v1680, %v1679
  %v1684 = vsel %vm1517, %v1674, 0
  %1686 = vmatprep.subr.bf16.mxu0 0
  %1687 = vmatpush1.bf16.msra.mxu0 %v1681
  %1688 = vmatprep.subr.bf16.mxu0 0
  %1689 = vmatpush1.bf16.msra.mxu0 0
  %1690 = vmatprep.subr.bf16.mxu0 0
  %1691 = vmatpush1.bf16.msra.mxu0 0
  %1692 = vmatprep.subr.bf16.mxu0 0
  %1693 = vmatpush1.bf16.msra.mxu0 0
  %1694 = vmatprep.subr.bf16.mxu0 0
  %1695 = vmatpush1.bf16.msra.mxu0 0
  %1696 = vmatprep.subr.bf16.mxu0 0
  %1697 = vmatpush1.bf16.msra.mxu0 0
  %1698 = vmatprep.subr.bf16.mxu0 0
  %1699 = vmatpush1.bf16.msra.mxu0 0
  %1700 = vmatprep.subr.bf16.mxu0 0
  %1701 = vmatpush1.bf16.msra.mxu0 0
  %1702 = vmatprep.subr.bf16.mxu0 0
  %1703 = vmatpush1.bf16.msra.mxu0 0
  %1704 = vmatprep.subr.bf16.mxu0 0
  %1705 = vmatpush1.bf16.msra.mxu0 0
  %1706 = vmatprep.subr.bf16.mxu0 0
  %1707 = vmatpush1.bf16.msra.mxu0 0
  %1708 = vmatprep.subr.bf16.mxu0 0
  %1709 = vmatpush1.bf16.msra.mxu0 0
  %1710 = vmatprep.subr.bf16.mxu0 0
  %1711 = vmatpush1.bf16.msra.mxu0 0
  %1712 = vmatprep.subr.bf16.mxu0 0
  %1713 = vmatpush1.bf16.msra.mxu0 0
  %1714 = vmatprep.subr.bf16.mxu0 0
  %1715 = vmatpush1.bf16.msra.mxu0 0
  %1716 = vmatprep.subr.bf16.mxu0 0
  %1717 = vmatpush1.bf16.msra.mxu0 0
  %1718 = vmatprep.mubr.bf16.mxu0 0
  %1719 = vmatmul.mubr.bf16.gmra.mrb[0].mxu0 %v1684
  %v1720 = vpop.f32.mrb[0].mxu0
  %v1721 = vadd.f32 0.0, %v1720
  %v1722 = vpop.f32.mrb[0].mxu0
  %v1723 = vpop.f32.mrb[0].mxu0
  %v1724 = vpop.f32.mrb[0].mxu0
  %1725 = vdwg.mxu0
  %v1726 = vpack.c.bf16 %v1488, %v1488
  %v1727 = vld [vmem:[%s3 + $0x40] sm:$0xf]
  %v1728 = vld [vmem:[%s3 + $0x44] sm:$0xf]
  %v1729 = vpack.c.bf16 %v1489, %v1489
  %v1730 = vld [vmem:[%s3 + $0x48] sm:$0xf]
  %v1731 = vld [vmem:[%s3 + $0x4c] sm:$0xf]
  %v1734 = vunpack.c.l.b16 %v1730
  %v1735 = vunpack.c.l.b16 %v1731
  %v1736 = vpack.c.b16 %v1735, %v1734
  %v1739 = vsel %vm1517, %v1729, 0
  %1741 = vmatprep.subr.bf16.mxu0 0
  %1742 = vmatpush1.bf16.msra.mxu0 %v1736
  %1743 = vmatprep.subr.bf16.mxu0 0
  %1744 = vmatpush1.bf16.msra.mxu0 0
  %1745 = vmatprep.subr.bf16.mxu0 0
  %1746 = vmatpush1.bf16.msra.mxu0 0
  %1747 = vmatprep.subr.bf16.mxu0 0
  %1748 = vmatpush1.bf16.msra.mxu0 0
  %1749 = vmatprep.subr.bf16.mxu0 0
  %1750 = vmatpush1.bf16.msra.mxu0 0
  %1751 = vmatprep.subr.bf16.mxu0 0
  %1752 = vmatpush1.bf16.msra.mxu0 0
  %1753 = vmatprep.subr.bf16.mxu0 0
  %1754 = vmatpush1.bf16.msra.mxu0 0
  %1755 = vmatprep.subr.bf16.mxu0 0
  %1756 = vmatpush1.bf16.msra.mxu0 0
  %1757 = vmatprep.subr.bf16.mxu0 0
  %1758 = vmatpush1.bf16.msra.mxu0 0
  %1759 = vmatprep.subr.bf16.mxu0 0
  %1760 = vmatpush1.bf16.msra.mxu0 0
  %1761 = vmatprep.subr.bf16.mxu0 0
  %1762 = vmatpush1.bf16.msra.mxu0 0
  %1763 = vmatprep.subr.bf16.mxu0 0
  %1764 = vmatpush1.bf16.msra.mxu0 0
  %1765 = vmatprep.subr.bf16.mxu0 0
  %1766 = vmatpush1.bf16.msra.mxu0 0
  %1767 = vmatprep.subr.bf16.mxu0 0
  %1768 = vmatpush1.bf16.msra.mxu0 0
  %1769 = vmatprep.subr.bf16.mxu0 0
  %1770 = vmatpush1.bf16.msra.mxu0 0
  %1771 = vmatprep.subr.bf16.mxu0 0
  %1772 = vmatpush1.bf16.msra.mxu0 0
  %1773 = vmatprep.mubr.bf16.mxu0 0
  %1774 = vmatmul.mubr.bf16.gmra.mrb[0].mxu0 %v1739
  %v1775 = vpop.f32.mrb[0].mxu0
  %v1776 = vadd.f32 0.0, %v1775
  %v1777 = vpop.f32.mrb[0].mxu0
  %v1778 = vpop.f32.mrb[0].mxu0
  %v1779 = vpop.f32.mrb[0].mxu0
  %1780 = vdwg.mxu0
  %v1781 = vpack.c.bf16 %v1490, %v1490
  %v1782 = vld [vmem:[%s3 + $0x50] sm:$0xf]
  %v1783 = vld [vmem:[%s3 + $0x54] sm:$0xf]
  %v1784 = vpack.c.bf16 %v1491, %v1491
  %v1785 = vld [vmem:[%s3 + $0x58] sm:$0xf]
  %v1786 = vld [vmem:[%s3 + $0x5c] sm:$0xf]
  %v1789 = vunpack.c.l.b16 %v1785
  %v1790 = vunpack.c.l.b16 %v1786
  %v1791 = vpack.c.b16 %v1790, %v1789
  %v1794 = vsel %vm1517, %v1784, 0
  %1796 = vmatprep.subr.bf16.mxu0 0
  %1797 = vmatpush1.bf16.msra.mxu0 %v1791
  %1798 = vmatprep.subr.bf16.mxu0 0
  %1799 = vmatpush1.bf16.msra.mxu0 0
  %1800 = vmatprep.subr.bf16.mxu0 0
  %1801 = vmatpush1.bf16.msra.mxu0 0
  %1802 = vmatprep.subr.bf16.mxu0 0
  %1803 = vmatpush1.bf16.msra.mxu0 0
  %1804 = vmatprep.subr.bf16.mxu0 0
  %1805 = vmatpush1.bf16.msra.mxu0 0
  %1806 = vmatprep.subr.bf16.mxu0 0
  %1807 = vmatpush1.bf16.msra.mxu0 0
  %1808 = vmatprep.subr.bf16.mxu0 0
  %1809 = vmatpush1.bf16.msra.mxu0 0
  %1810 = vmatprep.subr.bf16.mxu0 0
  %1811 = vmatpush1.bf16.msra.mxu0 0
  %1812 = vmatprep.subr.bf16.mxu0 0
  %1813 = vmatpush1.bf16.msra.mxu0 0
  %1814 = vmatprep.subr.bf16.mxu0 0
  %1815 = vmatpush1.bf16.msra.mxu0 0
  %1816 = vmatprep.subr.bf16.mxu0 0
  %1817 = vmatpush1.bf16.msra.mxu0 0
  %1818 = vmatprep.subr.bf16.mxu0 0
  %1819 = vmatpush1.bf16.msra.mxu0 0
  %1820 = vmatprep.subr.bf16.mxu0 0
  %1821 = vmatpush1.bf16.msra.mxu0 0
  %1822 = vmatprep.subr.bf16.mxu0 0
  %1823 = vmatpush1.bf16.msra.mxu0 0
  %1824 = vmatprep.subr.bf16.mxu0 0
  %1825 = vmatpush1.bf16.msra.mxu0 0
  %1826 = vmatprep.subr.bf16.mxu0 0
  %1827 = vmatpush1.bf16.msra.mxu0 0
  %1828 = vmatprep.mubr.bf16.mxu0 0
  %1829 = vmatmul.mubr.bf16.gmra.mrb[0].mxu0 %v1794
  %v1830 = vpop.f32.mrb[0].mxu0
  %v1831 = vadd.f32 0.0, %v1830
  %v1832 = vpop.f32.mrb[0].mxu0
  %v1833 = vpop.f32.mrb[0].mxu0
  %v1834 = vpop.f32.mrb[0].mxu0
  %1835 = vdwg.mxu0
  %v1836 = vpack.c.bf16 %v1492, %v1492
  %v1837 = vld [vmem:[%s3 + $0x60] sm:$0xf]
  %v1838 = vld [vmem:[%s3 + $0x64] sm:$0xf]
  %v1839 = vpack.c.bf16 %v1493, %v1493
  %v1840 = vld [vmem:[%s3 + $0x68] sm:$0xf]
  %v1841 = vld [vmem:[%s3 + $0x6c] sm:$0xf]
  %v1844 = vunpack.c.l.b16 %v1840
  %v1845 = vunpack.c.l.b16 %v1841
  %v1846 = vpack.c.b16 %v1845, %v1844
  %v1849 = vsel %vm1517, %v1839, 0
  %1851 = vmatprep.subr.bf16.mxu0 0
  %1852 = vmatpush1.bf16.msra.mxu0 %v1846
  %1853 = vmatprep.subr.bf16.mxu0 0
  %1854 = vmatpush1.bf16.msra.mxu0 0
  %1855 = vmatprep.subr.bf16.mxu0 0
  %1856 = vmatpush1.bf16.msra.mxu0 0
  %1857 = vmatprep.subr.bf16.mxu0 0
  %1858 = vmatpush1.bf16.msra.mxu0 0
  %1859 = vmatprep.subr.bf16.mxu0 0
  %1860 = vmatpush1.bf16.msra.mxu0 0
  %1861 = vmatprep.subr.bf16.mxu0 0
  %1862 = vmatpush1.bf16.msra.mxu0 0
  %1863 = vmatprep.subr.bf16.mxu0 0
  %1864 = vmatpush1.bf16.msra.mxu0 0
  %1865 = vmatprep.subr.bf16.mxu0 0
  %1866 = vmatpush1.bf16.msra.mxu0 0
  %1867 = vmatprep.subr.bf16.mxu0 0
  %1868 = vmatpush1.bf16.msra.mxu0 0
  %1869 = vmatprep.subr.bf16.mxu0 0
  %1870 = vmatpush1.bf16.msra.mxu0 0
  %1871 = vmatprep.subr.bf16.mxu0 0
  %1872 = vmatpush1.bf16.msra.mxu0 0
  %1873 = vmatprep.subr.bf16.mxu0 0
  %1874 = vmatpush1.bf16.msra.mxu0 0
  %1875 = vmatprep.subr.bf16.mxu0 0
  %1876 = vmatpush1.bf16.msra.mxu0 0
  %1877 = vmatprep.subr.bf16.mxu0 0
  %1878 = vmatpush1.bf16.msra.mxu0 0
  %1879 = vmatprep.subr.bf16.mxu0 0
  %1880 = vmatpush1.bf16.msra.mxu0 0
  %1881 = vmatprep.subr.bf16.mxu0 0
  %1882 = vmatpush1.bf16.msra.mxu0 0
  %1883 = vmatprep.mubr.bf16.mxu0 0
  %1884 = vmatmul.mubr.bf16.gmra.mrb[0].mxu0 %v1849
  %v1885 = vpop.f32.mrb[0].mxu0
  %v1886 = vadd.f32 0.0, %v1885
  %v1887 = vpop.f32.mrb[0].mxu0
  %v1888 = vpop.f32.mrb[0].mxu0
  %v1889 = vpop.f32.mrb[0].mxu0
  %1890 = vdwg.mxu0
  %v1891 = vpack.c.bf16 %v1494, %v1494
  %v1892 = vld [vmem:[%s3 + $0x70] sm:$0xf]
  %v1893 = vld [vmem:[%s3 + $0x74] sm:$0xf]
  %v1894 = vpack.c.bf16 %v1495, %v1495
  %v1895 = vld [vmem:[%s3 + $0x78] sm:$0xf]
  %v1896 = vld [vmem:[%s3 + $0x7c] sm:$0xf]
  %v1899 = vunpack.c.l.b16 %v1895
  %v1900 = vunpack.c.l.b16 %v1896
  %v1901 = vpack.c.b16 %v1900, %v1899
  %v1904 = vsel %vm1517, %v1894, 0
  %1906 = vmatprep.subr.bf16.mxu0 0
  %1907 = vmatpush1.bf16.msra.mxu0 %v1901
  %1908 = vmatprep.subr.bf16.mxu0 0
  %1909 = vmatpush1.bf16.msra.mxu0 0
  %1910 = vmatprep.subr.bf16.mxu0 0
  %1911 = vmatpush1.bf16.msra.mxu0 0
  %1912 = vmatprep.subr.bf16.mxu0 0
  %1913 = vmatpush1.bf16.msra.mxu0 0
  %1914 = vmatprep.subr.bf16.mxu0 0
  %1915 = vmatpush1.bf16.msra.mxu0 0
  %1916 = vmatprep.subr.bf16.mxu0 0
  %1917 = vmatpush1.bf16.msra.mxu0 0
  %1918 = vmatprep.subr.bf16.mxu0 0
  %1919 = vmatpush1.bf16.msra.mxu0 0
  %1920 = vmatprep.subr.bf16.mxu0 0
  %1921 = vmatpush1.bf16.msra.mxu0 0
  %1922 = vmatprep.subr.bf16.mxu0 0
  %1923 = vmatpush1.bf16.msra.mxu0 0
  %1924 = vmatprep.subr.bf16.mxu0 0
  %1925 = vmatpush1.bf16.msra.mxu0 0
  %1926 = vmatprep.subr.bf16.mxu0 0
  %1927 = vmatpush1.bf16.msra.mxu0 0
  %1928 = vmatprep.subr.bf16.mxu0 0
  %1929 = vmatpush1.bf16.msra.mxu0 0
  %1930 = vmatprep.subr.bf16.mxu0 0
  %1931 = vmatpush1.bf16.msra.mxu0 0
  %1932 = vmatprep.subr.bf16.mxu0 0
  %1933 = vmatpush1.bf16.msra.mxu0 0
  %1934 = vmatprep.subr.bf16.mxu0 0
  %1935 = vmatpush1.bf16.msra.mxu0 0
  %1936 = vmatprep.subr.bf16.mxu0 0
  %1937 = vmatpush1.bf16.msra.mxu0 0
  %1938 = vmatprep.mubr.bf16.mxu0 0
  %1939 = vmatmul.mubr.bf16.gmra.mrb[0].mxu0 %v1904
  %v1940 = vpop.f32.mrb[0].mxu0
  %v1941 = vadd.f32 0.0, %v1940
  %v1942 = vpop.f32.mrb[0].mxu0
  %v1943 = vpop.f32.mrb[0].mxu0
  %v1944 = vpop.f32.mrb[0].mxu0
  %1945 = vdwg.mxu0
  %v1946 = vpack.c.bf16 %v1496, %v1496
  %v1947 = vld [vmem:[%s3 + $0x80] sm:$0xf]
  %v1948 = vld [vmem:[%s3 + $0x84] sm:$0xf]
  %v1949 = vpack.c.bf16 %v1497, %v1497
  %v1950 = vld [vmem:[%s3 + $0x88] sm:$0xf]
  %v1951 = vld [vmem:[%s3 + $0x8c] sm:$0xf]
  %v1954 = vunpack.c.l.b16 %v1950
  %v1955 = vunpack.c.l.b16 %v1951
  %v1956 = vpack.c.b16 %v1955, %v1954
  %v1959 = vsel %vm1517, %v1949, 0
  %1961 = vmatprep.subr.bf16.mxu0 0
  %1962 = vmatpush1.bf16.msra.mxu0 %v1956
  %1963 = vmatprep.subr.bf16.mxu0 0
  %1964 = vmatpush1.bf16.msra.mxu0 0
  %1965 = vmatprep.subr.bf16.mxu0 0
  %1966 = vmatpush1.bf16.msra.mxu0 0
  %1967 = vmatprep.subr.bf16.mxu0 0
  %1968 = vmatpush1.bf16.msra.mxu0 0
  %1969 = vmatprep.subr.bf16.mxu0 0
  %1970 = vmatpush1.bf16.msra.mxu0 0
  %1971 = vmatprep.subr.bf16.mxu0 0
  %1972 = vmatpush1.bf16.msra.mxu0 0
  %1973 = vmatprep.subr.bf16.mxu0 0
  %1974 = vmatpush1.bf16.msra.mxu0 0
  %1975 = vmatprep.subr.bf16.mxu0 0
  %1976 = vmatpush1.bf16.msra.mxu0 0
  %1977 = vmatprep.subr.bf16.mxu0 0
  %1978 = vmatpush1.bf16.msra.mxu0 0
  %1979 = vmatprep.subr.bf16.mxu0 0
  %1980 = vmatpush1.bf16.msra.mxu0 0
  %1981 = vmatprep.subr.bf16.mxu0 0
  %1982 = vmatpush1.bf16.msra.mxu0 0
  %1983 = vmatprep.subr.bf16.mxu0 0
  %1984 = vmatpush1.bf16.msra.mxu0 0
  %1985 = vmatprep.subr.bf16.mxu0 0
  %1986 = vmatpush1.bf16.msra.mxu0 0
  %1987 = vmatprep.subr.bf16.mxu0 0
  %1988 = vmatpush1.bf16.msra.mxu0 0
  %1989 = vmatprep.subr.bf16.mxu0 0
  %1990 = vmatpush1.bf16.msra.mxu0 0
  %1991 = vmatprep.subr.bf16.mxu0 0
  %1992 = vmatpush1.bf16.msra.mxu0 0
  %1993 = vmatprep.mubr.bf16.mxu0 0
  %1994 = vmatmul.mubr.bf16.gmra.mrb[0].mxu0 %v1959
  %v1995 = vpop.f32.mrb[0].mxu0
  %v1996 = vadd.f32 0.0, %v1995
  %v1997 = vpop.f32.mrb[0].mxu0
  %v1998 = vpop.f32.mrb[0].mxu0
  %v1999 = vpop.f32.mrb[0].mxu0
  %2000 = vdwg.mxu0
  %v2001 = vpack.c.bf16 %v1498, %v1498
  %v2002 = vld [vmem:[%s3 + $0x90] sm:$0xf]
  %v2003 = vld [vmem:[%s3 + $0x94] sm:$0xf]
  %v2004 = vpack.c.bf16 %v1499, %v1499
  %v2005 = vld [vmem:[%s3 + $0x98] sm:$0xf]
  %v2006 = vld [vmem:[%s3 + $0x9c] sm:$0xf]
  %v2009 = vunpack.c.l.b16 %v2005
  %v2010 = vunpack.c.l.b16 %v2006
  %v2011 = vpack.c.b16 %v2010, %v2009
  %v2014 = vsel %vm1517, %v2004, 0
  %2016 = vmatprep.subr.bf16.mxu0 0
  %2017 = vmatpush1.bf16.msra.mxu0 %v2011
  %2018 = vmatprep.subr.bf16.mxu0 0
  %2019 = vmatpush1.bf16.msra.mxu0 0
  %2020 = vmatprep.subr.bf16.mxu0 0
  %2021 = vmatpush1.bf16.msra.mxu0 0
  %2022 = vmatprep.subr.bf16.mxu0 0
  %2023 = vmatpush1.bf16.msra.mxu0 0
  %2024 = vmatprep.subr.bf16.mxu0 0
  %2025 = vmatpush1.bf16.msra.mxu0 0
  %2026 = vmatprep.subr.bf16.mxu0 0
  %2027 = vmatpush1.bf16.msra.mxu0 0
  %2028 = vmatprep.subr.bf16.mxu0 0
  %2029 = vmatpush1.bf16.msra.mxu0 0
  %2030 = vmatprep.subr.bf16.mxu0 0
  %2031 = vmatpush1.bf16.msra.mxu0 0
  %2032 = vmatprep.subr.bf16.mxu0 0
  %2033 = vmatpush1.bf16.msra.mxu0 0
  %2034 = vmatprep.subr.bf16.mxu0 0
  %2035 = vmatpush1.bf16.msra.mxu0 0
  %2036 = vmatprep.subr.bf16.mxu0 0
  %2037 = vmatpush1.bf16.msra.mxu0 0
  %2038 = vmatprep.subr.bf16.mxu0 0
  %2039 = vmatpush1.bf16.msra.mxu0 0
  %2040 = vmatprep.subr.bf16.mxu0 0
  %2041 = vmatpush1.bf16.msra.mxu0 0
  %2042 = vmatprep.subr.bf16.mxu0 0
  %2043 = vmatpush1.bf16.msra.mxu0 0
  %2044 = vmatprep.subr.bf16.mxu0 0
  %2045 = vmatpush1.bf16.msra.mxu0 0
  %2046 = vmatprep.subr.bf16.mxu0 0
  %2047 = vmatpush1.bf16.msra.mxu0 0
  %2048 = vmatprep.mubr.bf16.mxu0 0
  %2049 = vmatmul.mubr.bf16.gmra.mrb[0].mxu0 %v2014
  %v2050 = vpop.f32.mrb[0].mxu0
  %v2051 = vadd.f32 0.0, %v2050
  %v2052 = vpop.f32.mrb[0].mxu0
  %v2053 = vpop.f32.mrb[0].mxu0
  %v2054 = vpop.f32.mrb[0].mxu0
  %2055 = vdwg.mxu0
  %v2056 = vpack.c.bf16 %v1500, %v1500
  %v2057 = vld [vmem:[%s3 + $0xa0] sm:$0xf]
  %v2058 = vld [vmem:[%s3 + $0xa4] sm:$0xf]
  %v2059 = vpack.c.bf16 %v1501, %v1501
  %v2060 = vld [vmem:[%s3 + $0xa8] sm:$0xf]
  %v2061 = vld [vmem:[%s3 + $0xac] sm:$0xf]
  %v2064 = vunpack.c.l.b16 %v2060
  %v2065 = vunpack.c.l.b16 %v2061
  %v2066 = vpack.c.b16 %v2065, %v2064
  %v2069 = vsel %vm1517, %v2059, 0
  %2071 = vmatprep.subr.bf16.mxu0 0
  %2072 = vmatpush1.bf16.msra.mxu0 %v2066
  %2073 = vmatprep.subr.bf16.mxu0 0
  %2074 = vmatpush1.bf16.msra.mxu0 0
  %2075 = vmatprep.subr.bf16.mxu0 0
  %2076 = vmatpush1.bf16.msra.mxu0 0
  %2077 = vmatprep.subr.bf16.mxu0 0
  %2078 = vmatpush1.bf16.msra.mxu0 0
  %2079 = vmatprep.subr.bf16.mxu0 0
  %2080 = vmatpush1.bf16.msra.mxu0 0
  %2081 = vmatprep.subr.bf16.mxu0 0
  %2082 = vmatpush1.bf16.msra.mxu0 0
  %2083 = vmatprep.subr.bf16.mxu0 0
  %2084 = vmatpush1.bf16.msra.mxu0 0
  %2085 = vmatprep.subr.bf16.mxu0 0
  %2086 = vmatpush1.bf16.msra.mxu0 0
  %2087 = vmatprep.subr.bf16.mxu0 0
  %2088 = vmatpush1.bf16.msra.mxu0 0
  %2089 = vmatprep.subr.bf16.mxu0 0
  %2090 = vmatpush1.bf16.msra.mxu0 0
  %2091 = vmatprep.subr.bf16.mxu0 0
  %2092 = vmatpush1.bf16.msra.mxu0 0
  %2093 = vmatprep.subr.bf16.mxu0 0
  %2094 = vmatpush1.bf16.msra.mxu0 0
  %2095 = vmatprep.subr.bf16.mxu0 0
  %2096 = vmatpush1.bf16.msra.mxu0 0
  %2097 = vmatprep.subr.bf16.mxu0 0
  %2098 = vmatpush1.bf16.msra.mxu0 0
  %2099 = vmatprep.subr.bf16.mxu0 0
  %2100 = vmatpush1.bf16.msra.mxu0 0
  %2101 = vmatprep.subr.bf16.mxu0 0
  %2102 = vmatpush1.bf16.msra.mxu0 0
  %2103 = vmatprep.mubr.bf16.mxu0 0
  %2104 = vmatmul.mubr.bf16.gmra.mrb[0].mxu0 %v2069
  %v2105 = vpop.f32.mrb[0].mxu0
  %v2106 = vadd.f32 0.0, %v2105
  %v2107 = vpop.f32.mrb[0].mxu0
  %v2108 = vpop.f32.mrb[0].mxu0
  %v2109 = vpop.f32.mrb[0].mxu0
  %2110 = vdwg.mxu0
  %v2111 = vpack.c.bf16 %v1502, %v1502
  %v2112 = vld [vmem:[%s3 + $0xb0] sm:$0xf]
  %v2113 = vld [vmem:[%s3 + $0xb4] sm:$0xf]
  %v2114 = vpack.c.bf16 %v1503, %v1503
  %v2115 = vld [vmem:[%s3 + $0xb8] sm:$0xf]
  %v2116 = vld [vmem:[%s3 + $0xbc] sm:$0xf]
  %v2119 = vunpack.c.l.b16 %v2115
  %v2120 = vunpack.c.l.b16 %v2116
  %v2121 = vpack.c.b16 %v2120, %v2119
  %v2124 = vsel %vm1517, %v2114, 0
  %2126 = vmatprep.subr.bf16.mxu0 0
  %2127 = vmatpush1.bf16.msra.mxu0 %v2121
  %2128 = vmatprep.subr.bf16.mxu0 0
  %2129 = vmatpush1.bf16.msra.mxu0 0
  %2130 = vmatprep.subr.bf16.mxu0 0
  %2131 = vmatpush1.bf16.msra.mxu0 0
  %2132 = vmatprep.subr.bf16.mxu0 0
  %2133 = vmatpush1.bf16.msra.mxu0 0
  %2134 = vmatprep.subr.bf16.mxu0 0
  %2135 = vmatpush1.bf16.msra.mxu0 0
  %2136 = vmatprep.subr.bf16.mxu0 0
  %2137 = vmatpush1.bf16.msra.mxu0 0
  %2138 = vmatprep.subr.bf16.mxu0 0
  %2139 = vmatpush1.bf16.msra.mxu0 0
  %2140 = vmatprep.subr.bf16.mxu0 0
  %2141 = vmatpush1.bf16.msra.mxu0 0
  %2142 = vmatprep.subr.bf16.mxu0 0
  %2143 = vmatpush1.bf16.msra.mxu0 0
  %2144 = vmatprep.subr.bf16.mxu0 0
  %2145 = vmatpush1.bf16.msra.mxu0 0
  %2146 = vmatprep.subr.bf16.mxu0 0
  %2147 = vmatpush1.bf16.msra.mxu0 0
  %2148 = vmatprep.subr.bf16.mxu0 0
  %2149 = vmatpush1.bf16.msra.mxu0 0
  %2150 = vmatprep.subr.bf16.mxu0 0
  %2151 = vmatpush1.bf16.msra.mxu0 0
  %2152 = vmatprep.subr.bf16.mxu0 0
  %2153 = vmatpush1.bf16.msra.mxu0 0
  %2154 = vmatprep.subr.bf16.mxu0 0
  %2155 = vmatpush1.bf16.msra.mxu0 0
  %2156 = vmatprep.subr.bf16.mxu0 0
  %2157 = vmatpush1.bf16.msra.mxu0 0
  %2158 = vmatprep.mubr.bf16.mxu0 0
  %2159 = vmatmul.mubr.bf16.gmra.mrb[0].mxu0 %v2124
  %v2160 = vpop.f32.mrb[0].mxu0
  %v2161 = vadd.f32 0.0, %v2160
  %v2162 = vpop.f32.mrb[0].mxu0
  %v2163 = vpop.f32.mrb[0].mxu0
  %v2164 = vpop.f32.mrb[0].mxu0
  %2165 = vdwg.mxu0
  %v2166 = vpack.c.bf16 %v1504, %v1504
  %v2167 = vld [vmem:[%s3 + $0xc0] sm:$0xf]
  %v2168 = vld [vmem:[%s3 + $0xc4] sm:$0xf]
  %v2171 = vunpack.c.l.b16 %v2167
  %v2172 = vunpack.c.l.b16 %v2168
  %v2173 = vpack.c.b16 %v2172, %v2171
  %v2176 = vsel %vm1517, %v2166, 0
  %2178 = vmatprep.subr.bf16.mxu0 0
  %2179 = vmatpush1.bf16.msra.mxu0 %v2173
  %2180 = vmatprep.subr.bf16.mxu0 0
  %2181 = vmatpush1.bf16.msra.mxu0 0
  %2182 = vmatprep.subr.bf16.mxu0 0
  %2183 = vmatpush1.bf16.msra.mxu0 0
  %2184 = vmatprep.subr.bf16.mxu0 0
  %2185 = vmatpush1.bf16.msra.mxu0 0
  %2186 = vmatprep.subr.bf16.mxu0 0
  %2187 = vmatpush1.bf16.msra.mxu0 0
  %2188 = vmatprep.subr.bf16.mxu0 0
  %2189 = vmatpush1.bf16.msra.mxu0 0
  %2190 = vmatprep.subr.bf16.mxu0 0
  %2191 = vmatpush1.bf16.msra.mxu0 0
  %2192 = vmatprep.subr.bf16.mxu0 0
  %2193 = vmatpush1.bf16.msra.mxu0 0
  %2194 = vmatprep.subr.bf16.mxu0 0
  %2195 = vmatpush1.bf16.msra.mxu0 0
  %2196 = vmatprep.subr.bf16.mxu0 0
  %2197 = vmatpush1.bf16.msra.mxu0 0
  %2198 = vmatprep.subr.bf16.mxu0 0
  %2199 = vmatpush1.bf16.msra.mxu0 0
  %2200 = vmatprep.subr.bf16.mxu0 0
  %2201 = vmatpush1.bf16.msra.mxu0 0
  %2202 = vmatprep.subr.bf16.mxu0 0
  %2203 = vmatpush1.bf16.msra.mxu0 0
  %2204 = vmatprep.subr.bf16.mxu0 0
  %2205 = vmatpush1.bf16.msra.mxu0 0
  %2206 = vmatprep.subr.bf16.mxu0 0
  %2207 = vmatpush1.bf16.msra.mxu0 0
  %2208 = vmatprep.subr.bf16.mxu0 0
  %2209 = vmatpush1.bf16.msra.mxu0 0
  %2210 = vmatprep.mubr.bf16.mxu0 0
  %2211 = vmatmul.mubr.bf16.gmra.mrb[0].mxu0 %v2176
  %v2212 = vpop.f32.mrb[0].mxu0
  %v2213 = vadd.f32 0.0, %v2212
  %v2214 = vpop.f32.mrb[0].mxu0
  %v2215 = vpop.f32.mrb[0].mxu0
  %v2216 = vpop.f32.mrb[0].mxu0
  %2217 = vdwg.mxu0
  %v2220 = vunpack.c.l.b16 %v1506
  %v2221 = vunpack.c.l.b16 %v1507
  %v2222 = vpack.c.b16 %v2221, %v2220
  %v2225 = vsel %vm1517, %v1505, 0
  %2227 = vmatprep.subr.bf16.mxu0 0
  %2228 = vmatpush1.bf16.msra.mxu0 %v2222
  %2229 = vmatprep.subr.bf16.mxu0 0
  %2230 = vmatpush1.bf16.msra.mxu0 0
  %2231 = vmatprep.subr.bf16.mxu0 0
  %2232 = vmatpush1.bf16.msra.mxu0 0
  %2233 = vmatprep.subr.bf16.mxu0 0
  %2234 = vmatpush1.bf16.msra.mxu0 0
  %2235 = vmatprep.subr.bf16.mxu0 0
  %2236 = vmatpush1.bf16.msra.mxu0 0
  %2237 = vmatprep.subr.bf16.mxu0 0
  %2238 = vmatpush1.bf16.msra.mxu0 0
  %2239 = vmatprep.subr.bf16.mxu0 0
  %2240 = vmatpush1.bf16.msra.mxu0 0
  %2241 = vmatprep.subr.bf16.mxu0 0
  %2242 = vmatpush1.bf16.msra.mxu0 0
  %2243 = vmatprep.subr.bf16.mxu0 0
  %2244 = vmatpush1.bf16.msra.mxu0 0
  %2245 = vmatprep.subr.bf16.mxu0 0
  %2246 = vmatpush1.bf16.msra.mxu0 0
  %2247 = vmatprep.subr.bf16.mxu0 0
  %2248 = vmatpush1.bf16.msra.mxu0 0
  %2249 = vmatprep.subr.bf16.mxu0 0
  %2250 = vmatpush1.bf16.msra.mxu0 0
  %2251 = vmatprep.subr.bf16.mxu0 0
  %2252 = vmatpush1.bf16.msra.mxu0 0
  %2253 = vmatprep.subr.bf16.mxu0 0
  %2254 = vmatpush1.bf16.msra.mxu0 0
  %2255 = vmatprep.subr.bf16.mxu0 0
  %2256 = vmatpush1.bf16.msra.mxu0 0
  %2257 = vmatprep.subr.bf16.mxu0 0
  %2258 = vmatpush1.bf16.msra.mxu0 0
  %2259 = vmatprep.mubr.bf16.mxu0 0
  %2260 = vmatmul.mubr.bf16.gmra.mrb[0].mxu0 %v2225
  %v2261 = vpop.f32.mrb[0].mxu0
  %v2262 = vadd.f32 %v1556, %v2261
  %v2263 = vpop.f32.mrb[0].mxu0
  %v2264 = vpop.f32.mrb[0].mxu0
  %v2265 = vpop.f32.mrb[0].mxu0
  %2266 = vdwg.mxu0
  %v2269 = vunpack.c.l.b16 %v1562
  %v2270 = vunpack.c.l.b16 %v1563
  %v2271 = vpack.c.b16 %v2270, %v2269
  %v2274 = vsel %vm1517, %v1561, 0
  %2276 = vmatprep.subr.bf16.mxu0 0
  %2277 = vmatpush1.bf16.msra.mxu0 %v2271
  %2278 = vmatprep.subr.bf16.mxu0 0
  %2279 = vmatpush1.bf16.msra.mxu0 0
  %2280 = vmatprep.subr.bf16.mxu0 0
  %2281 = vmatpush1.bf16.msra.mxu0 0
  %2282 = vmatprep.subr.bf16.mxu0 0
  %2283 = vmatpush1.bf16.msra.mxu0 0
  %2284 = vmatprep.subr.bf16.mxu0 0
  %2285 = vmatpush1.bf16.msra.mxu0 0
  %2286 = vmatprep.subr.bf16.mxu0 0
  %2287 = vmatpush1.bf16.msra.mxu0 0
  %2288 = vmatprep.subr.bf16.mxu0 0
  %2289 = vmatpush1.bf16.msra.mxu0 0
  %2290 = vmatprep.subr.bf16.mxu0 0
  %2291 = vmatpush1.bf16.msra.mxu0 0
  %2292 = vmatprep.subr.bf16.mxu0 0
  %2293 = vmatpush1.bf16.msra.mxu0 0
  %2294 = vmatprep.subr.bf16.mxu0 0
  %2295 = vmatpush1.bf16.msra.mxu0 0
  %2296 = vmatprep.subr.bf16.mxu0 0
  %2297 = vmatpush1.bf16.msra.mxu0 0
  %2298 = vmatprep.subr.bf16.mxu0 0
  %2299 = vmatpush1.bf16.msra.mxu0 0
  %2300 = vmatprep.subr.bf16.mxu0 0
  %2301 = vmatpush1.bf16.msra.mxu0 0
  %2302 = vmatprep.subr.bf16.mxu0 0
  %2303 = vmatpush1.bf16.msra.mxu0 0
  %2304 = vmatprep.subr.bf16.mxu0 0
  %2305 = vmatpush1.bf16.msra.mxu0 0
  %2306 = vmatprep.subr.bf16.mxu0 0
  %2307 = vmatpush1.bf16.msra.mxu0 0
  %2308 = vmatprep.mubr.bf16.mxu0 0
  %2309 = vmatmul.mubr.bf16.gmra.mrb[0].mxu0 %v2274
  %v2310 = vpop.f32.mrb[0].mxu0
  %v2311 = vadd.f32 %v1611, %v2310
  %v2312 = vpop.f32.mrb[0].mxu0
  %v2313 = vpop.f32.mrb[0].mxu0
  %v2314 = vpop.f32.mrb[0].mxu0
  %2315 = vdwg.mxu0
  %v2318 = vunpack.c.l.b16 %v1617
  %v2319 = vunpack.c.l.b16 %v1618
  %v2320 = vpack.c.b16 %v2319, %v2318
  %v2323 = vsel %vm1517, %v1616, 0
  %2325 = vmatprep.subr.bf16.mxu0 0
  %2326 = vmatpush1.bf16.msra.mxu0 %v2320
  %2327 = vmatprep.subr.bf16.mxu0 0
  %2328 = vmatpush1.bf16.msra.mxu0 0
  %2329 = vmatprep.subr.bf16.mxu0 0
  %2330 = vmatpush1.bf16.msra.mxu0 0
  %2331 = vmatprep.subr.bf16.mxu0 0
  %2332 = vmatpush1.bf16.msra.mxu0 0
  %2333 = vmatprep.subr.bf16.mxu0 0
  %2334 = vmatpush1.bf16.msra.mxu0 0
  %2335 = vmatprep.subr.bf16.mxu0 0
  %2336 = vmatpush1.bf16.msra.mxu0 0
  %2337 = vmatprep.subr.bf16.mxu0 0
  %2338 = vmatpush1.bf16.msra.mxu0 0
  %2339 = vmatprep.subr.bf16.mxu0 0
  %2340 = vmatpush1.bf16.msra.mxu0 0
  %2341 = vmatprep.subr.bf16.mxu0 0
  %2342 = vmatpush1.bf16.msra.mxu0 0
  %2343 = vmatprep.subr.bf16.mxu0 0
  %2344 = vmatpush1.bf16.msra.mxu0 0
  %2345 = vmatprep.subr.bf16.mxu0 0
  %2346 = vmatpush1.bf16.msra.mxu0 0
  %2347 = vmatprep.subr.bf16.mxu0 0
  %2348 = vmatpush1.bf16.msra.mxu0 0
  %2349 = vmatprep.subr.bf16.mxu0 0
  %2350 = vmatpush1.bf16.msra.mxu0 0
  %2351 = vmatprep.subr.bf16.mxu0 0
  %2352 = vmatpush1.bf16.msra.mxu0 0
  %2353 = vmatprep.subr.bf16.mxu0 0
  %2354 = vmatpush1.bf16.msra.mxu0 0
  %2355 = vmatprep.subr.bf16.mxu0 0
  %2356 = vmatpush1.bf16.msra.mxu0 0
  %2357 = vmatprep.mubr.bf16.mxu0 0
  %2358 = vmatmul.mubr.bf16.gmra.mrb[0].mxu0 %v2323
  %v2359 = vpop.f32.mrb[0].mxu0
  %v2360 = vadd.f32 %v1666, %v2359
  %v2361 = vpop.f32.mrb[0].mxu0
  %v2362 = vpop.f32.mrb[0].mxu0
  %v2363 = vpop.f32.mrb[0].mxu0
  %2364 = vdwg.mxu0
  %v2367 = vunpack.c.l.b16 %v1672
  %v2368 = vunpack.c.l.b16 %v1673
  %v2369 = vpack.c.b16 %v2368, %v2367
  %v2372 = vsel %vm1517, %v1671, 0
  %2374 = vmatprep.subr.bf16.mxu0 0
  %2375 = vmatpush1.bf16.msra.mxu0 %v2369
  %2376 = vmatprep.subr.bf16.mxu0 0
  %2377 = vmatpush1.bf16.msra.mxu0 0
  %2378 = vmatprep.subr.bf16.mxu0 0
  %2379 = vmatpush1.bf16.msra.mxu0 0
  %2380 = vmatprep.subr.bf16.mxu0 0
  %2381 = vmatpush1.bf16.msra.mxu0 0
  %2382 = vmatprep.subr.bf16.mxu0 0
  %2383 = vmatpush1.bf16.msra.mxu0 0
  %2384 = vmatprep.subr.bf16.mxu0 0
  %2385 = vmatpush1.bf16.msra.mxu0 0
  %2386 = vmatprep.subr.bf16.mxu0 0
  %2387 = vmatpush1.bf16.msra.mxu0 0
  %2388 = vmatprep.subr.bf16.mxu0 0
  %2389 = vmatpush1.bf16.msra.mxu0 0
  %2390 = vmatprep.subr.bf16.mxu0 0
  %2391 = vmatpush1.bf16.msra.mxu0 0
  %2392 = vmatprep.subr.bf16.mxu0 0
  %2393 = vmatpush1.bf16.msra.mxu0 0
  %2394 = vmatprep.subr.bf16.mxu0 0
  %2395 = vmatpush1.bf16.msra.mxu0 0
  %2396 = vmatprep.subr.bf16.mxu0 0
  %2397 = vmatpush1.bf16.msra.mxu0 0
  %2398 = vmatprep.subr.bf16.mxu0 0
  %2399 = vmatpush1.bf16.msra.mxu0 0
  %2400 = vmatprep.subr.bf16.mxu0 0
  %2401 = vmatpush1.bf16.msra.mxu0 0
  %2402 = vmatprep.subr.bf16.mxu0 0
  %2403 = vmatpush1.bf16.msra.mxu0 0
  %2404 = vmatprep.subr.bf16.mxu0 0
  %2405 = vmatpush1.bf16.msra.mxu0 0
  %2406 = vmatprep.mubr.bf16.mxu0 0
  %2407 = vmatmul.mubr.bf16.gmra.mrb[0].mxu0 %v2372
  %v2408 = vpop.f32.mrb[0].mxu0
  %v2409 = vadd.f32 %v1721, %v2408
  %v2410 = vpop.f32.mrb[0].mxu0
  %v2411 = vpop.f32.mrb[0].mxu0
  %v2412 = vpop.f32.mrb[0].mxu0
  %2413 = vdwg.mxu0
  %v2416 = vunpack.c.l.b16 %v1727
  %v2417 = vunpack.c.l.b16 %v1728
  %v2418 = vpack.c.b16 %v2417, %v2416
  %v2421 = vsel %vm1517, %v1726, 0
  %2423 = vmatprep.subr.bf16.mxu0 0
  %2424 = vmatpush1.bf16.msra.mxu0 %v2418
  %2425 = vmatprep.subr.bf16.mxu0 0
  %2426 = vmatpush1.bf16.msra.mxu0 0
  %2427 = vmatprep.subr.bf16.mxu0 0
  %2428 = vmatpush1.bf16.msra.mxu0 0
  %2429 = vmatprep.subr.bf16.mxu0 0
  %2430 = vmatpush1.bf16.msra.mxu0 0
  %2431 = vmatprep.subr.bf16.mxu0 0
  %2432 = vmatpush1.bf16.msra.mxu0 0
  %2433 = vmatprep.subr.bf16.mxu0 0
  %2434 = vmatpush1.bf16.msra.mxu0 0
  %2435 = vmatprep.subr.bf16.mxu0 0
  %2436 = vmatpush1.bf16.msra.mxu0 0
  %2437 = vmatprep.subr.bf16.mxu0 0
  %2438 = vmatpush1.bf16.msra.mxu0 0
  %2439 = vmatprep.subr.bf16.mxu0 0
  %2440 = vmatpush1.bf16.msra.mxu0 0
  %2441 = vmatprep.subr.bf16.mxu0 0
  %2442 = vmatpush1.bf16.msra.mxu0 0
  %2443 = vmatprep.subr.bf16.mxu0 0
  %2444 = vmatpush1.bf16.msra.mxu0 0
  %2445 = vmatprep.subr.bf16.mxu0 0
  %2446 = vmatpush1.bf16.msra.mxu0 0
  %2447 = vmatprep.subr.bf16.mxu0 0
  %2448 = vmatpush1.bf16.msra.mxu0 0
  %2449 = vmatprep.subr.bf16.mxu0 0
  %2450 = vmatpush1.bf16.msra.mxu0 0
  %2451 = vmatprep.subr.bf16.mxu0 0
  %2452 = vmatpush1.bf16.msra.mxu0 0
  %2453 = vmatprep.subr.bf16.mxu0 0
  %2454 = vmatpush1.bf16.msra.mxu0 0
  %2455 = vmatprep.mubr.bf16.mxu0 0
  %2456 = vmatmul.mubr.bf16.gmra.mrb[0].mxu0 %v2421
  %v2457 = vpop.f32.mrb[0].mxu0
  %v2458 = vadd.f32 %v1776, %v2457
  %v2459 = vpop.f32.mrb[0].mxu0
  %v2460 = vpop.f32.mrb[0].mxu0
  %v2461 = vpop.f32.mrb[0].mxu0
  %2462 = vdwg.mxu0
  %v2465 = vunpack.c.l.b16 %v1782
  %v2466 = vunpack.c.l.b16 %v1783
  %v2467 = vpack.c.b16 %v2466, %v2465
  %v2470 = vsel %vm1517, %v1781, 0
  %2472 = vmatprep.subr.bf16.mxu0 0
  %2473 = vmatpush1.bf16.msra.mxu0 %v2467
  %2474 = vmatprep.subr.bf16.mxu0 0
  %2475 = vmatpush1.bf16.msra.mxu0 0
  %2476 = vmatprep.subr.bf16.mxu0 0
  %2477 = vmatpush1.bf16.msra.mxu0 0
  %2478 = vmatprep.subr.bf16.mxu0 0
  %2479 = vmatpush1.bf16.msra.mxu0 0
  %2480 = vmatprep.subr.bf16.mxu0 0
  %2481 = vmatpush1.bf16.msra.mxu0 0
  %2482 = vmatprep.subr.bf16.mxu0 0
  %2483 = vmatpush1.bf16.msra.mxu0 0
  %2484 = vmatprep.subr.bf16.mxu0 0
  %2485 = vmatpush1.bf16.msra.mxu0 0
  %2486 = vmatprep.subr.bf16.mxu0 0
  %2487 = vmatpush1.bf16.msra.mxu0 0
  %2488 = vmatprep.subr.bf16.mxu0 0
  %2489 = vmatpush1.bf16.msra.mxu0 0
  %2490 = vmatprep.subr.bf16.mxu0 0
  %2491 = vmatpush1.bf16.msra.mxu0 0
  %2492 = vmatprep.subr.bf16.mxu0 0
  %2493 = vmatpush1.bf16.msra.mxu0 0
  %2494 = vmatprep.subr.bf16.mxu0 0
  %2495 = vmatpush1.bf16.msra.mxu0 0
  %2496 = vmatprep.subr.bf16.mxu0 0
  %2497 = vmatpush1.bf16.msra.mxu0 0
  %2498 = vmatprep.subr.bf16.mxu0 0
  %2499 = vmatpush1.bf16.msra.mxu0 0
  %2500 = vmatprep.subr.bf16.mxu0 0
  %2501 = vmatpush1.bf16.msra.mxu0 0
  %2502 = vmatprep.subr.bf16.mxu0 0
  %2503 = vmatpush1.bf16.msra.mxu0 0
  %2504 = vmatprep.mubr.bf16.mxu0 0
  %2505 = vmatmul.mubr.bf16.gmra.mrb[0].mxu0 %v2470
  %v2506 = vpop.f32.mrb[0].mxu0
  %v2507 = vadd.f32 %v1831, %v2506
  %v2508 = vpop.f32.mrb[0].mxu0
  %v2509 = vpop.f32.mrb[0].mxu0
  %v2510 = vpop.f32.mrb[0].mxu0
  %2511 = vdwg.mxu0
  %v2514 = vunpack.c.l.b16 %v1837
  %v2515 = vunpack.c.l.b16 %v1838
  %v2516 = vpack.c.b16 %v2515, %v2514
  %v2519 = vsel %vm1517, %v1836, 0
  %2521 = vmatprep.subr.bf16.mxu0 0
  %2522 = vmatpush1.bf16.msra.mxu0 %v2516
  %2523 = vmatprep.subr.bf16.mxu0 0
  %2524 = vmatpush1.bf16.msra.mxu0 0
  %2525 = vmatprep.subr.bf16.mxu0 0
  %2526 = vmatpush1.bf16.msra.mxu0 0
  %2527 = vmatprep.subr.bf16.mxu0 0
  %2528 = vmatpush1.bf16.msra.mxu0 0
  %2529 = vmatprep.subr.bf16.mxu0 0
  %2530 = vmatpush1.bf16.msra.mxu0 0
  %2531 = vmatprep.subr.bf16.mxu0 0
  %2532 = vmatpush1.bf16.msra.mxu0 0
  %2533 = vmatprep.subr.bf16.mxu0 0
  %2534 = vmatpush1.bf16.msra.mxu0 0
  %2535 = vmatprep.subr.bf16.mxu0 0
  %2536 = vmatpush1.bf16.msra.mxu0 0
  %2537 = vmatprep.subr.bf16.mxu0 0
  %2538 = vmatpush1.bf16.msra.mxu0 0
  %2539 = vmatprep.subr.bf16.mxu0 0
  %2540 = vmatpush1.bf16.msra.mxu0 0
  %2541 = vmatprep.subr.bf16.mxu0 0
  %2542 = vmatpush1.bf16.msra.mxu0 0
  %2543 = vmatprep.subr.bf16.mxu0 0
  %2544 = vmatpush1.bf16.msra.mxu0 0
  %2545 = vmatprep.subr.bf16.mxu0 0
  %2546 = vmatpush1.bf16.msra.mxu0 0
  %2547 = vmatprep.subr.bf16.mxu0 0
  %2548 = vmatpush1.bf16.msra.mxu0 0
  %2549 = vmatprep.subr.bf16.mxu0 0
  %2550 = vmatpush1.bf16.msra.mxu0 0
  %2551 = vmatprep.subr.bf16.mxu0 0
  %2552 = vmatpush1.bf16.msra.mxu0 0
  %2553 = vmatprep.mubr.bf16.mxu0 0
  %2554 = vmatmul.mubr.bf16.gmra.mrb[0].mxu0 %v2519
  %v2555 = vpop.f32.mrb[0].mxu0
  %v2556 = vadd.f32 %v1886, %v2555
  %v2557 = vpop.f32.mrb[0].mxu0
  %v2558 = vpop.f32.mrb[0].mxu0
  %v2559 = vpop.f32.mrb[0].mxu0
  %2560 = vdwg.mxu0
  %v2563 = vunpack.c.l.b16 %v1892
  %v2564 = vunpack.c.l.b16 %v1893
  %v2565 = vpack.c.b16 %v2564, %v2563
  %v2568 = vsel %vm1517, %v1891, 0
  %2570 = vmatprep.subr.bf16.mxu0 0
  %2571 = vmatpush1.bf16.msra.mxu0 %v2565
  %2572 = vmatprep.subr.bf16.mxu0 0
  %2573 = vmatpush1.bf16.msra.mxu0 0
  %2574 = vmatprep.subr.bf16.mxu0 0
  %2575 = vmatpush1.bf16.msra.mxu0 0
  %2576 = vmatprep.subr.bf16.mxu0 0
  %2577 = vmatpush1.bf16.msra.mxu0 0
  %2578 = vmatprep.subr.bf16.mxu0 0
  %2579 = vmatpush1.bf16.msra.mxu0 0
  %2580 = vmatprep.subr.bf16.mxu0 0
  %2581 = vmatpush1.bf16.msra.mxu0 0
  %2582 = vmatprep.subr.bf16.mxu0 0
  %2583 = vmatpush1.bf16.msra.mxu0 0
  %2584 = vmatprep.subr.bf16.mxu0 0
  %2585 = vmatpush1.bf16.msra.mxu0 0
  %2586 = vmatprep.subr.bf16.mxu0 0
  %2587 = vmatpush1.bf16.msra.mxu0 0
  %2588 = vmatprep.subr.bf16.mxu0 0
  %2589 = vmatpush1.bf16.msra.mxu0 0
  %2590 = vmatprep.subr.bf16.mxu0 0
  %2591 = vmatpush1.bf16.msra.mxu0 0
  %2592 = vmatprep.subr.bf16.mxu0 0
  %2593 = vmatpush1.bf16.msra.mxu0 0
  %2594 = vmatprep.subr.bf16.mxu0 0
  %2595 = vmatpush1.bf16.msra.mxu0 0
  %2596 = vmatprep.subr.bf16.mxu0 0
  %2597 = vmatpush1.bf16.msra.mxu0 0
  %2598 = vmatprep.subr.bf16.mxu0 0
  %2599 = vmatpush1.bf16.msra.mxu0 0
  %2600 = vmatprep.subr.bf16.mxu0 0
  %2601 = vmatpush1.bf16.msra.mxu0 0
  %2602 = vmatprep.mubr.bf16.mxu0 0
  %2603 = vmatmul.mubr.bf16.gmra.mrb[0].mxu0 %v2568
  %v2604 = vpop.f32.mrb[0].mxu0
  %v2605 = vadd.f32 %v1941, %v2604
  %v2606 = vpop.f32.mrb[0].mxu0
  %v2607 = vpop.f32.mrb[0].mxu0
  %v2608 = vpop.f32.mrb[0].mxu0
  %2609 = vdwg.mxu0
  %v2612 = vunpack.c.l.b16 %v1947
  %v2613 = vunpack.c.l.b16 %v1948
  %v2614 = vpack.c.b16 %v2613, %v2612
  %v2617 = vsel %vm1517, %v1946, 0
  %2619 = vmatprep.subr.bf16.mxu0 0
  %2620 = vmatpush1.bf16.msra.mxu0 %v2614
  %2621 = vmatprep.subr.bf16.mxu0 0
  %2622 = vmatpush1.bf16.msra.mxu0 0
  %2623 = vmatprep.subr.bf16.mxu0 0
  %2624 = vmatpush1.bf16.msra.mxu0 0
  %2625 = vmatprep.subr.bf16.mxu0 0
  %2626 = vmatpush1.bf16.msra.mxu0 0
  %2627 = vmatprep.subr.bf16.mxu0 0
  %2628 = vmatpush1.bf16.msra.mxu0 0
  %2629 = vmatprep.subr.bf16.mxu0 0
  %2630 = vmatpush1.bf16.msra.mxu0 0
  %2631 = vmatprep.subr.bf16.mxu0 0
  %2632 = vmatpush1.bf16.msra.mxu0 0
  %2633 = vmatprep.subr.bf16.mxu0 0
  %2634 = vmatpush1.bf16.msra.mxu0 0
  %2635 = vmatprep.subr.bf16.mxu0 0
  %2636 = vmatpush1.bf16.msra.mxu0 0
  %2637 = vmatprep.subr.bf16.mxu0 0
  %2638 = vmatpush1.bf16.msra.mxu0 0
  %2639 = vmatprep.subr.bf16.mxu0 0
  %2640 = vmatpush1.bf16.msra.mxu0 0
  %2641 = vmatprep.subr.bf16.mxu0 0
  %2642 = vmatpush1.bf16.msra.mxu0 0
  %2643 = vmatprep.subr.bf16.mxu0 0
  %2644 = vmatpush1.bf16.msra.mxu0 0
  %2645 = vmatprep.subr.bf16.mxu0 0
  %2646 = vmatpush1.bf16.msra.mxu0 0
  %2647 = vmatprep.subr.bf16.mxu0 0
  %2648 = vmatpush1.bf16.msra.mxu0 0
  %2649 = vmatprep.subr.bf16.mxu0 0
  %2650 = vmatpush1.bf16.msra.mxu0 0
  %2651 = vmatprep.mubr.bf16.mxu0 0
  %2652 = vmatmul.mubr.bf16.gmra.mrb[0].mxu0 %v2617
  %v2653 = vpop.f32.mrb[0].mxu0
  %v2654 = vadd.f32 %v1996, %v2653
  %v2655 = vpop.f32.mrb[0].mxu0
  %v2656 = vpop.f32.mrb[0].mxu0
  %v2657 = vpop.f32.mrb[0].mxu0
  %2658 = vdwg.mxu0
  %v2661 = vunpack.c.l.b16 %v2002
  %v2662 = vunpack.c.l.b16 %v2003
  %v2663 = vpack.c.b16 %v2662, %v2661
  %v2666 = vsel %vm1517, %v2001, 0
  %2668 = vmatprep.subr.bf16.mxu0 0
  %2669 = vmatpush1.bf16.msra.mxu0 %v2663
  %2670 = vmatprep.subr.bf16.mxu0 0
  %2671 = vmatpush1.bf16.msra.mxu0 0
  %2672 = vmatprep.subr.bf16.mxu0 0
  %2673 = vmatpush1.bf16.msra.mxu0 0
  %2674 = vmatprep.subr.bf16.mxu0 0
  %2675 = vmatpush1.bf16.msra.mxu0 0
  %2676 = vmatprep.subr.bf16.mxu0 0
  %2677 = vmatpush1.bf16.msra.mxu0 0
  %2678 = vmatprep.subr.bf16.mxu0 0
  %2679 = vmatpush1.bf16.msra.mxu0 0
  %2680 = vmatprep.subr.bf16.mxu0 0
  %2681 = vmatpush1.bf16.msra.mxu0 0
  %2682 = vmatprep.subr.bf16.mxu0 0
  %2683 = vmatpush1.bf16.msra.mxu0 0
  %2684 = vmatprep.subr.bf16.mxu0 0
  %2685 = vmatpush1.bf16.msra.mxu0 0
  %2686 = vmatprep.subr.bf16.mxu0 0
  %2687 = vmatpush1.bf16.msra.mxu0 0
  %2688 = vmatprep.subr.bf16.mxu0 0
  %2689 = vmatpush1.bf16.msra.mxu0 0
  %2690 = vmatprep.subr.bf16.mxu0 0
  %2691 = vmatpush1.bf16.msra.mxu0 0
  %2692 = vmatprep.subr.bf16.mxu0 0
  %2693 = vmatpush1.bf16.msra.mxu0 0
  %2694 = vmatprep.subr.bf16.mxu0 0
  %2695 = vmatpush1.bf16.msra.mxu0 0
  %2696 = vmatprep.subr.bf16.mxu0 0
  %2697 = vmatpush1.bf16.msra.mxu0 0
  %2698 = vmatprep.subr.bf16.mxu0 0
  %2699 = vmatpush1.bf16.msra.mxu0 0
  %2700 = vmatprep.mubr.bf16.mxu0 0
  %2701 = vmatmul.mubr.bf16.gmra.mrb[0].mxu0 %v2666
  %v2702 = vpop.f32.mrb[0].mxu0
  %v2703 = vadd.f32 %v2051, %v2702
  %v2704 = vpop.f32.mrb[0].mxu0
  %v2705 = vpop.f32.mrb[0].mxu0
  %v2706 = vpop.f32.mrb[0].mxu0
  %2707 = vdwg.mxu0
  %v2710 = vunpack.c.l.b16 %v2057
  %v2711 = vunpack.c.l.b16 %v2058
  %v2712 = vpack.c.b16 %v2711, %v2710
  %v2715 = vsel %vm1517, %v2056, 0
  %2717 = vmatprep.subr.bf16.mxu0 0
  %2718 = vmatpush1.bf16.msra.mxu0 %v2712
  %2719 = vmatprep.subr.bf16.mxu0 0
  %2720 = vmatpush1.bf16.msra.mxu0 0
  %2721 = vmatprep.subr.bf16.mxu0 0
  %2722 = vmatpush1.bf16.msra.mxu0 0
  %2723 = vmatprep.subr.bf16.mxu0 0
  %2724 = vmatpush1.bf16.msra.mxu0 0
  %2725 = vmatprep.subr.bf16.mxu0 0
  %2726 = vmatpush1.bf16.msra.mxu0 0
  %2727 = vmatprep.subr.bf16.mxu0 0
  %2728 = vmatpush1.bf16.msra.mxu0 0
  %2729 = vmatprep.subr.bf16.mxu0 0
  %2730 = vmatpush1.bf16.msra.mxu0 0
  %2731 = vmatprep.subr.bf16.mxu0 0
  %2732 = vmatpush1.bf16.msra.mxu0 0
  %2733 = vmatprep.subr.bf16.mxu0 0
  %2734 = vmatpush1.bf16.msra.mxu0 0
  %2735 = vmatprep.subr.bf16.mxu0 0
  %2736 = vmatpush1.bf16.msra.mxu0 0
  %2737 = vmatprep.subr.bf16.mxu0 0
  %2738 = vmatpush1.bf16.msra.mxu0 0
  %2739 = vmatprep.subr.bf16.mxu0 0
  %2740 = vmatpush1.bf16.msra.mxu0 0
  %2741 = vmatprep.subr.bf16.mxu0 0
  %2742 = vmatpush1.bf16.msra.mxu0 0
  %2743 = vmatprep.subr.bf16.mxu0 0
  %2744 = vmatpush1.bf16.msra.mxu0 0
  %2745 = vmatprep.subr.bf16.mxu0 0
  %2746 = vmatpush1.bf16.msra.mxu0 0
  %2747 = vmatprep.subr.bf16.mxu0 0
  %2748 = vmatpush1.bf16.msra.mxu0 0
  %2749 = vmatprep.mubr.bf16.mxu0 0
  %2750 = vmatmul.mubr.bf16.gmra.mrb[0].mxu0 %v2715
  %v2751 = vpop.f32.mrb[0].mxu0
  %v2752 = vadd.f32 %v2106, %v2751
  %v2753 = vpop.f32.mrb[0].mxu0
  %v2754 = vpop.f32.mrb[0].mxu0
  %v2755 = vpop.f32.mrb[0].mxu0
  %2756 = vdwg.mxu0
  %v2759 = vunpack.c.l.b16 %v2112
  %v2760 = vunpack.c.l.b16 %v2113
  %v2761 = vpack.c.b16 %v2760, %v2759
  %v2764 = vsel %vm1517, %v2111, 0
  %2766 = vmatprep.subr.bf16.mxu0 0
  %2767 = vmatpush1.bf16.msra.mxu0 %v2761
  %2768 = vmatprep.subr.bf16.mxu0 0
  %2769 = vmatpush1.bf16.msra.mxu0 0
  %2770 = vmatprep.subr.bf16.mxu0 0
  %2771 = vmatpush1.bf16.msra.mxu0 0
  %2772 = vmatprep.subr.bf16.mxu0 0
  %2773 = vmatpush1.bf16.msra.mxu0 0
  %2774 = vmatprep.subr.bf16.mxu0 0
  %2775 = vmatpush1.bf16.msra.mxu0 0
  %2776 = vmatprep.subr.bf16.mxu0 0
  %2777 = vmatpush1.bf16.msra.mxu0 0
  %2778 = vmatprep.subr.bf16.mxu0 0
  %2779 = vmatpush1.bf16.msra.mxu0 0
  %2780 = vmatprep.subr.bf16.mxu0 0
  %2781 = vmatpush1.bf16.msra.mxu0 0
  %2782 = vmatprep.subr.bf16.mxu0 0
  %2783 = vmatpush1.bf16.msra.mxu0 0
  %2784 = vmatprep.subr.bf16.mxu0 0
  %2785 = vmatpush1.bf16.msra.mxu0 0
  %2786 = vmatprep.subr.bf16.mxu0 0
  %2787 = vmatpush1.bf16.msra.mxu0 0
  %2788 = vmatprep.subr.bf16.mxu0 0
  %2789 = vmatpush1.bf16.msra.mxu0 0
  %2790 = vmatprep.subr.bf16.mxu0 0
  %2791 = vmatpush1.bf16.msra.mxu0 0
  %2792 = vmatprep.subr.bf16.mxu0 0
  %2793 = vmatpush1.bf16.msra.mxu0 0
  %2794 = vmatprep.subr.bf16.mxu0 0
  %2795 = vmatpush1.bf16.msra.mxu0 0
  %2796 = vmatprep.subr.bf16.mxu0 0
  %2797 = vmatpush1.bf16.msra.mxu0 0
  %2798 = vmatprep.mubr.bf16.mxu0 0
  %2799 = vmatmul.mubr.bf16.gmra.mrb[0].mxu0 %v2764
  %v2800 = vpop.f32.mrb[0].mxu0
  %v2801 = vadd.f32 %v2161, %v2800
  %v2802 = vpop.f32.mrb[0].mxu0
  %v2803 = vpop.f32.mrb[0].mxu0
  %v2804 = vpop.f32.mrb[0].mxu0
  %2805 = vdwg.mxu0
  %v2806 = vadd.f32 %v2262, %v2311
  %v2807 = vadd.f32 %v2360, %v2409
  %v2808 = vadd.f32 %v2458, %v2507
  %v2809 = vadd.f32 %v2556, %v2605
  %v2810 = vadd.f32 %v2654, %v2703
  %v2811 = vadd.f32 %v2752, %v2801
  %v2812 = vadd.f32 %v2806, %v2807
  %v2813 = vadd.f32 %v2808, %v2809
  %v2814 = vadd.f32 %v2810, %v2811
  %v2815 = vadd.f32 %v2812, %v2813
  %v2816 = vadd.f32 %v2814, %v2213
  %v2817 = vadd.f32 %v2815, %v2816
  %v2818 = vld [vmem:[%s4] sm:$0x1]
  %v2820 = vlaneseq
  %v2821 = vshrl.u32 %v2820, 7
  %v2822 = vsub.s32 0, %v2821
  %v2823 = vrot.slane %v2818, %v2822
  %v2825 = vadd.f32 %v2817, %v2823
  %v2826 = vmax.f32 %v2825, 0.0
  %v2827 = vpack.c.bf16 %v2826, %v2826
  %v2828 = vld [vmem:[%s5] sm:$0xf]
  %v2829 = vld [vmem:[%s5 + $0x4] sm:$0xf]
  %v2830 = vld [vmem:[%s5 + $0x8] sm:$0xf]
  %v2831 = vld [vmem:[%s5 + $0xc] sm:$0xf]
  %v2832 = vld [vmem:[%s5 + $0x10] sm:$0xf]
  %v2833 = vld [vmem:[%s5 + $0x14] sm:$0xf]
  %v2834 = vld [vmem:[%s5 + $0x18] sm:$0xf]
  %v2835 = vld [vmem:[%s5 + $0x1c] sm:$0xf]
  %v2836 = vld [vmem:[%s5 + $0x20] sm:$0xf]
  %v2837 = vld [vmem:[%s5 + $0x24] sm:$0xf]
  %v2838 = vld [vmem:[%s5 + $0x28] sm:$0xf]
  %v2839 = vld [vmem:[%s5 + $0x2c] sm:$0xf]
  %v2840 = vld [vmem:[%s5 + $0x30] sm:$0xf]
  %v2841 = vld [vmem:[%s5 + $0x34] sm:$0xf]
  %v2842 = vld [vmem:[%s5 + $0x38] sm:$0xf]
  %v2843 = vld [vmem:[%s6] sm:$0x1]
  %v2845 = vlaneseq
  %v2846 = vshrl.u32 %v2845, 7
  %v2847 = vsub.s32 0, %v2846
  %v2848 = vrot.slane %v2843, %v2847
  %v2865 = vunpack.c.l.b16 %v2828
  %v2866 = vunpack.c.l.b16 %v2829
  %v2867 = vunpack.c.l.b16 %v2830
  %v2868 = vunpack.c.l.b16 %v2831
  %v2869 = vunpack.c.l.b16 %v2832
  %v2870 = vunpack.c.l.b16 %v2833
  %v2871 = vunpack.c.l.b16 %v2834
  %v2872 = vunpack.c.l.b16 %v2835
  %v2873 = vunpack.c.l.b16 %v2836
  %v2874 = vunpack.c.l.b16 %v2837
  %v2875 = vunpack.c.l.b16 %v2838
  %v2876 = vunpack.c.l.b16 %v2839
  %v2877 = vunpack.c.l.b16 %v2840
  %v2878 = vunpack.c.l.b16 %v2841
  %v2879 = vunpack.c.l.b16 %v2842
  %v2880 = vpack.c.b16 %v2866, %v2865
  %v2881 = vpack.c.b16 %v2868, %v2867
  %v2882 = vpack.c.b16 %v2870, %v2869
  %v2883 = vpack.c.b16 %v2872, %v2871
  %v2884 = vpack.c.b16 %v2874, %v2873
  %v2885 = vpack.c.b16 %v2876, %v2875
  %v2886 = vpack.c.b16 %v2878, %v2877
  %v2887 = vpack.c.b16 %v2879, %v2879
  %vm2895 = vcmask 982016
  %v2897 = vsel %vm2895, %v2827, 0
  %vm2899 = vcmask 1043456
  %v2901 = vsel %vm2899, %v2887, 0
  %2903 = vmatprep.subr.bf16.mxu0 0
  %2904 = vmatpush1.bf16.msra.mxu0 %v2880
  %2905 = vmatprep.subr.bf16.mxu0 0
  %2906 = vmatpush1.bf16.msra.mxu0 %v2881
  %2907 = vmatprep.subr.bf16.mxu0 0
  %2908 = vmatpush1.bf16.msra.mxu0 %v2882
  %2909 = vmatprep.subr.bf16.mxu0 0
  %2910 = vmatpush1.bf16.msra.mxu0 %v2883
  %2911 = vmatprep.subr.bf16.mxu0 0
  %2912 = vmatpush1.bf16.msra.mxu0 %v2884
  %2913 = vmatprep.subr.bf16.mxu0 0
  %2914 = vmatpush1.bf16.msra.mxu0 %v2885
  %2915 = vmatprep.subr.bf16.mxu0 0
  %2916 = vmatpush1.bf16.msra.mxu0 %v2886
  %2917 = vmatprep.subr.bf16.mxu0 0
  %2918 = vmatpush1.bf16.msra.mxu0 %v2901
  %2919 = vmatprep.subr.bf16.mxu0 0
  %2920 = vmatpush1.bf16.msra.mxu0 0
  %2921 = vmatprep.subr.bf16.mxu0 0
  %2922 = vmatpush1.bf16.msra.mxu0 0
  %2923 = vmatprep.subr.bf16.mxu0 0
  %2924 = vmatpush1.bf16.msra.mxu0 0
  %2925 = vmatprep.subr.bf16.mxu0 0
  %2926 = vmatpush1.bf16.msra.mxu0 0
  %2927 = vmatprep.subr.bf16.mxu0 0
  %2928 = vmatpush1.bf16.msra.mxu0 0
  %2929 = vmatprep.subr.bf16.mxu0 0
  %2930 = vmatpush1.bf16.msra.mxu0 0
  %2931 = vmatprep.subr.bf16.mxu0 0
  %2932 = vmatpush1.bf16.msra.mxu0 0
  %2933 = vmatprep.subr.bf16.mxu0 0
  %2934 = vmatpush1.bf16.msra.mxu0 0
  %2935 = vmatprep.mubr.bf16.mxu0 0
  %2936 = vmatmul.mubr.bf16.gmra.mrb[0].mxu0 %v2897
  %v2937 = vpop.f32.mrb[0].mxu0
  %v2938 = vadd.f32 %v2848, %v2937
  %v2939 = vpop.f32.mrb[0].mxu0
  %v2940 = vpop.f32.mrb[0].mxu0
  %v2941 = vpop.f32.mrb[0].mxu0
  %2942 = vdwg.mxu0
  %v2943 = vmax.f32 %v2938, 0.0
  %v2944 = vpack.c.bf16 %v2943, %v2943
  %v2945 = vld [vmem:[%s7] sm:$0xf]
  %v2946 = vld [vmem:[%s7 + $0x4] sm:$0xf]
  %v2947 = vld [vmem:[%s7 + $0x8] sm:$0xf]
  %v2948 = vld [vmem:[%s7 + $0xc] sm:$0xf]
  %v2949 = vld [vmem:[%s7 + $0x10] sm:$0xf]
  %v2950 = vld [vmem:[%s7 + $0x14] sm:$0xf]
  %v2951 = vld [vmem:[%s7 + $0x18] sm:$0xf]
  %v2952 = vld [vmem:[%s7 + $0x1c] sm:$0xf]
  %v2953 = vld [vmem:[%s7 + $0x20] sm:$0xf]
  %v2954 = vld [vmem:[%s7 + $0x24] sm:$0xf]
  %v2955 = vld [vmem:[%s7 + $0x28] sm:$0x3]
  %v2956 = vld [vmem:[%s8] sm:$0x1]
  %v2958 = vlaneseq
  %v2959 = vshrl.u32 %v2958, 7
  %v2960 = vsub.s32 0, %v2959
  %v2961 = vrot.slane %v2956, %v2960
  %v2974 = vunpack.c.l.b16 %v2945
  %v2975 = vunpack.c.l.b16 %v2946
  %v2976 = vunpack.c.l.b16 %v2947
  %v2977 = vunpack.c.l.b16 %v2948
  %v2978 = vunpack.c.l.b16 %v2949
  %v2979 = vunpack.c.l.b16 %v2950
  %v2980 = vunpack.c.l.b16 %v2951
  %v2981 = vunpack.c.l.b16 %v2952
  %v2982 = vunpack.c.l.b16 %v2953
  %v2983 = vunpack.c.l.b16 %v2954
  %v2984 = vunpack.c.l.b16 %v2955
  %v2985 = vpack.c.b16 %v2975, %v2974
  %v2986 = vpack.c.b16 %v2977, %v2976
  %v2987 = vpack.c.b16 %v2979, %v2978
  %v2988 = vpack.c.b16 %v2981, %v2980
  %v2989 = vpack.c.b16 %v2983, %v2982
  %v2990 = vpack.c.b16 %v2984, %v2984
  %vm2996 = vcmask 687104
  %v2998 = vsel %vm2996, %v2944, 0
  %vm3000 = vcmask 1041408
  %v3002 = vsel %vm3000, %v2990, 0
  %3004 = vmatprep.subr.bf16.mxu0 0
  %3005 = vmatpush1.bf16.msra.mxu0 %v2985
  %3006 = vmatprep.subr.bf16.mxu0 0
  %3007 = vmatpush1.bf16.msra.mxu0 %v2986
  %3008 = vmatprep.subr.bf16.mxu0 0
  %3009 = vmatpush1.bf16.msra.mxu0 %v2987
  %3010 = vmatprep.subr.bf16.mxu0 0
  %3011 = vmatpush1.bf16.msra.mxu0 %v2988
  %3012 = vmatprep.subr.bf16.mxu0 0
  %3013 = vmatpush1.bf16.msra.mxu0 %v2989
  %3014 = vmatprep.subr.bf16.mxu0 0
  %3015 = vmatpush1.bf16.msra.mxu0 %v3002
  %3016 = vmatprep.subr.bf16.mxu0 0
  %3017 = vmatpush1.bf16.msra.mxu0 0
  %3018 = vmatprep.subr.bf16.mxu0 0
  %3019 = vmatpush1.bf16.msra.mxu0 0
  %3020 = vmatprep.subr.bf16.mxu0 0
  %3021 = vmatpush1.bf16.msra.mxu0 0
  %3022 = vmatprep.subr.bf16.mxu0 0
  %3023 = vmatpush1.bf16.msra.mxu0 0
  %3024 = vmatprep.subr.bf16.mxu0 0
  %3025 = vmatpush1.bf16.msra.mxu0 0
  %3026 = vmatprep.subr.bf16.mxu0 0
  %3027 = vmatpush1.bf16.msra.mxu0 0
  %3028 = vmatprep.subr.bf16.mxu0 0
  %3029 = vmatpush1.bf16.msra.mxu0 0
  %3030 = vmatprep.subr.bf16.mxu0 0
  %3031 = vmatpush1.bf16.msra.mxu0 0
  %3032 = vmatprep.subr.bf16.mxu0 0
  %3033 = vmatpush1.bf16.msra.mxu0 0
  %3034 = vmatprep.subr.bf16.mxu0 0
  %3035 = vmatpush1.bf16.msra.mxu0 0
  %3036 = vmatprep.mubr.bf16.mxu0 0
  %3037 = vmatmul.mubr.bf16.gmra.mrb[0].mxu0 %v2998
  %v3038 = vpop.f32.mrb[0].mxu0
  %v3039 = vadd.f32 %v2961, %v3038
  %v3040 = vpop.f32.mrb[0].mxu0
  %v3041 = vpop.f32.mrb[0].mxu0
  %v3042 = vpop.f32.mrb[0].mxu0
  %3043 = vdwg.mxu0
  %3044 = vst [vmem:[%s9] sm:$0xff] %v3039
  // Predicated region
  $region38: #{lenet_forward.3} parent=0 // pred_check
    _
  $region39: #{lenet_forward.3} parent=0 // pred_check_branch
    %3046 = sbr.rel (0) target = $region41
  $region40: #{lenet_forward.3} parent=0 // pred_region
    _
  $region41: #{lenet_forward.3} parent=0 // pred_fallthru
    _
  // Predicated region
  $region42: #{lenet_forward.3} parent=0 // pred_check
    _
  $region43: #{lenet_forward.3} parent=0 // pred_check_branch
    %3048 = sbr.rel (0) target = $region45
  $region44: #{lenet_forward.3} parent=0 // pred_region
    _
  $region45: #{lenet_forward.3} parent=0 // pred_fallthru
    _

</llo_original>
